<compile_context>
chip_gen: v6e
topology: v6e:2x2x1
jax: 0.10.0
libtpu: 0.0.40
codegen_flags: <defaults>
</compile_context>

<pallas_src>
import functools

import jax
import jax.numpy as jnp
from jax import lax
from jax.experimental import pallas as pl
from jax.experimental.pallas import tpu as pltpu


# -----------------------------------------------------------------------------
# Fused kernel: conv stack -> 2-layer GRU -> Linear head
# -----------------------------------------------------------------------------
def _rl_hard_share_kernel(*refs, n_conv, K, paddings, eps, H):
    x_ref = refs[0]
    conv_refs = [(refs[1 + 2 * i], refs[2 + 2 * i]) for i in range(n_conv)]
    a0_ref, whh0_ref, a1_ref, afc_ref, o_ref = refs[1 + 2 * n_conv:]

    # ------------- Conv1d + BatchNorm1d (batch stats, folded) + ReLU ---------
    a = x_ref[...]                                    # (L, B, C_in), time-major
    for li in range(n_conv):
        w_ref, gb_ref = conv_refs[li]                 # w: (K*C_in, C_out); gb: (2, C_out)
        P = paddings[li]
        L_in, Bdim, C_in = a.shape
        C_out = w_ref.shape[1]
        L_out = L_in + 2 * P - (K - 1)                # stride=1, dilation=1
        if P > 0:
            zpad = jnp.zeros((P, Bdim, C_in), jnp.float32)
            a = jnp.concatenate([zpad, a, zpad], axis=0)   # in-VMEM zero padding
        # im2col: K leading-axis-shifted views (free address selection) are
        # lane-concatenated, then ONE MXU contraction with M = L_out*B rows.
        cols = jnp.concatenate([a[k:k + L_out] for k in range(K)], axis=-1)
        y = jnp.dot(cols.reshape(L_out * Bdim, K * C_in), w_ref[...],
                    preferred_element_type=jnp.float32)    # (L_out*B, C_out)
        # Conv bias omitted: exactly cancelled by the batch-stat mean subtraction.
        mean = jnp.mean(y, axis=0, keepdims=True)
        var = jnp.mean(y * y, axis=0, keepdims=True) - mean * mean
        scale = gb_ref[0:1, :] * lax.rsqrt(var + eps)       # gamma * rsqrt(var+eps)
        shift = gb_ref[1:2, :] - mean * scale               # beta  - mean * scale
        a = jnp.maximum(y * scale + shift, 0.0).reshape(L_out, Bdim, C_out)

    T, Bdim, C = a.shape                              # (T, B, C_last)

    # ---- GRU layer 0: hoisted input projection, ih+hh biases folded in ------
    # a0 = [ wih0_fused (C, 4H) ; bias row (1, 4H) ], columns = [r | z | i_n | pad]
    Wih0 = a0_ref[0:C, :]
    b0 = a0_ref[C:C + 1, :]
    gi0 = (jnp.dot(a.reshape(T * Bdim, C), Wih0, preferred_element_type=jnp.float32)
           + b0).reshape(T, Bdim, 4 * H)
    Whh0 = whh0_ref[...]                              # columns = [r | z | 0 | h_n]
    # a1 = [ wih1_fused (H,4H) ; whh1_fused (H,4H) ; bias row (1,4H) ]
    W1 = a1_ref[0:2 * H, :]
    B1b = jnp.broadcast_to(a1_ref[2 * H:2 * H + 1, :], (Bdim, 4 * H))  # hoisted

    h1 = jnp.zeros((Bdim, H), jnp.float32)
    h2 = jnp.zeros((Bdim, H), jnp.float32)
    # Fully unrolled time loop (T small & static). Per step: 2 matmuls total.
    for t in range(T):
        # ---- layer 0 cell (PyTorch gate order [r, z, n]) ----
        g0 = gi0[t] + jnp.dot(h1, Whh0, preferred_element_type=jnp.float32)
        rz0 = jax.nn.sigmoid(g0[:, 0:2 * H])          # single EUP push for r and z
        r0 = rz0[:, 0:H]
        z0 = rz0[:, H:2 * H]
        n0 = jnp.tanh(g0[:, 2 * H:3 * H] + r0 * g0[:, 3 * H:4 * H])
        h1 = (1.0 - z0) * n0 + z0 * h1
        # ---- layer 1 cell: merged (B,2H)x(2H,4H) matmul via [h1|h2] concat ----
        hcat = jnp.concatenate([h1, h2], axis=-1)
        g1 = jnp.dot(hcat, W1, preferred_element_type=jnp.float32) + B1b
        rz1 = jax.nn.sigmoid(g1[:, 0:2 * H])
        r1 = rz1[:, 0:H]
        z1 = rz1[:, H:2 * H]
        n1 = jnp.tanh(g1[:, 2 * H:3 * H] + r1 * g1[:, 3 * H:4 * H])
        h2 = (1.0 - z1) * n1 + z1 * h2

    # ---------- Linear(W, 1) on c2 (final hidden state of GRU layer 2) -------
    o_ref[...] = (jnp.dot(h2, afc_ref[0:H, :], preferred_element_type=jnp.float32)
                  + afc_ref[H:H + 1, :])


# -----------------------------------------------------------------------------
# Parameter init (same layouts/distributions as the PyTorch defaults)
# -----------------------------------------------------------------------------
def init_params(key, channel_ls, kernel_size, tower_width):
    params = {"conv": [], "gru": {}}
    n_layers = len(channel_ls) - 1
    keys = jax.random.split(key, 3 * n_layers + 10)
    ki = 0
    for i in range(n_layers):
        c_in, c_out = channel_ls[i], channel_ls[i + 1]
        w = 0.1 * jax.random.normal(keys[ki], (kernel_size, c_in, c_out), jnp.float32); ki += 1
        b = 0.1 * jax.random.normal(keys[ki], (c_out,), jnp.float32); ki += 1
        gamma = jnp.ones((c_out,), jnp.float32)     # BatchNorm1d default init
        beta = jnp.zeros((c_out,), jnp.float32)
        params["conv"].append({"w": w, "b": b, "gamma": gamma, "beta": beta})

    C, H = channel_ls[-1], tower_width
    s = 1.0 / jnp.sqrt(jnp.float32(H))

    def u(k, shape):
        return jax.random.uniform(k, shape, jnp.float32, -s, s)

    g = params["gru"]
    g["wih0"] = u(keys[ki], (C, 3 * H)); ki += 1
    g["whh0"] = u(keys[ki], (H, 3 * H)); ki += 1
    g["bih0"] = u(keys[ki], (3 * H,)); ki += 1
    g["bhh0"] = u(keys[ki], (3 * H,)); ki += 1
    g["wih1"] = u(keys[ki], (H, 3 * H)); ki += 1
    g["whh1"] = u(keys[ki], (H, 3 * H)); ki += 1
    g["bih1"] = u(keys[ki], (3 * H,)); ki += 1
    g["bhh1"] = u(keys[ki], (3 * H,)); ki += 1
    g["wfc"] = u(keys[ki], (H, 1)); ki += 1
    g["bfc"] = jnp.zeros((1,), jnp.float32)
    return params


# -----------------------------------------------------------------------------
# One-time parameter packing into the kernel layout (outside the hot path)
# -----------------------------------------------------------------------------
def pack_params(params, tower_width):
    H = tower_width
    conv_packed = []
    for layer in params["conv"]:
        w = layer["w"]                                   # (K, C_in, C_out)
        Kk, C_in, C_out = w.shape
        w_im2col = w.reshape(Kk * C_in, C_out)           # im2col weight block
        # Conv bias dropped: with training-mode (batch-stat) BatchNorm the
        # per-channel bias is exactly cancelled by the mean subtraction.
        gb = jnp.stack([layer["gamma"], layer["beta"]], axis=0)   # (2, C_out)
        conv_packed.append((w_im2col, gb))

    g = params["gru"]
    zH = jnp.zeros((H, H), jnp.float32)

    def fuse(wih, whh, bih, bhh):
        # Lane-dense 4H-wide column layout: [r | z | i_n | h_n]
        w_i = jnp.concatenate([wih, jnp.zeros((wih.shape[0], H), jnp.float32)], axis=1)
        w_h = jnp.concatenate([whh[:, :2 * H], zH, whh[:, 2 * H:]], axis=1)
        b = jnp.concatenate([bih[:2 * H] + bhh[:2 * H], bih[2 * H:], bhh[2 * H:]]
                            ).reshape(1, 4 * H)
        return w_i, w_h, b

    wih0_f, whh0_f, b0_f = fuse(g["wih0"], g["whh0"], g["bih0"], g["bhh0"])
    a0 = jnp.concatenate([wih0_f, b0_f], axis=0)             # (C+1, 4H)

    wih1_f, whh1_f, b1_f = fuse(g["wih1"], g["whh1"], g["bih1"], g["bhh1"])
    a1 = jnp.concatenate([wih1_f, whh1_f, b1_f], axis=0)     # (2H+1, 4H)

    afc = jnp.concatenate([g["wfc"], g["bfc"].reshape(1, 1)], axis=0)  # (H+1, 1)

    return {"conv": conv_packed, "a0": a0, "whh0": whh0_f, "a1": a1, "afc": afc}


# -----------------------------------------------------------------------------
# Forward wrapper: single pallas_call (no per-call weight re-layout)
# -----------------------------------------------------------------------------
def rl_hard_share_forward(packed, X, *, kernel_size, padding_ls, tower_width):
    """X: (B, L, 4) one-hot sequence -> (B, 1)."""
    H = tower_width
    B = X.shape[0]
    # Time-major (L, B, 4). The PyTorch module's own NCL transpose of the
    # (B, L, 4) one-hot input is numerically equivalent to this layout choice.
    x_tm = jnp.transpose(X, (1, 0, 2)).astype(jnp.float32)

    args = [x_tm]
    for w, gb in packed["conv"]:
        args += [w, gb]
    args += [packed["a0"], packed["whh0"], packed["a1"], packed["afc"]]

    kernel = functools.partial(
        _rl_hard_share_kernel,
        n_conv=len(packed["conv"]),
        K=kernel_size,
        paddings=tuple(padding_ls),
        eps=1e-5,
        H=H,
    )
    vmem = pl.BlockSpec(memory_space=pltpu.MemorySpace.VMEM)
    return pl.pallas_call(
        kernel,
        out_shape=jax.ShapeDtypeStruct((B, 1), jnp.float32),
        in_specs=[vmem] * len(args),
        out_specs=vmem,
    )(*args)


if __name__ == "__main__":
    # conv_args = (channel_ls, kernel_size, stride, padding_ls, dilation_ls, pad_to)
    channel_ls = [4, 16, 32]
    kernel_size = 3
    padding_ls = (1, 1)        # stride=1, dilation=1 -> length preserved
    tower_width = 32
    B, L = 2, 16

    key = jax.random.PRNGKey(0)
    k_param, k_x = jax.random.split(key)
    params = init_params(k_param, channel_ls, kernel_size, tower_width)
    packed = pack_params(params, tower_width)   # one-time re-layout, outside jit

    # one-hot input (B, L, 4), matching soft_share's `x.shape[2] == 4` branch
    idx = jax.random.randint(k_x, (B, L), 0, 4)
    X = jax.nn.one_hot(idx, 4, dtype=jnp.float32)

    fwd = jax.jit(functools.partial(rl_hard_share_forward,
                                    kernel_size=kernel_size,
                                    padding_ls=padding_ls,
                                    tower_width=tower_width))
    out = jax.block_until_ready(fwd(packed, X))
    assert out.shape == (B, 1), out.shape
    assert bool(jnp.all(jnp.isfinite(out)))
    print("KERNEL_OK")
</pallas_src>

<mosaic_0001>
module attributes {stable_mosaic.version = 11 : i64} {
  func.func @_rl_hard_share_kernel(%arg0: memref<16x2x4xf32, #tpu.memory_space<vmem>>, %arg1: memref<12x16xf32, #tpu.memory_space<vmem>>, %arg2: memref<2x16xf32, #tpu.memory_space<vmem>>, %arg3: memref<48x32xf32, #tpu.memory_space<vmem>>, %arg4: memref<2x32xf32, #tpu.memory_space<vmem>>, %arg5: memref<33x128xf32, #tpu.memory_space<vmem>>, %arg6: memref<32x128xf32, #tpu.memory_space<vmem>>, %arg7: memref<65x128xf32, #tpu.memory_space<vmem>>, %arg8: memref<33x1xf32, #tpu.memory_space<vmem>>, %arg9: memref<2x1xf32, #tpu.memory_space<vmem>>) attributes {dimension_semantics = [], scalar_prefetch = 0 : i64, scratch_operands = 0 : i64, tpu.core_type = #tpu.core_type<tc>} {
    %c0 = arith.constant 0 : index
    %c0_0 = arith.constant 0 : index
    %c0_1 = arith.constant 0 : index
    %0 = vector.load %arg0[%c0, %c0_0, %c0_1] : memref<16x2x4xf32, #tpu.memory_space<vmem>>, vector<16x2x4xf32>
    %cst = arith.constant 0.000000e+00 : f32
    %1 = vector.broadcast %cst : f32 to vector<1x2x4xf32>
    %2 = tpu.concatenate %1, %0, %1 in 0 : vector<1x2x4xf32>, vector<16x2x4xf32>, vector<1x2x4xf32> -> vector<18x2x4xf32>
    %3 = vector.extract_strided_slice %2 {offsets = [0, 0, 0], sizes = [16, 2, 4], strides = [1, 1, 1]} : vector<18x2x4xf32> to vector<16x2x4xf32>
    %4 = vector.extract_strided_slice %2 {offsets = [1, 0, 0], sizes = [16, 2, 4], strides = [1, 1, 1]} : vector<18x2x4xf32> to vector<16x2x4xf32>
    %5 = vector.extract_strided_slice %2 {offsets = [2, 0, 0], sizes = [16, 2, 4], strides = [1, 1, 1]} : vector<18x2x4xf32> to vector<16x2x4xf32>
    %6 = tpu.concatenate %3, %4, %5 in 2 : vector<16x2x4xf32>, vector<16x2x4xf32>, vector<16x2x4xf32> -> vector<16x2x12xf32>
    %7 = vector.shape_cast %6 : vector<16x2x12xf32> to vector<32x12xf32>
    %c0_2 = arith.constant 0 : index
    %c0_3 = arith.constant 0 : index
    %8 = vector.load %arg1[%c0_2, %c0_3] : memref<12x16xf32, #tpu.memory_space<vmem>>, vector<12x16xf32>
    %cst_4 = arith.constant dense<0.000000e+00> : vector<32x16xf32>
    %9 = tpu.matmul %7, %8, %cst_4 {dimension_numbers = #tpu.dot_dimension_numbers<[1], [0], [0], [1], [0, 0, 1, 1], [], []>} : vector<32x12xf32>, vector<12x16xf32>, vector<32x16xf32> -> vector<32x16xf32>
    %cst_5 = arith.constant dense<0.000000e+00> : vector<16xf32>
    %10 = vector.multi_reduction <add>, %9, %cst_5 [0] : vector<32x16xf32> to vector<16xf32>
    %11 = vector.shape_cast %10 : vector<16xf32> to vector<1x16xf32>
    %cst_6 = arith.constant 3.200000e+01 : f32
    %12 = vector.broadcast %cst_6 : f32 to vector<1x16xf32>
    %13 = arith.divf %11, %12 : vector<1x16xf32>
    %14 = arith.mulf %9, %9 : vector<32x16xf32>
    %cst_7 = arith.constant dense<0.000000e+00> : vector<16xf32>
    %15 = vector.multi_reduction <add>, %14, %cst_7 [0] : vector<32x16xf32> to vector<16xf32>
    %16 = vector.shape_cast %15 : vector<16xf32> to vector<1x16xf32>
    %cst_8 = arith.constant 3.200000e+01 : f32
    %17 = vector.broadcast %cst_8 : f32 to vector<1x16xf32>
    %18 = arith.divf %16, %17 : vector<1x16xf32>
    %19 = arith.mulf %13, %13 : vector<1x16xf32>
    %20 = arith.subf %18, %19 : vector<1x16xf32>
    %c0_9 = arith.constant 0 : index
    %c0_10 = arith.constant 0 : index
    %21 = vector.load %arg2[%c0_9, %c0_10] : memref<2x16xf32, #tpu.memory_space<vmem>>, vector<1x16xf32>
    %cst_11 = arith.constant 9.99999974E-6 : f32
    %22 = vector.broadcast %cst_11 : f32 to vector<1x16xf32>
    %23 = arith.addf %20, %22 : vector<1x16xf32>
    %24 = math.rsqrt %23 : vector<1x16xf32>
    %25 = arith.mulf %21, %24 : vector<1x16xf32>
    %c1 = arith.constant 1 : index
    %c0_12 = arith.constant 0 : index
    %26 = vector.load %arg2[%c1, %c0_12] : memref<2x16xf32, #tpu.memory_space<vmem>>, vector<1x16xf32>
    %27 = arith.mulf %13, %25 : vector<1x16xf32>
    %28 = arith.subf %26, %27 : vector<1x16xf32>
    %29 = vector.broadcast %25 : vector<1x16xf32> to vector<32x16xf32>
    %30 = arith.mulf %9, %29 : vector<32x16xf32>
    %31 = vector.broadcast %28 : vector<1x16xf32> to vector<32x16xf32>
    %32 = arith.addf %30, %31 : vector<32x16xf32>
    %cst_13 = arith.constant 0.000000e+00 : f32
    %33 = vector.broadcast %cst_13 : f32 to vector<32x16xf32>
    %34 = arith.maximumf %32, %33 : vector<32x16xf32>
    %35 = vector.shape_cast %34 : vector<32x16xf32> to vector<16x2x16xf32>
    %cst_14 = arith.constant 0.000000e+00 : f32
    %36 = vector.broadcast %cst_14 : f32 to vector<1x2x16xf32>
    %37 = tpu.concatenate %36, %35, %36 in 0 : vector<1x2x16xf32>, vector<16x2x16xf32>, vector<1x2x16xf32> -> vector<18x2x16xf32>
    %38 = vector.extract_strided_slice %37 {offsets = [0, 0, 0], sizes = [16, 2, 16], strides = [1, 1, 1]} : vector<18x2x16xf32> to vector<16x2x16xf32>
    %39 = vector.extract_strided_slice %37 {offsets = [1, 0, 0], sizes = [16, 2, 16], strides = [1, 1, 1]} : vector<18x2x16xf32> to vector<16x2x16xf32>
    %40 = vector.extract_strided_slice %37 {offsets = [2, 0, 0], sizes = [16, 2, 16], strides = [1, 1, 1]} : vector<18x2x16xf32> to vector<16x2x16xf32>
    %41 = tpu.concatenate %38, %39, %40 in 2 : vector<16x2x16xf32>, vector<16x2x16xf32>, vector<16x2x16xf32> -> vector<16x2x48xf32>
    %42 = vector.shape_cast %41 : vector<16x2x48xf32> to vector<32x48xf32>
    %c0_15 = arith.constant 0 : index
    %c0_16 = arith.constant 0 : index
    %43 = vector.load %arg3[%c0_15, %c0_16] : memref<48x32xf32, #tpu.memory_space<vmem>>, vector<48x32xf32>
    %cst_17 = arith.constant dense<0.000000e+00> : vector<32x32xf32>
    %44 = tpu.matmul %42, %43, %cst_17 {dimension_numbers = #tpu.dot_dimension_numbers<[1], [0], [0], [1], [0, 0, 1, 1], [], []>} : vector<32x48xf32>, vector<48x32xf32>, vector<32x32xf32> -> vector<32x32xf32>
    %cst_18 = arith.constant dense<0.000000e+00> : vector<32xf32>
    %45 = vector.multi_reduction <add>, %44, %cst_18 [0] : vector<32x32xf32> to vector<32xf32>
    %46 = vector.shape_cast %45 : vector<32xf32> to vector<1x32xf32>
    %cst_19 = arith.constant 3.200000e+01 : f32
    %47 = vector.broadcast %cst_19 : f32 to vector<1x32xf32>
    %48 = arith.divf %46, %47 : vector<1x32xf32>
    %49 = arith.mulf %44, %44 : vector<32x32xf32>
    %cst_20 = arith.constant dense<0.000000e+00> : vector<32xf32>
    %50 = vector.multi_reduction <add>, %49, %cst_20 [0] : vector<32x32xf32> to vector<32xf32>
    %51 = vector.shape_cast %50 : vector<32xf32> to vector<1x32xf32>
    %cst_21 = arith.constant 3.200000e+01 : f32
    %52 = vector.broadcast %cst_21 : f32 to vector<1x32xf32>
    %53 = arith.divf %51, %52 : vector<1x32xf32>
    %54 = arith.mulf %48, %48 : vector<1x32xf32>
    %55 = arith.subf %53, %54 : vector<1x32xf32>
    %c0_22 = arith.constant 0 : index
    %c0_23 = arith.constant 0 : index
    %56 = vector.load %arg4[%c0_22, %c0_23] : memref<2x32xf32, #tpu.memory_space<vmem>>, vector<1x32xf32>
    %cst_24 = arith.constant 9.99999974E-6 : f32
    %57 = vector.broadcast %cst_24 : f32 to vector<1x32xf32>
    %58 = arith.addf %55, %57 : vector<1x32xf32>
    %59 = math.rsqrt %58 : vector<1x32xf32>
    %60 = arith.mulf %56, %59 : vector<1x32xf32>
    %c1_25 = arith.constant 1 : index
    %c0_26 = arith.constant 0 : index
    %61 = vector.load %arg4[%c1_25, %c0_26] : memref<2x32xf32, #tpu.memory_space<vmem>>, vector<1x32xf32>
    %62 = arith.mulf %48, %60 : vector<1x32xf32>
    %63 = arith.subf %61, %62 : vector<1x32xf32>
    %64 = vector.broadcast %60 : vector<1x32xf32> to vector<32x32xf32>
    %65 = arith.mulf %44, %64 : vector<32x32xf32>
    %66 = vector.broadcast %63 : vector<1x32xf32> to vector<32x32xf32>
    %67 = arith.addf %65, %66 : vector<32x32xf32>
    %cst_27 = arith.constant 0.000000e+00 : f32
    %68 = vector.broadcast %cst_27 : f32 to vector<32x32xf32>
    %69 = arith.maximumf %67, %68 : vector<32x32xf32>
    %70 = vector.shape_cast %69 : vector<32x32xf32> to vector<16x2x32xf32>
    %c0_28 = arith.constant 0 : index
    %c0_29 = arith.constant 0 : index
    %71 = vector.load %arg5[%c0_28, %c0_29] : memref<33x128xf32, #tpu.memory_space<vmem>>, vector<32x128xf32>
    %c32 = arith.constant 32 : index
    %c0_30 = arith.constant 0 : index
    %72 = vector.load %arg5[%c32, %c0_30] : memref<33x128xf32, #tpu.memory_space<vmem>>, vector<1x128xf32>
    %73 = vector.shape_cast %70 : vector<16x2x32xf32> to vector<32x32xf32>
    %cst_31 = arith.constant dense<0.000000e+00> : vector<32x128xf32>
    %74 = tpu.matmul %73, %71, %cst_31 {dimension_numbers = #tpu.dot_dimension_numbers<[1], [0], [0], [1], [0, 0, 1, 1], [], []>} : vector<32x32xf32>, vector<32x128xf32>, vector<32x128xf32> -> vector<32x128xf32>
    %75 = vector.broadcast %72 : vector<1x128xf32> to vector<32x128xf32>
    %76 = arith.addf %74, %75 : vector<32x128xf32>
    %77 = vector.shape_cast %76 : vector<32x128xf32> to vector<16x2x128xf32>
    %c0_32 = arith.constant 0 : index
    %c0_33 = arith.constant 0 : index
    %78 = vector.load %arg6[%c0_32, %c0_33] : memref<32x128xf32, #tpu.memory_space<vmem>>, vector<32x128xf32>
    %c0_34 = arith.constant 0 : index
    %c0_35 = arith.constant 0 : index
    %79 = vector.load %arg7[%c0_34, %c0_35] : memref<65x128xf32, #tpu.memory_space<vmem>>, vector<64x128xf32>
    %c64 = arith.constant 64 : index
    %c0_36 = arith.constant 0 : index
    %80 = vector.load %arg7[%c64, %c0_36] : memref<65x128xf32, #tpu.memory_space<vmem>>, vector<1x128xf32>
    %81 = vector.shape_cast %80 : vector<1x128xf32> to vector<1x128xf32>
    %82 = vector.broadcast %81 : vector<1x128xf32> to vector<2x128xf32>
    %cst_37 = arith.constant 0.000000e+00 : f32
    %83 = vector.broadcast %cst_37 : f32 to vector<2x32xf32>
    %cst_38 = arith.constant 0.000000e+00 : f32
    %84 = vector.broadcast %cst_38 : f32 to vector<2x32xf32>
    %85 = vector.extract_strided_slice %77 {offsets = [0, 0, 0], sizes = [1, 2, 128], strides = [1, 1, 1]} : vector<16x2x128xf32> to vector<1x2x128xf32>
    %86 = vector.shape_cast %85 : vector<1x2x128xf32> to vector<2x128xf32>
    %cst_39 = arith.constant dense<0.000000e+00> : vector<2x128xf32>
    %87 = tpu.matmul %83, %78, %cst_39 {dimension_numbers = #tpu.dot_dimension_numbers<[1], [0], [0], [1], [0, 0, 1, 1], [], []>} : vector<2x32xf32>, vector<32x128xf32>, vector<2x128xf32> -> vector<2x128xf32>
    %88 = arith.addf %86, %87 : vector<2x128xf32>
    %89 = vector.extract_strided_slice %88 {offsets = [0, 0], sizes = [2, 64], strides = [1, 1]} : vector<2x128xf32> to vector<2x64xf32>
    %90 = arith.negf %89 : vector<2x64xf32>
    %91 = math.exp %90 : vector<2x64xf32>
    %cst_40 = arith.constant 1.000000e+00 : f32
    %92 = vector.broadcast %cst_40 : f32 to vector<2x64xf32>
    %93 = arith.addf %92, %91 : vector<2x64xf32>
    %94 = arith.divf %92, %93 : vector<2x64xf32>
    %95 = vector.extract_strided_slice %94 {offsets = [0, 0], sizes = [2, 32], strides = [1, 1]} : vector<2x64xf32> to vector<2x32xf32>
    %96 = vector.extract_strided_slice %94 {offsets = [0, 32], sizes = [2, 32], strides = [1, 1]} : vector<2x64xf32> to vector<2x32xf32>
    %97 = vector.extract_strided_slice %88 {offsets = [0, 64], sizes = [2, 32], strides = [1, 1]} : vector<2x128xf32> to vector<2x32xf32>
    %98 = vector.extract_strided_slice %88 {offsets = [0, 96], sizes = [2, 32], strides = [1, 1]} : vector<2x128xf32> to vector<2x32xf32>
    %99 = arith.mulf %95, %98 : vector<2x32xf32>
    %100 = arith.addf %97, %99 : vector<2x32xf32>
    %101 = math.tanh %100 : vector<2x32xf32>
    %cst_41 = arith.constant 1.000000e+00 : f32
    %102 = vector.broadcast %cst_41 : f32 to vector<2x32xf32>
    %103 = arith.subf %102, %96 : vector<2x32xf32>
    %104 = arith.mulf %103, %101 : vector<2x32xf32>
    %105 = arith.mulf %96, %83 : vector<2x32xf32>
    %106 = arith.addf %104, %105 : vector<2x32xf32>
    %107 = tpu.concatenate %106, %84 in 1 : vector<2x32xf32>, vector<2x32xf32> -> vector<2x64xf32>
    %cst_42 = arith.constant dense<0.000000e+00> : vector<2x128xf32>
    %108 = tpu.matmul %107, %79, %cst_42 {dimension_numbers = #tpu.dot_dimension_numbers<[1], [0], [0], [1], [0, 0, 1, 1], [], []>} : vector<2x64xf32>, vector<64x128xf32>, vector<2x128xf32> -> vector<2x128xf32>
    %109 = arith.addf %108, %82 : vector<2x128xf32>
    %110 = vector.extract_strided_slice %109 {offsets = [0, 0], sizes = [2, 64], strides = [1, 1]} : vector<2x128xf32> to vector<2x64xf32>
    %111 = arith.negf %110 : vector<2x64xf32>
    %112 = math.exp %111 : vector<2x64xf32>
    %cst_43 = arith.constant 1.000000e+00 : f32
    %113 = vector.broadcast %cst_43 : f32 to vector<2x64xf32>
    %114 = arith.addf %113, %112 : vector<2x64xf32>
    %115 = arith.divf %113, %114 : vector<2x64xf32>
    %116 = vector.extract_strided_slice %115 {offsets = [0, 0], sizes = [2, 32], strides = [1, 1]} : vector<2x64xf32> to vector<2x32xf32>
    %117 = vector.extract_strided_slice %115 {offsets = [0, 32], sizes = [2, 32], strides = [1, 1]} : vector<2x64xf32> to vector<2x32xf32>
    %118 = vector.extract_strided_slice %109 {offsets = [0, 64], sizes = [2, 32], strides = [1, 1]} : vector<2x128xf32> to vector<2x32xf32>
    %119 = vector.extract_strided_slice %109 {offsets = [0, 96], sizes = [2, 32], strides = [1, 1]} : vector<2x128xf32> to vector<2x32xf32>
    %120 = arith.mulf %116, %119 : vector<2x32xf32>
    %121 = arith.addf %118, %120 : vector<2x32xf32>
    %122 = math.tanh %121 : vector<2x32xf32>
    %cst_44 = arith.constant 1.000000e+00 : f32
    %123 = vector.broadcast %cst_44 : f32 to vector<2x32xf32>
    %124 = arith.subf %123, %117 : vector<2x32xf32>
    %125 = arith.mulf %124, %122 : vector<2x32xf32>
    %126 = arith.mulf %117, %84 : vector<2x32xf32>
    %127 = arith.addf %125, %126 : vector<2x32xf32>
    %128 = vector.extract_strided_slice %77 {offsets = [1, 0, 0], sizes = [1, 2, 128], strides = [1, 1, 1]} : vector<16x2x128xf32> to vector<1x2x128xf32>
    %129 = vector.shape_cast %128 : vector<1x2x128xf32> to vector<2x128xf32>
    %cst_45 = arith.constant dense<0.000000e+00> : vector<2x128xf32>
    %130 = tpu.matmul %106, %78, %cst_45 {dimension_numbers = #tpu.dot_dimension_numbers<[1], [0], [0], [1], [0, 0, 1, 1], [], []>} : vector<2x32xf32>, vector<32x128xf32>, vector<2x128xf32> -> vector<2x128xf32>
    %131 = arith.addf %129, %130 : vector<2x128xf32>
    %132 = vector.extract_strided_slice %131 {offsets = [0, 0], sizes = [2, 64], strides = [1, 1]} : vector<2x128xf32> to vector<2x64xf32>
    %133 = arith.negf %132 : vector<2x64xf32>
    %134 = math.exp %133 : vector<2x64xf32>
    %cst_46 = arith.constant 1.000000e+00 : f32
    %135 = vector.broadcast %cst_46 : f32 to vector<2x64xf32>
    %136 = arith.addf %135, %134 : vector<2x64xf32>
    %137 = arith.divf %135, %136 : vector<2x64xf32>
    %138 = vector.extract_strided_slice %137 {offsets = [0, 0], sizes = [2, 32], strides = [1, 1]} : vector<2x64xf32> to vector<2x32xf32>
    %139 = vector.extract_strided_slice %137 {offsets = [0, 32], sizes = [2, 32], strides = [1, 1]} : vector<2x64xf32> to vector<2x32xf32>
    %140 = vector.extract_strided_slice %131 {offsets = [0, 64], sizes = [2, 32], strides = [1, 1]} : vector<2x128xf32> to vector<2x32xf32>
    %141 = vector.extract_strided_slice %131 {offsets = [0, 96], sizes = [2, 32], strides = [1, 1]} : vector<2x128xf32> to vector<2x32xf32>
    %142 = arith.mulf %138, %141 : vector<2x32xf32>
    %143 = arith.addf %140, %142 : vector<2x32xf32>
    %144 = math.tanh %143 : vector<2x32xf32>
    %cst_47 = arith.constant 1.000000e+00 : f32
    %145 = vector.broadcast %cst_47 : f32 to vector<2x32xf32>
    %146 = arith.subf %145, %139 : vector<2x32xf32>
    %147 = arith.mulf %146, %144 : vector<2x32xf32>
    %148 = arith.mulf %139, %106 : vector<2x32xf32>
    %149 = arith.addf %147, %148 : vector<2x32xf32>
    %150 = tpu.concatenate %149, %127 in 1 : vector<2x32xf32>, vector<2x32xf32> -> vector<2x64xf32>
    %cst_48 = arith.constant dense<0.000000e+00> : vector<2x128xf32>
    %151 = tpu.matmul %150, %79, %cst_48 {dimension_numbers = #tpu.dot_dimension_numbers<[1], [0], [0], [1], [0, 0, 1, 1], [], []>} : vector<2x64xf32>, vector<64x128xf32>, vector<2x128xf32> -> vector<2x128xf32>
    %152 = arith.addf %151, %82 : vector<2x128xf32>
    %153 = vector.extract_strided_slice %152 {offsets = [0, 0], sizes = [2, 64], strides = [1, 1]} : vector<2x128xf32> to vector<2x64xf32>
    %154 = arith.negf %153 : vector<2x64xf32>
    %155 = math.exp %154 : vector<2x64xf32>
    %cst_49 = arith.constant 1.000000e+00 : f32
    %156 = vector.broadcast %cst_49 : f32 to vector<2x64xf32>
    %157 = arith.addf %156, %155 : vector<2x64xf32>
    %158 = arith.divf %156, %157 : vector<2x64xf32>
    %159 = vector.extract_strided_slice %158 {offsets = [0, 0], sizes = [2, 32], strides = [1, 1]} : vector<2x64xf32> to vector<2x32xf32>
    %160 = vector.extract_strided_slice %158 {offsets = [0, 32], sizes = [2, 32], strides = [1, 1]} : vector<2x64xf32> to vector<2x32xf32>
    %161 = vector.extract_strided_slice %152 {offsets = [0, 64], sizes = [2, 32], strides = [1, 1]} : vector<2x128xf32> to vector<2x32xf32>
    %162 = vector.extract_strided_slice %152 {offsets = [0, 96], sizes = [2, 32], strides = [1, 1]} : vector<2x128xf32> to vector<2x32xf32>
    %163 = arith.mulf %159, %162 : vector<2x32xf32>
    %164 = arith.addf %161, %163 : vector<2x32xf32>
    %165 = math.tanh %164 : vector<2x32xf32>
    %cst_50 = arith.constant 1.000000e+00 : f32
    %166 = vector.broadcast %cst_50 : f32 to vector<2x32xf32>
    %167 = arith.subf %166, %160 : vector<2x32xf32>
    %168 = arith.mulf %167, %165 : vector<2x32xf32>
    %169 = arith.mulf %160, %127 : vector<2x32xf32>
    %170 = arith.addf %168, %169 : vector<2x32xf32>
    %171 = vector.extract_strided_slice %77 {offsets = [2, 0, 0], sizes = [1, 2, 128], strides = [1, 1, 1]} : vector<16x2x128xf32> to vector<1x2x128xf32>
    %172 = vector.shape_cast %171 : vector<1x2x128xf32> to vector<2x128xf32>
    %cst_51 = arith.constant dense<0.000000e+00> : vector<2x128xf32>
    %173 = tpu.matmul %149, %78, %cst_51 {dimension_numbers = #tpu.dot_dimension_numbers<[1], [0], [0], [1], [0, 0, 1, 1], [], []>} : vector<2x32xf32>, vector<32x128xf32>, vector<2x128xf32> -> vector<2x128xf32>
    %174 = arith.addf %172, %173 : vector<2x128xf32>
    %175 = vector.extract_strided_slice %174 {offsets = [0, 0], sizes = [2, 64], strides = [1, 1]} : vector<2x128xf32> to vector<2x64xf32>
    %176 = arith.negf %175 : vector<2x64xf32>
    %177 = math.exp %176 : vector<2x64xf32>
    %cst_52 = arith.constant 1.000000e+00 : f32
    %178 = vector.broadcast %cst_52 : f32 to vector<2x64xf32>
    %179 = arith.addf %178, %177 : vector<2x64xf32>
    %180 = arith.divf %178, %179 : vector<2x64xf32>
    %181 = vector.extract_strided_slice %180 {offsets = [0, 0], sizes = [2, 32], strides = [1, 1]} : vector<2x64xf32> to vector<2x32xf32>
    %182 = vector.extract_strided_slice %180 {offsets = [0, 32], sizes = [2, 32], strides = [1, 1]} : vector<2x64xf32> to vector<2x32xf32>
    %183 = vector.extract_strided_slice %174 {offsets = [0, 64], sizes = [2, 32], strides = [1, 1]} : vector<2x128xf32> to vector<2x32xf32>
    %184 = vector.extract_strided_slice %174 {offsets = [0, 96], sizes = [2, 32], strides = [1, 1]} : vector<2x128xf32> to vector<2x32xf32>
    %185 = arith.mulf %181, %184 : vector<2x32xf32>
    %186 = arith.addf %183, %185 : vector<2x32xf32>
    %187 = math.tanh %186 : vector<2x32xf32>
    %cst_53 = arith.constant 1.000000e+00 : f32
    %188 = vector.broadcast %cst_53 : f32 to vector<2x32xf32>
    %189 = arith.subf %188, %182 : vector<2x32xf32>
    %190 = arith.mulf %189, %187 : vector<2x32xf32>
    %191 = arith.mulf %182, %149 : vector<2x32xf32>
    %192 = arith.addf %190, %191 : vector<2x32xf32>
    %193 = tpu.concatenate %192, %170 in 1 : vector<2x32xf32>, vector<2x32xf32> -> vector<2x64xf32>
    %cst_54 = arith.constant dense<0.000000e+00> : vector<2x128xf32>
    %194 = tpu.matmul %193, %79, %cst_54 {dimension_numbers = #tpu.dot_dimension_numbers<[1], [0], [0], [1], [0, 0, 1, 1], [], []>} : vector<2x64xf32>, vector<64x128xf32>, vector<2x128xf32> -> vector<2x128xf32>
    %195 = arith.addf %194, %82 : vector<2x128xf32>
    %196 = vector.extract_strided_slice %195 {offsets = [0, 0], sizes = [2, 64], strides = [1, 1]} : vector<2x128xf32> to vector<2x64xf32>
    %197 = arith.negf %196 : vector<2x64xf32>
    %198 = math.exp %197 : vector<2x64xf32>
    %cst_55 = arith.constant 1.000000e+00 : f32
    %199 = vector.broadcast %cst_55 : f32 to vector<2x64xf32>
    %200 = arith.addf %199, %198 : vector<2x64xf32>
    %201 = arith.divf %199, %200 : vector<2x64xf32>
    %202 = vector.extract_strided_slice %201 {offsets = [0, 0], sizes = [2, 32], strides = [1, 1]} : vector<2x64xf32> to vector<2x32xf32>
    %203 = vector.extract_strided_slice %201 {offsets = [0, 32], sizes = [2, 32], strides = [1, 1]} : vector<2x64xf32> to vector<2x32xf32>
    %204 = vector.extract_strided_slice %195 {offsets = [0, 64], sizes = [2, 32], strides = [1, 1]} : vector<2x128xf32> to vector<2x32xf32>
    %205 = vector.extract_strided_slice %195 {offsets = [0, 96], sizes = [2, 32], strides = [1, 1]} : vector<2x128xf32> to vector<2x32xf32>
    %206 = arith.mulf %202, %205 : vector<2x32xf32>
    %207 = arith.addf %204, %206 : vector<2x32xf32>
    %208 = math.tanh %207 : vector<2x32xf32>
    %cst_56 = arith.constant 1.000000e+00 : f32
    %209 = vector.broadcast %cst_56 : f32 to vector<2x32xf32>
    %210 = arith.subf %209, %203 : vector<2x32xf32>
    %211 = arith.mulf %210, %208 : vector<2x32xf32>
    %212 = arith.mulf %203, %170 : vector<2x32xf32>
    %213 = arith.addf %211, %212 : vector<2x32xf32>
    %214 = vector.extract_strided_slice %77 {offsets = [3, 0, 0], sizes = [1, 2, 128], strides = [1, 1, 1]} : vector<16x2x128xf32> to vector<1x2x128xf32>
    %215 = vector.shape_cast %214 : vector<1x2x128xf32> to vector<2x128xf32>
    %cst_57 = arith.constant dense<0.000000e+00> : vector<2x128xf32>
    %216 = tpu.matmul %192, %78, %cst_57 {dimension_numbers = #tpu.dot_dimension_numbers<[1], [0], [0], [1], [0, 0, 1, 1], [], []>} : vector<2x32xf32>, vector<32x128xf32>, vector<2x128xf32> -> vector<2x128xf32>
    %217 = arith.addf %215, %216 : vector<2x128xf32>
    %218 = vector.extract_strided_slice %217 {offsets = [0, 0], sizes = [2, 64], strides = [1, 1]} : vector<2x128xf32> to vector<2x64xf32>
    %219 = arith.negf %218 : vector<2x64xf32>
    %220 = math.exp %219 : vector<2x64xf32>
    %cst_58 = arith.constant 1.000000e+00 : f32
    %221 = vector.broadcast %cst_58 : f32 to vector<2x64xf32>
    %222 = arith.addf %221, %220 : vector<2x64xf32>
    %223 = arith.divf %221, %222 : vector<2x64xf32>
    %224 = vector.extract_strided_slice %223 {offsets = [0, 0], sizes = [2, 32], strides = [1, 1]} : vector<2x64xf32> to vector<2x32xf32>
    %225 = vector.extract_strided_slice %223 {offsets = [0, 32], sizes = [2, 32], strides = [1, 1]} : vector<2x64xf32> to vector<2x32xf32>
    %226 = vector.extract_strided_slice %217 {offsets = [0, 64], sizes = [2, 32], strides = [1, 1]} : vector<2x128xf32> to vector<2x32xf32>
    %227 = vector.extract_strided_slice %217 {offsets = [0, 96], sizes = [2, 32], strides = [1, 1]} : vector<2x128xf32> to vector<2x32xf32>
    %228 = arith.mulf %224, %227 : vector<2x32xf32>
    %229 = arith.addf %226, %228 : vector<2x32xf32>
    %230 = math.tanh %229 : vector<2x32xf32>
    %cst_59 = arith.constant 1.000000e+00 : f32
    %231 = vector.broadcast %cst_59 : f32 to vector<2x32xf32>
    %232 = arith.subf %231, %225 : vector<2x32xf32>
    %233 = arith.mulf %232, %230 : vector<2x32xf32>
    %234 = arith.mulf %225, %192 : vector<2x32xf32>
    %235 = arith.addf %233, %234 : vector<2x32xf32>
    %236 = tpu.concatenate %235, %213 in 1 : vector<2x32xf32>, vector<2x32xf32> -> vector<2x64xf32>
    %cst_60 = arith.constant dense<0.000000e+00> : vector<2x128xf32>
    %237 = tpu.matmul %236, %79, %cst_60 {dimension_numbers = #tpu.dot_dimension_numbers<[1], [0], [0], [1], [0, 0, 1, 1], [], []>} : vector<2x64xf32>, vector<64x128xf32>, vector<2x128xf32> -> vector<2x128xf32>
    %238 = arith.addf %237, %82 : vector<2x128xf32>
    %239 = vector.extract_strided_slice %238 {offsets = [0, 0], sizes = [2, 64], strides = [1, 1]} : vector<2x128xf32> to vector<2x64xf32>
    %240 = arith.negf %239 : vector<2x64xf32>
    %241 = math.exp %240 : vector<2x64xf32>
    %cst_61 = arith.constant 1.000000e+00 : f32
    %242 = vector.broadcast %cst_61 : f32 to vector<2x64xf32>
    %243 = arith.addf %242, %241 : vector<2x64xf32>
    %244 = arith.divf %242, %243 : vector<2x64xf32>
    %245 = vector.extract_strided_slice %244 {offsets = [0, 0], sizes = [2, 32], strides = [1, 1]} : vector<2x64xf32> to vector<2x32xf32>
    %246 = vector.extract_strided_slice %244 {offsets = [0, 32], sizes = [2, 32], strides = [1, 1]} : vector<2x64xf32> to vector<2x32xf32>
    %247 = vector.extract_strided_slice %238 {offsets = [0, 64], sizes = [2, 32], strides = [1, 1]} : vector<2x128xf32> to vector<2x32xf32>
    %248 = vector.extract_strided_slice %238 {offsets = [0, 96], sizes = [2, 32], strides = [1, 1]} : vector<2x128xf32> to vector<2x32xf32>
    %249 = arith.mulf %245, %248 : vector<2x32xf32>
    %250 = arith.addf %247, %249 : vector<2x32xf32>
    %251 = math.tanh %250 : vector<2x32xf32>
    %cst_62 = arith.constant 1.000000e+00 : f32
    %252 = vector.broadcast %cst_62 : f32 to vector<2x32xf32>
    %253 = arith.subf %252, %246 : vector<2x32xf32>
    %254 = arith.mulf %253, %251 : vector<2x32xf32>
    %255 = arith.mulf %246, %213 : vector<2x32xf32>
    %256 = arith.addf %254, %255 : vector<2x32xf32>
    %257 = vector.extract_strided_slice %77 {offsets = [4, 0, 0], sizes = [1, 2, 128], strides = [1, 1, 1]} : vector<16x2x128xf32> to vector<1x2x128xf32>
    %258 = vector.shape_cast %257 : vector<1x2x128xf32> to vector<2x128xf32>
    %cst_63 = arith.constant dense<0.000000e+00> : vector<2x128xf32>
    %259 = tpu.matmul %235, %78, %cst_63 {dimension_numbers = #tpu.dot_dimension_numbers<[1], [0], [0], [1], [0, 0, 1, 1], [], []>} : vector<2x32xf32>, vector<32x128xf32>, vector<2x128xf32> -> vector<2x128xf32>
    %260 = arith.addf %258, %259 : vector<2x128xf32>
    %261 = vector.extract_strided_slice %260 {offsets = [0, 0], sizes = [2, 64], strides = [1, 1]} : vector<2x128xf32> to vector<2x64xf32>
    %262 = arith.negf %261 : vector<2x64xf32>
    %263 = math.exp %262 : vector<2x64xf32>
    %cst_64 = arith.constant 1.000000e+00 : f32
    %264 = vector.broadcast %cst_64 : f32 to vector<2x64xf32>
    %265 = arith.addf %264, %263 : vector<2x64xf32>
    %266 = arith.divf %264, %265 : vector<2x64xf32>
    %267 = vector.extract_strided_slice %266 {offsets = [0, 0], sizes = [2, 32], strides = [1, 1]} : vector<2x64xf32> to vector<2x32xf32>
    %268 = vector.extract_strided_slice %266 {offsets = [0, 32], sizes = [2, 32], strides = [1, 1]} : vector<2x64xf32> to vector<2x32xf32>
    %269 = vector.extract_strided_slice %260 {offsets = [0, 64], sizes = [2, 32], strides = [1, 1]} : vector<2x128xf32> to vector<2x32xf32>
    %270 = vector.extract_strided_slice %260 {offsets = [0, 96], sizes = [2, 32], strides = [1, 1]} : vector<2x128xf32> to vector<2x32xf32>
    %271 = arith.mulf %267, %270 : vector<2x32xf32>
    %272 = arith.addf %269, %271 : vector<2x32xf32>
    %273 = math.tanh %272 : vector<2x32xf32>
    %cst_65 = arith.constant 1.000000e+00 : f32
    %274 = vector.broadcast %cst_65 : f32 to vector<2x32xf32>
    %275 = arith.subf %274, %268 : vector<2x32xf32>
    %276 = arith.mulf %275, %273 : vector<2x32xf32>
    %277 = arith.mulf %268, %235 : vector<2x32xf32>
    %278 = arith.addf %276, %277 : vector<2x32xf32>
    %279 = tpu.concatenate %278, %256 in 1 : vector<2x32xf32>, vector<2x32xf32> -> vector<2x64xf32>
    %cst_66 = arith.constant dense<0.000000e+00> : vector<2x128xf32>
    %280 = tpu.matmul %279, %79, %cst_66 {dimension_numbers = #tpu.dot_dimension_numbers<[1], [0], [0], [1], [0, 0, 1, 1], [], []>} : vector<2x64xf32>, vector<64x128xf32>, vector<2x128xf32> -> vector<2x128xf32>
    %281 = arith.addf %280, %82 : vector<2x128xf32>
    %282 = vector.extract_strided_slice %281 {offsets = [0, 0], sizes = [2, 64], strides = [1, 1]} : vector<2x128xf32> to vector<2x64xf32>
    %283 = arith.negf %282 : vector<2x64xf32>
    %284 = math.exp %283 : vector<2x64xf32>
    %cst_67 = arith.constant 1.000000e+00 : f32
    %285 = vector.broadcast %cst_67 : f32 to vector<2x64xf32>
    %286 = arith.addf %285, %284 : vector<2x64xf32>
    %287 = arith.divf %285, %286 : vector<2x64xf32>
    %288 = vector.extract_strided_slice %287 {offsets = [0, 0], sizes = [2, 32], strides = [1, 1]} : vector<2x64xf32> to vector<2x32xf32>
    %289 = vector.extract_strided_slice %287 {offsets = [0, 32], sizes = [2, 32], strides = [1, 1]} : vector<2x64xf32> to vector<2x32xf32>
    %290 = vector.extract_strided_slice %281 {offsets = [0, 64], sizes = [2, 32], strides = [1, 1]} : vector<2x128xf32> to vector<2x32xf32>
    %291 = vector.extract_strided_slice %281 {offsets = [0, 96], sizes = [2, 32], strides = [1, 1]} : vector<2x128xf32> to vector<2x32xf32>
    %292 = arith.mulf %288, %291 : vector<2x32xf32>
    %293 = arith.addf %290, %292 : vector<2x32xf32>
    %294 = math.tanh %293 : vector<2x32xf32>
    %cst_68 = arith.constant 1.000000e+00 : f32
    %295 = vector.broadcast %cst_68 : f32 to vector<2x32xf32>
    %296 = arith.subf %295, %289 : vector<2x32xf32>
    %297 = arith.mulf %296, %294 : vector<2x32xf32>
    %298 = arith.mulf %289, %256 : vector<2x32xf32>
    %299 = arith.addf %297, %298 : vector<2x32xf32>
    %300 = vector.extract_strided_slice %77 {offsets = [5, 0, 0], sizes = [1, 2, 128], strides = [1, 1, 1]} : vector<16x2x128xf32> to vector<1x2x128xf32>
    %301 = vector.shape_cast %300 : vector<1x2x128xf32> to vector<2x128xf32>
    %cst_69 = arith.constant dense<0.000000e+00> : vector<2x128xf32>
    %302 = tpu.matmul %278, %78, %cst_69 {dimension_numbers = #tpu.dot_dimension_numbers<[1], [0], [0], [1], [0, 0, 1, 1], [], []>} : vector<2x32xf32>, vector<32x128xf32>, vector<2x128xf32> -> vector<2x128xf32>
    %303 = arith.addf %301, %302 : vector<2x128xf32>
    %304 = vector.extract_strided_slice %303 {offsets = [0, 0], sizes = [2, 64], strides = [1, 1]} : vector<2x128xf32> to vector<2x64xf32>
    %305 = arith.negf %304 : vector<2x64xf32>
    %306 = math.exp %305 : vector<2x64xf32>
    %cst_70 = arith.constant 1.000000e+00 : f32
    %307 = vector.broadcast %cst_70 : f32 to vector<2x64xf32>
    %308 = arith.addf %307, %306 : vector<2x64xf32>
    %309 = arith.divf %307, %308 : vector<2x64xf32>
    %310 = vector.extract_strided_slice %309 {offsets = [0, 0], sizes = [2, 32], strides = [1, 1]} : vector<2x64xf32> to vector<2x32xf32>
    %311 = vector.extract_strided_slice %309 {offsets = [0, 32], sizes = [2, 32], strides = [1, 1]} : vector<2x64xf32> to vector<2x32xf32>
    %312 = vector.extract_strided_slice %303 {offsets = [0, 64], sizes = [2, 32], strides = [1, 1]} : vector<2x128xf32> to vector<2x32xf32>
    %313 = vector.extract_strided_slice %303 {offsets = [0, 96], sizes = [2, 32], strides = [1, 1]} : vector<2x128xf32> to vector<2x32xf32>
    %314 = arith.mulf %310, %313 : vector<2x32xf32>
    %315 = arith.addf %312, %314 : vector<2x32xf32>
    %316 = math.tanh %315 : vector<2x32xf32>
    %cst_71 = arith.constant 1.000000e+00 : f32
    %317 = vector.broadcast %cst_71 : f32 to vector<2x32xf32>
    %318 = arith.subf %317, %311 : vector<2x32xf32>
    %319 = arith.mulf %318, %316 : vector<2x32xf32>
    %320 = arith.mulf %311, %278 : vector<2x32xf32>
    %321 = arith.addf %319, %320 : vector<2x32xf32>
    %322 = tpu.concatenate %321, %299 in 1 : vector<2x32xf32>, vector<2x32xf32> -> vector<2x64xf32>
    %cst_72 = arith.constant dense<0.000000e+00> : vector<2x128xf32>
    %323 = tpu.matmul %322, %79, %cst_72 {dimension_numbers = #tpu.dot_dimension_numbers<[1], [0], [0], [1], [0, 0, 1, 1], [], []>} : vector<2x64xf32>, vector<64x128xf32>, vector<2x128xf32> -> vector<2x128xf32>
    %324 = arith.addf %323, %82 : vector<2x128xf32>
    %325 = vector.extract_strided_slice %324 {offsets = [0, 0], sizes = [2, 64], strides = [1, 1]} : vector<2x128xf32> to vector<2x64xf32>
    %326 = arith.negf %325 : vector<2x64xf32>
    %327 = math.exp %326 : vector<2x64xf32>
    %cst_73 = arith.constant 1.000000e+00 : f32
    %328 = vector.broadcast %cst_73 : f32 to vector<2x64xf32>
    %329 = arith.addf %328, %327 : vector<2x64xf32>
    %330 = arith.divf %328, %329 : vector<2x64xf32>
    %331 = vector.extract_strided_slice %330 {offsets = [0, 0], sizes = [2, 32], strides = [1, 1]} : vector<2x64xf32> to vector<2x32xf32>
    %332 = vector.extract_strided_slice %330 {offsets = [0, 32], sizes = [2, 32], strides = [1, 1]} : vector<2x64xf32> to vector<2x32xf32>
    %333 = vector.extract_strided_slice %324 {offsets = [0, 64], sizes = [2, 32], strides = [1, 1]} : vector<2x128xf32> to vector<2x32xf32>
    %334 = vector.extract_strided_slice %324 {offsets = [0, 96], sizes = [2, 32], strides = [1, 1]} : vector<2x128xf32> to vector<2x32xf32>
    %335 = arith.mulf %331, %334 : vector<2x32xf32>
    %336 = arith.addf %333, %335 : vector<2x32xf32>
    %337 = math.tanh %336 : vector<2x32xf32>
    %cst_74 = arith.constant 1.000000e+00 : f32
    %338 = vector.broadcast %cst_74 : f32 to vector<2x32xf32>
    %339 = arith.subf %338, %332 : vector<2x32xf32>
    %340 = arith.mulf %339, %337 : vector<2x32xf32>
    %341 = arith.mulf %332, %299 : vector<2x32xf32>
    %342 = arith.addf %340, %341 : vector<2x32xf32>
    %343 = vector.extract_strided_slice %77 {offsets = [6, 0, 0], sizes = [1, 2, 128], strides = [1, 1, 1]} : vector<16x2x128xf32> to vector<1x2x128xf32>
    %344 = vector.shape_cast %343 : vector<1x2x128xf32> to vector<2x128xf32>
    %cst_75 = arith.constant dense<0.000000e+00> : vector<2x128xf32>
    %345 = tpu.matmul %321, %78, %cst_75 {dimension_numbers = #tpu.dot_dimension_numbers<[1], [0], [0], [1], [0, 0, 1, 1], [], []>} : vector<2x32xf32>, vector<32x128xf32>, vector<2x128xf32> -> vector<2x128xf32>
    %346 = arith.addf %344, %345 : vector<2x128xf32>
    %347 = vector.extract_strided_slice %346 {offsets = [0, 0], sizes = [2, 64], strides = [1, 1]} : vector<2x128xf32> to vector<2x64xf32>
    %348 = arith.negf %347 : vector<2x64xf32>
    %349 = math.exp %348 : vector<2x64xf32>
    %cst_76 = arith.constant 1.000000e+00 : f32
    %350 = vector.broadcast %cst_76 : f32 to vector<2x64xf32>
    %351 = arith.addf %350, %349 : vector<2x64xf32>
    %352 = arith.divf %350, %351 : vector<2x64xf32>
    %353 = vector.extract_strided_slice %352 {offsets = [0, 0], sizes = [2, 32], strides = [1, 1]} : vector<2x64xf32> to vector<2x32xf32>
    %354 = vector.extract_strided_slice %352 {offsets = [0, 32], sizes = [2, 32], strides = [1, 1]} : vector<2x64xf32> to vector<2x32xf32>
    %355 = vector.extract_strided_slice %346 {offsets = [0, 64], sizes = [2, 32], strides = [1, 1]} : vector<2x128xf32> to vector<2x32xf32>
    %356 = vector.extract_strided_slice %346 {offsets = [0, 96], sizes = [2, 32], strides = [1, 1]} : vector<2x128xf32> to vector<2x32xf32>
    %357 = arith.mulf %353, %356 : vector<2x32xf32>
    %358 = arith.addf %355, %357 : vector<2x32xf32>
    %359 = math.tanh %358 : vector<2x32xf32>
    %cst_77 = arith.constant 1.000000e+00 : f32
    %360 = vector.broadcast %cst_77 : f32 to vector<2x32xf32>
    %361 = arith.subf %360, %354 : vector<2x32xf32>
    %362 = arith.mulf %361, %359 : vector<2x32xf32>
    %363 = arith.mulf %354, %321 : vector<2x32xf32>
    %364 = arith.addf %362, %363 : vector<2x32xf32>
    %365 = tpu.concatenate %364, %342 in 1 : vector<2x32xf32>, vector<2x32xf32> -> vector<2x64xf32>
    %cst_78 = arith.constant dense<0.000000e+00> : vector<2x128xf32>
    %366 = tpu.matmul %365, %79, %cst_78 {dimension_numbers = #tpu.dot_dimension_numbers<[1], [0], [0], [1], [0, 0, 1, 1], [], []>} : vector<2x64xf32>, vector<64x128xf32>, vector<2x128xf32> -> vector<2x128xf32>
    %367 = arith.addf %366, %82 : vector<2x128xf32>
    %368 = vector.extract_strided_slice %367 {offsets = [0, 0], sizes = [2, 64], strides = [1, 1]} : vector<2x128xf32> to vector<2x64xf32>
    %369 = arith.negf %368 : vector<2x64xf32>
    %370 = math.exp %369 : vector<2x64xf32>
    %cst_79 = arith.constant 1.000000e+00 : f32
    %371 = vector.broadcast %cst_79 : f32 to vector<2x64xf32>
    %372 = arith.addf %371, %370 : vector<2x64xf32>
    %373 = arith.divf %371, %372 : vector<2x64xf32>
    %374 = vector.extract_strided_slice %373 {offsets = [0, 0], sizes = [2, 32], strides = [1, 1]} : vector<2x64xf32> to vector<2x32xf32>
    %375 = vector.extract_strided_slice %373 {offsets = [0, 32], sizes = [2, 32], strides = [1, 1]} : vector<2x64xf32> to vector<2x32xf32>
    %376 = vector.extract_strided_slice %367 {offsets = [0, 64], sizes = [2, 32], strides = [1, 1]} : vector<2x128xf32> to vector<2x32xf32>
    %377 = vector.extract_strided_slice %367 {offsets = [0, 96], sizes = [2, 32], strides = [1, 1]} : vector<2x128xf32> to vector<2x32xf32>
    %378 = arith.mulf %374, %377 : vector<2x32xf32>
    %379 = arith.addf %376, %378 : vector<2x32xf32>
    %380 = math.tanh %379 : vector<2x32xf32>
    %cst_80 = arith.constant 1.000000e+00 : f32
    %381 = vector.broadcast %cst_80 : f32 to vector<2x32xf32>
    %382 = arith.subf %381, %375 : vector<2x32xf32>
    %383 = arith.mulf %382, %380 : vector<2x32xf32>
    %384 = arith.mulf %375, %342 : vector<2x32xf32>
    %385 = arith.addf %383, %384 : vector<2x32xf32>
    %386 = vector.extract_strided_slice %77 {offsets = [7, 0, 0], sizes = [1, 2, 128], strides = [1, 1, 1]} : vector<16x2x128xf32> to vector<1x2x128xf32>
    %387 = vector.shape_cast %386 : vector<1x2x128xf32> to vector<2x128xf32>
    %cst_81 = arith.constant dense<0.000000e+00> : vector<2x128xf32>
    %388 = tpu.matmul %364, %78, %cst_81 {dimension_numbers = #tpu.dot_dimension_numbers<[1], [0], [0], [1], [0, 0, 1, 1], [], []>} : vector<2x32xf32>, vector<32x128xf32>, vector<2x128xf32> -> vector<2x128xf32>
    %389 = arith.addf %387, %388 : vector<2x128xf32>
    %390 = vector.extract_strided_slice %389 {offsets = [0, 0], sizes = [2, 64], strides = [1, 1]} : vector<2x128xf32> to vector<2x64xf32>
    %391 = arith.negf %390 : vector<2x64xf32>
    %392 = math.exp %391 : vector<2x64xf32>
    %cst_82 = arith.constant 1.000000e+00 : f32
    %393 = vector.broadcast %cst_82 : f32 to vector<2x64xf32>
    %394 = arith.addf %393, %392 : vector<2x64xf32>
    %395 = arith.divf %393, %394 : vector<2x64xf32>
    %396 = vector.extract_strided_slice %395 {offsets = [0, 0], sizes = [2, 32], strides = [1, 1]} : vector<2x64xf32> to vector<2x32xf32>
    %397 = vector.extract_strided_slice %395 {offsets = [0, 32], sizes = [2, 32], strides = [1, 1]} : vector<2x64xf32> to vector<2x32xf32>
    %398 = vector.extract_strided_slice %389 {offsets = [0, 64], sizes = [2, 32], strides = [1, 1]} : vector<2x128xf32> to vector<2x32xf32>
    %399 = vector.extract_strided_slice %389 {offsets = [0, 96], sizes = [2, 32], strides = [1, 1]} : vector<2x128xf32> to vector<2x32xf32>
    %400 = arith.mulf %396, %399 : vector<2x32xf32>
    %401 = arith.addf %398, %400 : vector<2x32xf32>
    %402 = math.tanh %401 : vector<2x32xf32>
    %cst_83 = arith.constant 1.000000e+00 : f32
    %403 = vector.broadcast %cst_83 : f32 to vector<2x32xf32>
    %404 = arith.subf %403, %397 : vector<2x32xf32>
    %405 = arith.mulf %404, %402 : vector<2x32xf32>
    %406 = arith.mulf %397, %364 : vector<2x32xf32>
    %407 = arith.addf %405, %406 : vector<2x32xf32>
    %408 = tpu.concatenate %407, %385 in 1 : vector<2x32xf32>, vector<2x32xf32> -> vector<2x64xf32>
    %cst_84 = arith.constant dense<0.000000e+00> : vector<2x128xf32>
    %409 = tpu.matmul %408, %79, %cst_84 {dimension_numbers = #tpu.dot_dimension_numbers<[1], [0], [0], [1], [0, 0, 1, 1], [], []>} : vector<2x64xf32>, vector<64x128xf32>, vector<2x128xf32> -> vector<2x128xf32>
    %410 = arith.addf %409, %82 : vector<2x128xf32>
    %411 = vector.extract_strided_slice %410 {offsets = [0, 0], sizes = [2, 64], strides = [1, 1]} : vector<2x128xf32> to vector<2x64xf32>
    %412 = arith.negf %411 : vector<2x64xf32>
    %413 = math.exp %412 : vector<2x64xf32>
    %cst_85 = arith.constant 1.000000e+00 : f32
    %414 = vector.broadcast %cst_85 : f32 to vector<2x64xf32>
    %415 = arith.addf %414, %413 : vector<2x64xf32>
    %416 = arith.divf %414, %415 : vector<2x64xf32>
    %417 = vector.extract_strided_slice %416 {offsets = [0, 0], sizes = [2, 32], strides = [1, 1]} : vector<2x64xf32> to vector<2x32xf32>
    %418 = vector.extract_strided_slice %416 {offsets = [0, 32], sizes = [2, 32], strides = [1, 1]} : vector<2x64xf32> to vector<2x32xf32>
    %419 = vector.extract_strided_slice %410 {offsets = [0, 64], sizes = [2, 32], strides = [1, 1]} : vector<2x128xf32> to vector<2x32xf32>
    %420 = vector.extract_strided_slice %410 {offsets = [0, 96], sizes = [2, 32], strides = [1, 1]} : vector<2x128xf32> to vector<2x32xf32>
    %421 = arith.mulf %417, %420 : vector<2x32xf32>
    %422 = arith.addf %419, %421 : vector<2x32xf32>
    %423 = math.tanh %422 : vector<2x32xf32>
    %cst_86 = arith.constant 1.000000e+00 : f32
    %424 = vector.broadcast %cst_86 : f32 to vector<2x32xf32>
    %425 = arith.subf %424, %418 : vector<2x32xf32>
    %426 = arith.mulf %425, %423 : vector<2x32xf32>
    %427 = arith.mulf %418, %385 : vector<2x32xf32>
    %428 = arith.addf %426, %427 : vector<2x32xf32>
    %429 = vector.extract_strided_slice %77 {offsets = [8, 0, 0], sizes = [1, 2, 128], strides = [1, 1, 1]} : vector<16x2x128xf32> to vector<1x2x128xf32>
    %430 = vector.shape_cast %429 : vector<1x2x128xf32> to vector<2x128xf32>
    %cst_87 = arith.constant dense<0.000000e+00> : vector<2x128xf32>
    %431 = tpu.matmul %407, %78, %cst_87 {dimension_numbers = #tpu.dot_dimension_numbers<[1], [0], [0], [1], [0, 0, 1, 1], [], []>} : vector<2x32xf32>, vector<32x128xf32>, vector<2x128xf32> -> vector<2x128xf32>
    %432 = arith.addf %430, %431 : vector<2x128xf32>
    %433 = vector.extract_strided_slice %432 {offsets = [0, 0], sizes = [2, 64], strides = [1, 1]} : vector<2x128xf32> to vector<2x64xf32>
    %434 = arith.negf %433 : vector<2x64xf32>
    %435 = math.exp %434 : vector<2x64xf32>
    %cst_88 = arith.constant 1.000000e+00 : f32
    %436 = vector.broadcast %cst_88 : f32 to vector<2x64xf32>
    %437 = arith.addf %436, %435 : vector<2x64xf32>
    %438 = arith.divf %436, %437 : vector<2x64xf32>
    %439 = vector.extract_strided_slice %438 {offsets = [0, 0], sizes = [2, 32], strides = [1, 1]} : vector<2x64xf32> to vector<2x32xf32>
    %440 = vector.extract_strided_slice %438 {offsets = [0, 32], sizes = [2, 32], strides = [1, 1]} : vector<2x64xf32> to vector<2x32xf32>
    %441 = vector.extract_strided_slice %432 {offsets = [0, 64], sizes = [2, 32], strides = [1, 1]} : vector<2x128xf32> to vector<2x32xf32>
    %442 = vector.extract_strided_slice %432 {offsets = [0, 96], sizes = [2, 32], strides = [1, 1]} : vector<2x128xf32> to vector<2x32xf32>
    %443 = arith.mulf %439, %442 : vector<2x32xf32>
    %444 = arith.addf %441, %443 : vector<2x32xf32>
    %445 = math.tanh %444 : vector<2x32xf32>
    %cst_89 = arith.constant 1.000000e+00 : f32
    %446 = vector.broadcast %cst_89 : f32 to vector<2x32xf32>
    %447 = arith.subf %446, %440 : vector<2x32xf32>
    %448 = arith.mulf %447, %445 : vector<2x32xf32>
    %449 = arith.mulf %440, %407 : vector<2x32xf32>
    %450 = arith.addf %448, %449 : vector<2x32xf32>
    %451 = tpu.concatenate %450, %428 in 1 : vector<2x32xf32>, vector<2x32xf32> -> vector<2x64xf32>
    %cst_90 = arith.constant dense<0.000000e+00> : vector<2x128xf32>
    %452 = tpu.matmul %451, %79, %cst_90 {dimension_numbers = #tpu.dot_dimension_numbers<[1], [0], [0], [1], [0, 0, 1, 1], [], []>} : vector<2x64xf32>, vector<64x128xf32>, vector<2x128xf32> -> vector<2x128xf32>
    %453 = arith.addf %452, %82 : vector<2x128xf32>
    %454 = vector.extract_strided_slice %453 {offsets = [0, 0], sizes = [2, 64], strides = [1, 1]} : vector<2x128xf32> to vector<2x64xf32>
    %455 = arith.negf %454 : vector<2x64xf32>
    %456 = math.exp %455 : vector<2x64xf32>
    %cst_91 = arith.constant 1.000000e+00 : f32
    %457 = vector.broadcast %cst_91 : f32 to vector<2x64xf32>
    %458 = arith.addf %457, %456 : vector<2x64xf32>
    %459 = arith.divf %457, %458 : vector<2x64xf32>
    %460 = vector.extract_strided_slice %459 {offsets = [0, 0], sizes = [2, 32], strides = [1, 1]} : vector<2x64xf32> to vector<2x32xf32>
    %461 = vector.extract_strided_slice %459 {offsets = [0, 32], sizes = [2, 32], strides = [1, 1]} : vector<2x64xf32> to vector<2x32xf32>
    %462 = vector.extract_strided_slice %453 {offsets = [0, 64], sizes = [2, 32], strides = [1, 1]} : vector<2x128xf32> to vector<2x32xf32>
    %463 = vector.extract_strided_slice %453 {offsets = [0, 96], sizes = [2, 32], strides = [1, 1]} : vector<2x128xf32> to vector<2x32xf32>
    %464 = arith.mulf %460, %463 : vector<2x32xf32>
    %465 = arith.addf %462, %464 : vector<2x32xf32>
    %466 = math.tanh %465 : vector<2x32xf32>
    %cst_92 = arith.constant 1.000000e+00 : f32
    %467 = vector.broadcast %cst_92 : f32 to vector<2x32xf32>
    %468 = arith.subf %467, %461 : vector<2x32xf32>
    %469 = arith.mulf %468, %466 : vector<2x32xf32>
    %470 = arith.mulf %461, %428 : vector<2x32xf32>
    %471 = arith.addf %469, %470 : vector<2x32xf32>
    %472 = vector.extract_strided_slice %77 {offsets = [9, 0, 0], sizes = [1, 2, 128], strides = [1, 1, 1]} : vector<16x2x128xf32> to vector<1x2x128xf32>
    %473 = vector.shape_cast %472 : vector<1x2x128xf32> to vector<2x128xf32>
    %cst_93 = arith.constant dense<0.000000e+00> : vector<2x128xf32>
    %474 = tpu.matmul %450, %78, %cst_93 {dimension_numbers = #tpu.dot_dimension_numbers<[1], [0], [0], [1], [0, 0, 1, 1], [], []>} : vector<2x32xf32>, vector<32x128xf32>, vector<2x128xf32> -> vector<2x128xf32>
    %475 = arith.addf %473, %474 : vector<2x128xf32>
    %476 = vector.extract_strided_slice %475 {offsets = [0, 0], sizes = [2, 64], strides = [1, 1]} : vector<2x128xf32> to vector<2x64xf32>
    %477 = arith.negf %476 : vector<2x64xf32>
    %478 = math.exp %477 : vector<2x64xf32>
    %cst_94 = arith.constant 1.000000e+00 : f32
    %479 = vector.broadcast %cst_94 : f32 to vector<2x64xf32>
    %480 = arith.addf %479, %478 : vector<2x64xf32>
    %481 = arith.divf %479, %480 : vector<2x64xf32>
    %482 = vector.extract_strided_slice %481 {offsets = [0, 0], sizes = [2, 32], strides = [1, 1]} : vector<2x64xf32> to vector<2x32xf32>
    %483 = vector.extract_strided_slice %481 {offsets = [0, 32], sizes = [2, 32], strides = [1, 1]} : vector<2x64xf32> to vector<2x32xf32>
    %484 = vector.extract_strided_slice %475 {offsets = [0, 64], sizes = [2, 32], strides = [1, 1]} : vector<2x128xf32> to vector<2x32xf32>
    %485 = vector.extract_strided_slice %475 {offsets = [0, 96], sizes = [2, 32], strides = [1, 1]} : vector<2x128xf32> to vector<2x32xf32>
    %486 = arith.mulf %482, %485 : vector<2x32xf32>
    %487 = arith.addf %484, %486 : vector<2x32xf32>
    %488 = math.tanh %487 : vector<2x32xf32>
    %cst_95 = arith.constant 1.000000e+00 : f32
    %489 = vector.broadcast %cst_95 : f32 to vector<2x32xf32>
    %490 = arith.subf %489, %483 : vector<2x32xf32>
    %491 = arith.mulf %490, %488 : vector<2x32xf32>
    %492 = arith.mulf %483, %450 : vector<2x32xf32>
    %493 = arith.addf %491, %492 : vector<2x32xf32>
    %494 = tpu.concatenate %493, %471 in 1 : vector<2x32xf32>, vector<2x32xf32> -> vector<2x64xf32>
    %cst_96 = arith.constant dense<0.000000e+00> : vector<2x128xf32>
    %495 = tpu.matmul %494, %79, %cst_96 {dimension_numbers = #tpu.dot_dimension_numbers<[1], [0], [0], [1], [0, 0, 1, 1], [], []>} : vector<2x64xf32>, vector<64x128xf32>, vector<2x128xf32> -> vector<2x128xf32>
    %496 = arith.addf %495, %82 : vector<2x128xf32>
    %497 = vector.extract_strided_slice %496 {offsets = [0, 0], sizes = [2, 64], strides = [1, 1]} : vector<2x128xf32> to vector<2x64xf32>
    %498 = arith.negf %497 : vector<2x64xf32>
    %499 = math.exp %498 : vector<2x64xf32>
    %cst_97 = arith.constant 1.000000e+00 : f32
    %500 = vector.broadcast %cst_97 : f32 to vector<2x64xf32>
    %501 = arith.addf %500, %499 : vector<2x64xf32>
    %502 = arith.divf %500, %501 : vector<2x64xf32>
    %503 = vector.extract_strided_slice %502 {offsets = [0, 0], sizes = [2, 32], strides = [1, 1]} : vector<2x64xf32> to vector<2x32xf32>
    %504 = vector.extract_strided_slice %502 {offsets = [0, 32], sizes = [2, 32], strides = [1, 1]} : vector<2x64xf32> to vector<2x32xf32>
    %505 = vector.extract_strided_slice %496 {offsets = [0, 64], sizes = [2, 32], strides = [1, 1]} : vector<2x128xf32> to vector<2x32xf32>
    %506 = vector.extract_strided_slice %496 {offsets = [0, 96], sizes = [2, 32], strides = [1, 1]} : vector<2x128xf32> to vector<2x32xf32>
    %507 = arith.mulf %503, %506 : vector<2x32xf32>
    %508 = arith.addf %505, %507 : vector<2x32xf32>
    %509 = math.tanh %508 : vector<2x32xf32>
    %cst_98 = arith.constant 1.000000e+00 : f32
    %510 = vector.broadcast %cst_98 : f32 to vector<2x32xf32>
    %511 = arith.subf %510, %504 : vector<2x32xf32>
    %512 = arith.mulf %511, %509 : vector<2x32xf32>
    %513 = arith.mulf %504, %471 : vector<2x32xf32>
    %514 = arith.addf %512, %513 : vector<2x32xf32>
    %515 = vector.extract_strided_slice %77 {offsets = [10, 0, 0], sizes = [1, 2, 128], strides = [1, 1, 1]} : vector<16x2x128xf32> to vector<1x2x128xf32>
    %516 = vector.shape_cast %515 : vector<1x2x128xf32> to vector<2x128xf32>
    %cst_99 = arith.constant dense<0.000000e+00> : vector<2x128xf32>
    %517 = tpu.matmul %493, %78, %cst_99 {dimension_numbers = #tpu.dot_dimension_numbers<[1], [0], [0], [1], [0, 0, 1, 1], [], []>} : vector<2x32xf32>, vector<32x128xf32>, vector<2x128xf32> -> vector<2x128xf32>
    %518 = arith.addf %516, %517 : vector<2x128xf32>
    %519 = vector.extract_strided_slice %518 {offsets = [0, 0], sizes = [2, 64], strides = [1, 1]} : vector<2x128xf32> to vector<2x64xf32>
    %520 = arith.negf %519 : vector<2x64xf32>
    %521 = math.exp %520 : vector<2x64xf32>
    %cst_100 = arith.constant 1.000000e+00 : f32
    %522 = vector.broadcast %cst_100 : f32 to vector<2x64xf32>
    %523 = arith.addf %522, %521 : vector<2x64xf32>
    %524 = arith.divf %522, %523 : vector<2x64xf32>
    %525 = vector.extract_strided_slice %524 {offsets = [0, 0], sizes = [2, 32], strides = [1, 1]} : vector<2x64xf32> to vector<2x32xf32>
    %526 = vector.extract_strided_slice %524 {offsets = [0, 32], sizes = [2, 32], strides = [1, 1]} : vector<2x64xf32> to vector<2x32xf32>
    %527 = vector.extract_strided_slice %518 {offsets = [0, 64], sizes = [2, 32], strides = [1, 1]} : vector<2x128xf32> to vector<2x32xf32>
    %528 = vector.extract_strided_slice %518 {offsets = [0, 96], sizes = [2, 32], strides = [1, 1]} : vector<2x128xf32> to vector<2x32xf32>
    %529 = arith.mulf %525, %528 : vector<2x32xf32>
    %530 = arith.addf %527, %529 : vector<2x32xf32>
    %531 = math.tanh %530 : vector<2x32xf32>
    %cst_101 = arith.constant 1.000000e+00 : f32
    %532 = vector.broadcast %cst_101 : f32 to vector<2x32xf32>
    %533 = arith.subf %532, %526 : vector<2x32xf32>
    %534 = arith.mulf %533, %531 : vector<2x32xf32>
    %535 = arith.mulf %526, %493 : vector<2x32xf32>
    %536 = arith.addf %534, %535 : vector<2x32xf32>
    %537 = tpu.concatenate %536, %514 in 1 : vector<2x32xf32>, vector<2x32xf32> -> vector<2x64xf32>
    %cst_102 = arith.constant dense<0.000000e+00> : vector<2x128xf32>
    %538 = tpu.matmul %537, %79, %cst_102 {dimension_numbers = #tpu.dot_dimension_numbers<[1], [0], [0], [1], [0, 0, 1, 1], [], []>} : vector<2x64xf32>, vector<64x128xf32>, vector<2x128xf32> -> vector<2x128xf32>
    %539 = arith.addf %538, %82 : vector<2x128xf32>
    %540 = vector.extract_strided_slice %539 {offsets = [0, 0], sizes = [2, 64], strides = [1, 1]} : vector<2x128xf32> to vector<2x64xf32>
    %541 = arith.negf %540 : vector<2x64xf32>
    %542 = math.exp %541 : vector<2x64xf32>
    %cst_103 = arith.constant 1.000000e+00 : f32
    %543 = vector.broadcast %cst_103 : f32 to vector<2x64xf32>
    %544 = arith.addf %543, %542 : vector<2x64xf32>
    %545 = arith.divf %543, %544 : vector<2x64xf32>
    %546 = vector.extract_strided_slice %545 {offsets = [0, 0], sizes = [2, 32], strides = [1, 1]} : vector<2x64xf32> to vector<2x32xf32>
    %547 = vector.extract_strided_slice %545 {offsets = [0, 32], sizes = [2, 32], strides = [1, 1]} : vector<2x64xf32> to vector<2x32xf32>
    %548 = vector.extract_strided_slice %539 {offsets = [0, 64], sizes = [2, 32], strides = [1, 1]} : vector<2x128xf32> to vector<2x32xf32>
    %549 = vector.extract_strided_slice %539 {offsets = [0, 96], sizes = [2, 32], strides = [1, 1]} : vector<2x128xf32> to vector<2x32xf32>
    %550 = arith.mulf %546, %549 : vector<2x32xf32>
    %551 = arith.addf %548, %550 : vector<2x32xf32>
    %552 = math.tanh %551 : vector<2x32xf32>
    %cst_104 = arith.constant 1.000000e+00 : f32
    %553 = vector.broadcast %cst_104 : f32 to vector<2x32xf32>
    %554 = arith.subf %553, %547 : vector<2x32xf32>
    %555 = arith.mulf %554, %552 : vector<2x32xf32>
    %556 = arith.mulf %547, %514 : vector<2x32xf32>
    %557 = arith.addf %555, %556 : vector<2x32xf32>
    %558 = vector.extract_strided_slice %77 {offsets = [11, 0, 0], sizes = [1, 2, 128], strides = [1, 1, 1]} : vector<16x2x128xf32> to vector<1x2x128xf32>
    %559 = vector.shape_cast %558 : vector<1x2x128xf32> to vector<2x128xf32>
    %cst_105 = arith.constant dense<0.000000e+00> : vector<2x128xf32>
    %560 = tpu.matmul %536, %78, %cst_105 {dimension_numbers = #tpu.dot_dimension_numbers<[1], [0], [0], [1], [0, 0, 1, 1], [], []>} : vector<2x32xf32>, vector<32x128xf32>, vector<2x128xf32> -> vector<2x128xf32>
    %561 = arith.addf %559, %560 : vector<2x128xf32>
    %562 = vector.extract_strided_slice %561 {offsets = [0, 0], sizes = [2, 64], strides = [1, 1]} : vector<2x128xf32> to vector<2x64xf32>
    %563 = arith.negf %562 : vector<2x64xf32>
    %564 = math.exp %563 : vector<2x64xf32>
    %cst_106 = arith.constant 1.000000e+00 : f32
    %565 = vector.broadcast %cst_106 : f32 to vector<2x64xf32>
    %566 = arith.addf %565, %564 : vector<2x64xf32>
    %567 = arith.divf %565, %566 : vector<2x64xf32>
    %568 = vector.extract_strided_slice %567 {offsets = [0, 0], sizes = [2, 32], strides = [1, 1]} : vector<2x64xf32> to vector<2x32xf32>
    %569 = vector.extract_strided_slice %567 {offsets = [0, 32], sizes = [2, 32], strides = [1, 1]} : vector<2x64xf32> to vector<2x32xf32>
    %570 = vector.extract_strided_slice %561 {offsets = [0, 64], sizes = [2, 32], strides = [1, 1]} : vector<2x128xf32> to vector<2x32xf32>
    %571 = vector.extract_strided_slice %561 {offsets = [0, 96], sizes = [2, 32], strides = [1, 1]} : vector<2x128xf32> to vector<2x32xf32>
    %572 = arith.mulf %568, %571 : vector<2x32xf32>
    %573 = arith.addf %570, %572 : vector<2x32xf32>
    %574 = math.tanh %573 : vector<2x32xf32>
    %cst_107 = arith.constant 1.000000e+00 : f32
    %575 = vector.broadcast %cst_107 : f32 to vector<2x32xf32>
    %576 = arith.subf %575, %569 : vector<2x32xf32>
    %577 = arith.mulf %576, %574 : vector<2x32xf32>
    %578 = arith.mulf %569, %536 : vector<2x32xf32>
    %579 = arith.addf %577, %578 : vector<2x32xf32>
    %580 = tpu.concatenate %579, %557 in 1 : vector<2x32xf32>, vector<2x32xf32> -> vector<2x64xf32>
    %cst_108 = arith.constant dense<0.000000e+00> : vector<2x128xf32>
    %581 = tpu.matmul %580, %79, %cst_108 {dimension_numbers = #tpu.dot_dimension_numbers<[1], [0], [0], [1], [0, 0, 1, 1], [], []>} : vector<2x64xf32>, vector<64x128xf32>, vector<2x128xf32> -> vector<2x128xf32>
    %582 = arith.addf %581, %82 : vector<2x128xf32>
    %583 = vector.extract_strided_slice %582 {offsets = [0, 0], sizes = [2, 64], strides = [1, 1]} : vector<2x128xf32> to vector<2x64xf32>
    %584 = arith.negf %583 : vector<2x64xf32>
    %585 = math.exp %584 : vector<2x64xf32>
    %cst_109 = arith.constant 1.000000e+00 : f32
    %586 = vector.broadcast %cst_109 : f32 to vector<2x64xf32>
    %587 = arith.addf %586, %585 : vector<2x64xf32>
    %588 = arith.divf %586, %587 : vector<2x64xf32>
    %589 = vector.extract_strided_slice %588 {offsets = [0, 0], sizes = [2, 32], strides = [1, 1]} : vector<2x64xf32> to vector<2x32xf32>
    %590 = vector.extract_strided_slice %588 {offsets = [0, 32], sizes = [2, 32], strides = [1, 1]} : vector<2x64xf32> to vector<2x32xf32>
    %591 = vector.extract_strided_slice %582 {offsets = [0, 64], sizes = [2, 32], strides = [1, 1]} : vector<2x128xf32> to vector<2x32xf32>
    %592 = vector.extract_strided_slice %582 {offsets = [0, 96], sizes = [2, 32], strides = [1, 1]} : vector<2x128xf32> to vector<2x32xf32>
    %593 = arith.mulf %589, %592 : vector<2x32xf32>
    %594 = arith.addf %591, %593 : vector<2x32xf32>
    %595 = math.tanh %594 : vector<2x32xf32>
    %cst_110 = arith.constant 1.000000e+00 : f32
    %596 = vector.broadcast %cst_110 : f32 to vector<2x32xf32>
    %597 = arith.subf %596, %590 : vector<2x32xf32>
    %598 = arith.mulf %597, %595 : vector<2x32xf32>
    %599 = arith.mulf %590, %557 : vector<2x32xf32>
    %600 = arith.addf %598, %599 : vector<2x32xf32>
    %601 = vector.extract_strided_slice %77 {offsets = [12, 0, 0], sizes = [1, 2, 128], strides = [1, 1, 1]} : vector<16x2x128xf32> to vector<1x2x128xf32>
    %602 = vector.shape_cast %601 : vector<1x2x128xf32> to vector<2x128xf32>
    %cst_111 = arith.constant dense<0.000000e+00> : vector<2x128xf32>
    %603 = tpu.matmul %579, %78, %cst_111 {dimension_numbers = #tpu.dot_dimension_numbers<[1], [0], [0], [1], [0, 0, 1, 1], [], []>} : vector<2x32xf32>, vector<32x128xf32>, vector<2x128xf32> -> vector<2x128xf32>
    %604 = arith.addf %602, %603 : vector<2x128xf32>
    %605 = vector.extract_strided_slice %604 {offsets = [0, 0], sizes = [2, 64], strides = [1, 1]} : vector<2x128xf32> to vector<2x64xf32>
    %606 = arith.negf %605 : vector<2x64xf32>
    %607 = math.exp %606 : vector<2x64xf32>
    %cst_112 = arith.constant 1.000000e+00 : f32
    %608 = vector.broadcast %cst_112 : f32 to vector<2x64xf32>
    %609 = arith.addf %608, %607 : vector<2x64xf32>
    %610 = arith.divf %608, %609 : vector<2x64xf32>
    %611 = vector.extract_strided_slice %610 {offsets = [0, 0], sizes = [2, 32], strides = [1, 1]} : vector<2x64xf32> to vector<2x32xf32>
    %612 = vector.extract_strided_slice %610 {offsets = [0, 32], sizes = [2, 32], strides = [1, 1]} : vector<2x64xf32> to vector<2x32xf32>
    %613 = vector.extract_strided_slice %604 {offsets = [0, 64], sizes = [2, 32], strides = [1, 1]} : vector<2x128xf32> to vector<2x32xf32>
    %614 = vector.extract_strided_slice %604 {offsets = [0, 96], sizes = [2, 32], strides = [1, 1]} : vector<2x128xf32> to vector<2x32xf32>
    %615 = arith.mulf %611, %614 : vector<2x32xf32>
    %616 = arith.addf %613, %615 : vector<2x32xf32>
    %617 = math.tanh %616 : vector<2x32xf32>
    %cst_113 = arith.constant 1.000000e+00 : f32
    %618 = vector.broadcast %cst_113 : f32 to vector<2x32xf32>
    %619 = arith.subf %618, %612 : vector<2x32xf32>
    %620 = arith.mulf %619, %617 : vector<2x32xf32>
    %621 = arith.mulf %612, %579 : vector<2x32xf32>
    %622 = arith.addf %620, %621 : vector<2x32xf32>
    %623 = tpu.concatenate %622, %600 in 1 : vector<2x32xf32>, vector<2x32xf32> -> vector<2x64xf32>
    %cst_114 = arith.constant dense<0.000000e+00> : vector<2x128xf32>
    %624 = tpu.matmul %623, %79, %cst_114 {dimension_numbers = #tpu.dot_dimension_numbers<[1], [0], [0], [1], [0, 0, 1, 1], [], []>} : vector<2x64xf32>, vector<64x128xf32>, vector<2x128xf32> -> vector<2x128xf32>
    %625 = arith.addf %624, %82 : vector<2x128xf32>
    %626 = vector.extract_strided_slice %625 {offsets = [0, 0], sizes = [2, 64], strides = [1, 1]} : vector<2x128xf32> to vector<2x64xf32>
    %627 = arith.negf %626 : vector<2x64xf32>
    %628 = math.exp %627 : vector<2x64xf32>
    %cst_115 = arith.constant 1.000000e+00 : f32
    %629 = vector.broadcast %cst_115 : f32 to vector<2x64xf32>
    %630 = arith.addf %629, %628 : vector<2x64xf32>
    %631 = arith.divf %629, %630 : vector<2x64xf32>
    %632 = vector.extract_strided_slice %631 {offsets = [0, 0], sizes = [2, 32], strides = [1, 1]} : vector<2x64xf32> to vector<2x32xf32>
    %633 = vector.extract_strided_slice %631 {offsets = [0, 32], sizes = [2, 32], strides = [1, 1]} : vector<2x64xf32> to vector<2x32xf32>
    %634 = vector.extract_strided_slice %625 {offsets = [0, 64], sizes = [2, 32], strides = [1, 1]} : vector<2x128xf32> to vector<2x32xf32>
    %635 = vector.extract_strided_slice %625 {offsets = [0, 96], sizes = [2, 32], strides = [1, 1]} : vector<2x128xf32> to vector<2x32xf32>
    %636 = arith.mulf %632, %635 : vector<2x32xf32>
    %637 = arith.addf %634, %636 : vector<2x32xf32>
    %638 = math.tanh %637 : vector<2x32xf32>
    %cst_116 = arith.constant 1.000000e+00 : f32
    %639 = vector.broadcast %cst_116 : f32 to vector<2x32xf32>
    %640 = arith.subf %639, %633 : vector<2x32xf32>
    %641 = arith.mulf %640, %638 : vector<2x32xf32>
    %642 = arith.mulf %633, %600 : vector<2x32xf32>
    %643 = arith.addf %641, %642 : vector<2x32xf32>
    %644 = vector.extract_strided_slice %77 {offsets = [13, 0, 0], sizes = [1, 2, 128], strides = [1, 1, 1]} : vector<16x2x128xf32> to vector<1x2x128xf32>
    %645 = vector.shape_cast %644 : vector<1x2x128xf32> to vector<2x128xf32>
    %cst_117 = arith.constant dense<0.000000e+00> : vector<2x128xf32>
    %646 = tpu.matmul %622, %78, %cst_117 {dimension_numbers = #tpu.dot_dimension_numbers<[1], [0], [0], [1], [0, 0, 1, 1], [], []>} : vector<2x32xf32>, vector<32x128xf32>, vector<2x128xf32> -> vector<2x128xf32>
    %647 = arith.addf %645, %646 : vector<2x128xf32>
    %648 = vector.extract_strided_slice %647 {offsets = [0, 0], sizes = [2, 64], strides = [1, 1]} : vector<2x128xf32> to vector<2x64xf32>
    %649 = arith.negf %648 : vector<2x64xf32>
    %650 = math.exp %649 : vector<2x64xf32>
    %cst_118 = arith.constant 1.000000e+00 : f32
    %651 = vector.broadcast %cst_118 : f32 to vector<2x64xf32>
    %652 = arith.addf %651, %650 : vector<2x64xf32>
    %653 = arith.divf %651, %652 : vector<2x64xf32>
    %654 = vector.extract_strided_slice %653 {offsets = [0, 0], sizes = [2, 32], strides = [1, 1]} : vector<2x64xf32> to vector<2x32xf32>
    %655 = vector.extract_strided_slice %653 {offsets = [0, 32], sizes = [2, 32], strides = [1, 1]} : vector<2x64xf32> to vector<2x32xf32>
    %656 = vector.extract_strided_slice %647 {offsets = [0, 64], sizes = [2, 32], strides = [1, 1]} : vector<2x128xf32> to vector<2x32xf32>
    %657 = vector.extract_strided_slice %647 {offsets = [0, 96], sizes = [2, 32], strides = [1, 1]} : vector<2x128xf32> to vector<2x32xf32>
    %658 = arith.mulf %654, %657 : vector<2x32xf32>
    %659 = arith.addf %656, %658 : vector<2x32xf32>
    %660 = math.tanh %659 : vector<2x32xf32>
    %cst_119 = arith.constant 1.000000e+00 : f32
    %661 = vector.broadcast %cst_119 : f32 to vector<2x32xf32>
    %662 = arith.subf %661, %655 : vector<2x32xf32>
    %663 = arith.mulf %662, %660 : vector<2x32xf32>
    %664 = arith.mulf %655, %622 : vector<2x32xf32>
    %665 = arith.addf %663, %664 : vector<2x32xf32>
    %666 = tpu.concatenate %665, %643 in 1 : vector<2x32xf32>, vector<2x32xf32> -> vector<2x64xf32>
    %cst_120 = arith.constant dense<0.000000e+00> : vector<2x128xf32>
    %667 = tpu.matmul %666, %79, %cst_120 {dimension_numbers = #tpu.dot_dimension_numbers<[1], [0], [0], [1], [0, 0, 1, 1], [], []>} : vector<2x64xf32>, vector<64x128xf32>, vector<2x128xf32> -> vector<2x128xf32>
    %668 = arith.addf %667, %82 : vector<2x128xf32>
    %669 = vector.extract_strided_slice %668 {offsets = [0, 0], sizes = [2, 64], strides = [1, 1]} : vector<2x128xf32> to vector<2x64xf32>
    %670 = arith.negf %669 : vector<2x64xf32>
    %671 = math.exp %670 : vector<2x64xf32>
    %cst_121 = arith.constant 1.000000e+00 : f32
    %672 = vector.broadcast %cst_121 : f32 to vector<2x64xf32>
    %673 = arith.addf %672, %671 : vector<2x64xf32>
    %674 = arith.divf %672, %673 : vector<2x64xf32>
    %675 = vector.extract_strided_slice %674 {offsets = [0, 0], sizes = [2, 32], strides = [1, 1]} : vector<2x64xf32> to vector<2x32xf32>
    %676 = vector.extract_strided_slice %674 {offsets = [0, 32], sizes = [2, 32], strides = [1, 1]} : vector<2x64xf32> to vector<2x32xf32>
    %677 = vector.extract_strided_slice %668 {offsets = [0, 64], sizes = [2, 32], strides = [1, 1]} : vector<2x128xf32> to vector<2x32xf32>
    %678 = vector.extract_strided_slice %668 {offsets = [0, 96], sizes = [2, 32], strides = [1, 1]} : vector<2x128xf32> to vector<2x32xf32>
    %679 = arith.mulf %675, %678 : vector<2x32xf32>
    %680 = arith.addf %677, %679 : vector<2x32xf32>
    %681 = math.tanh %680 : vector<2x32xf32>
    %cst_122 = arith.constant 1.000000e+00 : f32
    %682 = vector.broadcast %cst_122 : f32 to vector<2x32xf32>
    %683 = arith.subf %682, %676 : vector<2x32xf32>
    %684 = arith.mulf %683, %681 : vector<2x32xf32>
    %685 = arith.mulf %676, %643 : vector<2x32xf32>
    %686 = arith.addf %684, %685 : vector<2x32xf32>
    %687 = vector.extract_strided_slice %77 {offsets = [14, 0, 0], sizes = [1, 2, 128], strides = [1, 1, 1]} : vector<16x2x128xf32> to vector<1x2x128xf32>
    %688 = vector.shape_cast %687 : vector<1x2x128xf32> to vector<2x128xf32>
    %cst_123 = arith.constant dense<0.000000e+00> : vector<2x128xf32>
    %689 = tpu.matmul %665, %78, %cst_123 {dimension_numbers = #tpu.dot_dimension_numbers<[1], [0], [0], [1], [0, 0, 1, 1], [], []>} : vector<2x32xf32>, vector<32x128xf32>, vector<2x128xf32> -> vector<2x128xf32>
    %690 = arith.addf %688, %689 : vector<2x128xf32>
    %691 = vector.extract_strided_slice %690 {offsets = [0, 0], sizes = [2, 64], strides = [1, 1]} : vector<2x128xf32> to vector<2x64xf32>
    %692 = arith.negf %691 : vector<2x64xf32>
    %693 = math.exp %692 : vector<2x64xf32>
    %cst_124 = arith.constant 1.000000e+00 : f32
    %694 = vector.broadcast %cst_124 : f32 to vector<2x64xf32>
    %695 = arith.addf %694, %693 : vector<2x64xf32>
    %696 = arith.divf %694, %695 : vector<2x64xf32>
    %697 = vector.extract_strided_slice %696 {offsets = [0, 0], sizes = [2, 32], strides = [1, 1]} : vector<2x64xf32> to vector<2x32xf32>
    %698 = vector.extract_strided_slice %696 {offsets = [0, 32], sizes = [2, 32], strides = [1, 1]} : vector<2x64xf32> to vector<2x32xf32>
    %699 = vector.extract_strided_slice %690 {offsets = [0, 64], sizes = [2, 32], strides = [1, 1]} : vector<2x128xf32> to vector<2x32xf32>
    %700 = vector.extract_strided_slice %690 {offsets = [0, 96], sizes = [2, 32], strides = [1, 1]} : vector<2x128xf32> to vector<2x32xf32>
    %701 = arith.mulf %697, %700 : vector<2x32xf32>
    %702 = arith.addf %699, %701 : vector<2x32xf32>
    %703 = math.tanh %702 : vector<2x32xf32>
    %cst_125 = arith.constant 1.000000e+00 : f32
    %704 = vector.broadcast %cst_125 : f32 to vector<2x32xf32>
    %705 = arith.subf %704, %698 : vector<2x32xf32>
    %706 = arith.mulf %705, %703 : vector<2x32xf32>
    %707 = arith.mulf %698, %665 : vector<2x32xf32>
    %708 = arith.addf %706, %707 : vector<2x32xf32>
    %709 = tpu.concatenate %708, %686 in 1 : vector<2x32xf32>, vector<2x32xf32> -> vector<2x64xf32>
    %cst_126 = arith.constant dense<0.000000e+00> : vector<2x128xf32>
    %710 = tpu.matmul %709, %79, %cst_126 {dimension_numbers = #tpu.dot_dimension_numbers<[1], [0], [0], [1], [0, 0, 1, 1], [], []>} : vector<2x64xf32>, vector<64x128xf32>, vector<2x128xf32> -> vector<2x128xf32>
    %711 = arith.addf %710, %82 : vector<2x128xf32>
    %712 = vector.extract_strided_slice %711 {offsets = [0, 0], sizes = [2, 64], strides = [1, 1]} : vector<2x128xf32> to vector<2x64xf32>
    %713 = arith.negf %712 : vector<2x64xf32>
    %714 = math.exp %713 : vector<2x64xf32>
    %cst_127 = arith.constant 1.000000e+00 : f32
    %715 = vector.broadcast %cst_127 : f32 to vector<2x64xf32>
    %716 = arith.addf %715, %714 : vector<2x64xf32>
    %717 = arith.divf %715, %716 : vector<2x64xf32>
    %718 = vector.extract_strided_slice %717 {offsets = [0, 0], sizes = [2, 32], strides = [1, 1]} : vector<2x64xf32> to vector<2x32xf32>
    %719 = vector.extract_strided_slice %717 {offsets = [0, 32], sizes = [2, 32], strides = [1, 1]} : vector<2x64xf32> to vector<2x32xf32>
    %720 = vector.extract_strided_slice %711 {offsets = [0, 64], sizes = [2, 32], strides = [1, 1]} : vector<2x128xf32> to vector<2x32xf32>
    %721 = vector.extract_strided_slice %711 {offsets = [0, 96], sizes = [2, 32], strides = [1, 1]} : vector<2x128xf32> to vector<2x32xf32>
    %722 = arith.mulf %718, %721 : vector<2x32xf32>
    %723 = arith.addf %720, %722 : vector<2x32xf32>
    %724 = math.tanh %723 : vector<2x32xf32>
    %cst_128 = arith.constant 1.000000e+00 : f32
    %725 = vector.broadcast %cst_128 : f32 to vector<2x32xf32>
    %726 = arith.subf %725, %719 : vector<2x32xf32>
    %727 = arith.mulf %726, %724 : vector<2x32xf32>
    %728 = arith.mulf %719, %686 : vector<2x32xf32>
    %729 = arith.addf %727, %728 : vector<2x32xf32>
    %730 = vector.extract_strided_slice %77 {offsets = [15, 0, 0], sizes = [1, 2, 128], strides = [1, 1, 1]} : vector<16x2x128xf32> to vector<1x2x128xf32>
    %731 = vector.shape_cast %730 : vector<1x2x128xf32> to vector<2x128xf32>
    %cst_129 = arith.constant dense<0.000000e+00> : vector<2x128xf32>
    %732 = tpu.matmul %708, %78, %cst_129 {dimension_numbers = #tpu.dot_dimension_numbers<[1], [0], [0], [1], [0, 0, 1, 1], [], []>} : vector<2x32xf32>, vector<32x128xf32>, vector<2x128xf32> -> vector<2x128xf32>
    %733 = arith.addf %731, %732 : vector<2x128xf32>
    %734 = vector.extract_strided_slice %733 {offsets = [0, 0], sizes = [2, 64], strides = [1, 1]} : vector<2x128xf32> to vector<2x64xf32>
    %735 = arith.negf %734 : vector<2x64xf32>
    %736 = math.exp %735 : vector<2x64xf32>
    %cst_130 = arith.constant 1.000000e+00 : f32
    %737 = vector.broadcast %cst_130 : f32 to vector<2x64xf32>
    %738 = arith.addf %737, %736 : vector<2x64xf32>
    %739 = arith.divf %737, %738 : vector<2x64xf32>
    %740 = vector.extract_strided_slice %739 {offsets = [0, 0], sizes = [2, 32], strides = [1, 1]} : vector<2x64xf32> to vector<2x32xf32>
    %741 = vector.extract_strided_slice %739 {offsets = [0, 32], sizes = [2, 32], strides = [1, 1]} : vector<2x64xf32> to vector<2x32xf32>
    %742 = vector.extract_strided_slice %733 {offsets = [0, 64], sizes = [2, 32], strides = [1, 1]} : vector<2x128xf32> to vector<2x32xf32>
    %743 = vector.extract_strided_slice %733 {offsets = [0, 96], sizes = [2, 32], strides = [1, 1]} : vector<2x128xf32> to vector<2x32xf32>
    %744 = arith.mulf %740, %743 : vector<2x32xf32>
    %745 = arith.addf %742, %744 : vector<2x32xf32>
    %746 = math.tanh %745 : vector<2x32xf32>
    %cst_131 = arith.constant 1.000000e+00 : f32
    %747 = vector.broadcast %cst_131 : f32 to vector<2x32xf32>
    %748 = arith.subf %747, %741 : vector<2x32xf32>
    %749 = arith.mulf %748, %746 : vector<2x32xf32>
    %750 = arith.mulf %741, %708 : vector<2x32xf32>
    %751 = arith.addf %749, %750 : vector<2x32xf32>
    %752 = tpu.concatenate %751, %729 in 1 : vector<2x32xf32>, vector<2x32xf32> -> vector<2x64xf32>
    %cst_132 = arith.constant dense<0.000000e+00> : vector<2x128xf32>
    %753 = tpu.matmul %752, %79, %cst_132 {dimension_numbers = #tpu.dot_dimension_numbers<[1], [0], [0], [1], [0, 0, 1, 1], [], []>} : vector<2x64xf32>, vector<64x128xf32>, vector<2x128xf32> -> vector<2x128xf32>
    %754 = arith.addf %753, %82 : vector<2x128xf32>
    %755 = vector.extract_strided_slice %754 {offsets = [0, 0], sizes = [2, 64], strides = [1, 1]} : vector<2x128xf32> to vector<2x64xf32>
    %756 = arith.negf %755 : vector<2x64xf32>
    %757 = math.exp %756 : vector<2x64xf32>
    %cst_133 = arith.constant 1.000000e+00 : f32
    %758 = vector.broadcast %cst_133 : f32 to vector<2x64xf32>
    %759 = arith.addf %758, %757 : vector<2x64xf32>
    %760 = arith.divf %758, %759 : vector<2x64xf32>
    %761 = vector.extract_strided_slice %760 {offsets = [0, 0], sizes = [2, 32], strides = [1, 1]} : vector<2x64xf32> to vector<2x32xf32>
    %762 = vector.extract_strided_slice %760 {offsets = [0, 32], sizes = [2, 32], strides = [1, 1]} : vector<2x64xf32> to vector<2x32xf32>
    %763 = vector.extract_strided_slice %754 {offsets = [0, 64], sizes = [2, 32], strides = [1, 1]} : vector<2x128xf32> to vector<2x32xf32>
    %764 = vector.extract_strided_slice %754 {offsets = [0, 96], sizes = [2, 32], strides = [1, 1]} : vector<2x128xf32> to vector<2x32xf32>
    %765 = arith.mulf %761, %764 : vector<2x32xf32>
    %766 = arith.addf %763, %765 : vector<2x32xf32>
    %767 = math.tanh %766 : vector<2x32xf32>
    %cst_134 = arith.constant 1.000000e+00 : f32
    %768 = vector.broadcast %cst_134 : f32 to vector<2x32xf32>
    %769 = arith.subf %768, %762 : vector<2x32xf32>
    %770 = arith.mulf %769, %767 : vector<2x32xf32>
    %771 = arith.mulf %762, %729 : vector<2x32xf32>
    %772 = arith.addf %770, %771 : vector<2x32xf32>
    %c0_135 = arith.constant 0 : index
    %c0_136 = arith.constant 0 : index
    %773 = vector.load %arg8[%c0_135, %c0_136] : memref<33x1xf32, #tpu.memory_space<vmem>>, vector<32x1xf32>
    %cst_137 = arith.constant dense<0.000000e+00> : vector<2x1xf32>
    %774 = tpu.matmul %772, %773, %cst_137 {dimension_numbers = #tpu.dot_dimension_numbers<[1], [0], [0], [1], [0, 0, 1, 1], [], []>} : vector<2x32xf32>, vector<32x1xf32>, vector<2x1xf32> -> vector<2x1xf32>
    %c32_138 = arith.constant 32 : index
    %c0_139 = arith.constant 0 : index
    %775 = vector.load %arg8[%c32_138, %c0_139] : memref<33x1xf32, #tpu.memory_space<vmem>>, vector<1x1xf32>
    %776 = vector.broadcast %775 : vector<1x1xf32> to vector<2x1xf32>
    %777 = arith.addf %774, %776 : vector<2x1xf32>
    %c0_140 = arith.constant 0 : index
    %c0_141 = arith.constant 0 : index
    %778 = vector.load %arg9[%c0_140, %c0_141] : memref<2x1xf32, #tpu.memory_space<vmem>>, vector<2x1xf32>
    tpu.vector_store %arg9[%c0_140, %c0_141], %777 {strides = array<i32>} : memref<2x1xf32, #tpu.memory_space<vmem>>, vector<2x1xf32>,
    return
  }
}

</mosaic_0001>

<llo_original>
// kernel: rl_hard_share_forward.1
$region0: #{rl_hard_share_forward.1}
  #allocation0 [shape = 'u32[]', space=smem, size = 0x4, offset = 0x4, fixed_abs, tag = 'smem constant byte address 0x4 - core index']
  #allocation1 [shape = 'u32[144,128]{1,0:T(1,128)}', space=vmem, size = 0x12000, scoped, tag = 'internal scratch']
  %s0 = inlined_call_operand.vmem [shape: f32[16,2,4], index: 0, kind: input, shape index: {}]
  %s1 = inlined_call_operand.vmem [shape: f32[12,16], index: 1, kind: input, shape index: {}]
  %s2 = inlined_call_operand.vmem [shape: f32[2,16], index: 2, kind: input, shape index: {}]
  %s3 = inlined_call_operand.vmem [shape: f32[48,32], index: 3, kind: input, shape index: {}]
  %s4 = inlined_call_operand.vmem [shape: f32[2,32], index: 4, kind: input, shape index: {}]
  %s5 = inlined_call_operand.vmem [shape: f32[33,128], index: 5, kind: input, shape index: {}]
  %s6 = inlined_call_operand.vmem [shape: f32[32,128], index: 6, kind: input, shape index: {}]
  %s7 = inlined_call_operand.vmem [shape: f32[65,128], index: 7, kind: input, shape index: {}]
  %s8 = inlined_call_operand.vmem [shape: f32[33,1], index: 8, kind: input, shape index: {}]
  %s9 = inlined_call_operand.vmem [shape: f32[2,1], index: 9, kind: output, shape index: {}]
  %s10 = sld [smem:[#allocation0]]
  $region46: #{rl_hard_share_forward.1} parent=0
    _
  %s12 = ssub.s32 1, %s10
  %s13 = scalar_select 0, %s12, %s10
  // Predicated region
  $region2: #{rl_hard_share_forward.1} parent=0 // pred_check
    _
  $region3: #{rl_hard_share_forward.1} parent=0 // pred_check_branch
    %15 = sbr.rel (0) target = $region5
  $region4: #{rl_hard_share_forward.1} parent=0 // pred_region
    _
  $region5: #{rl_hard_share_forward.1} parent=0 // pred_fallthru
    _
  // Predicated region
  $region6: #{rl_hard_share_forward.1} parent=0 // pred_check
    _
  $region7: #{rl_hard_share_forward.1} parent=0 // pred_check_branch
    %17 = sbr.rel (0) target = $region9
  $region8: #{rl_hard_share_forward.1} parent=0 // pred_region
    _
  $region9: #{rl_hard_share_forward.1} parent=0 // pred_fallthru
    _
  // Predicated region
  $region10: #{rl_hard_share_forward.1} parent=0 // pred_check
    _
  $region11: #{rl_hard_share_forward.1} parent=0 // pred_check_branch
    %19 = sbr.rel (0) target = $region13
  $region12: #{rl_hard_share_forward.1} parent=0 // pred_region
    _
  $region13: #{rl_hard_share_forward.1} parent=0 // pred_fallthru
    _
  // Predicated region
  $region14: #{rl_hard_share_forward.1} parent=0 // pred_check
    _
  $region15: #{rl_hard_share_forward.1} parent=0 // pred_check_branch
    %21 = sbr.rel (0) target = $region17
  $region16: #{rl_hard_share_forward.1} parent=0 // pred_region
    _
  $region17: #{rl_hard_share_forward.1} parent=0 // pred_fallthru
    _
  // Predicated region
  $region18: #{rl_hard_share_forward.1} parent=0 // pred_check
    _
  $region19: #{rl_hard_share_forward.1} parent=0 // pred_check_branch
    %23 = sbr.rel (0) target = $region21
  $region20: #{rl_hard_share_forward.1} parent=0 // pred_region
    _
  $region21: #{rl_hard_share_forward.1} parent=0 // pred_fallthru
    _
  // Predicated region
  $region22: #{rl_hard_share_forward.1} parent=0 // pred_check
    _
  $region23: #{rl_hard_share_forward.1} parent=0 // pred_check_branch
    %25 = sbr.rel (0) target = $region25
  $region24: #{rl_hard_share_forward.1} parent=0 // pred_region
    _
  $region25: #{rl_hard_share_forward.1} parent=0 // pred_fallthru
    _
  // Predicated region
  $region26: #{rl_hard_share_forward.1} parent=0 // pred_check
    _
  $region27: #{rl_hard_share_forward.1} parent=0 // pred_check_branch
    %27 = sbr.rel (0) target = $region29
  $region28: #{rl_hard_share_forward.1} parent=0 // pred_region
    _
  $region29: #{rl_hard_share_forward.1} parent=0 // pred_fallthru
    _
  // Predicated region
  $region30: #{rl_hard_share_forward.1} parent=0 // pred_check
    _
  $region31: #{rl_hard_share_forward.1} parent=0 // pred_check_branch
    %29 = sbr.rel (0) target = $region33
  $region32: #{rl_hard_share_forward.1} parent=0 // pred_region
    _
  $region33: #{rl_hard_share_forward.1} parent=0 // pred_fallthru
    _
  // Predicated region
  $region34: #{rl_hard_share_forward.1} parent=0 // pred_check
    _
  $region35: #{rl_hard_share_forward.1} parent=0 // pred_check_branch
    %31 = sbr.rel (0) target = $region37
  $region36: #{rl_hard_share_forward.1} parent=0 // pred_region
    _
  $region37: #{rl_hard_share_forward.1} parent=0 // pred_fallthru
    _
  %v32 = vld [vmem:[%s0] sm:$0x3]
  %v33 = vld [vmem:[%s0 + $0x2] sm:$0x3]
  %v34 = vld [vmem:[%s0 + $0x4] sm:$0x3]
  %v35 = vld [vmem:[%s0 + $0x6] sm:$0x3]
  %v36 = vld [vmem:[%s0 + $0x8] sm:$0x3]
  %v37 = vld [vmem:[%s0 + $0xa] sm:$0x3]
  %v38 = vld [vmem:[%s0 + $0xc] sm:$0x3]
  %v39 = vld [vmem:[%s0 + $0xe] sm:$0x3]
  %v40 = vld [vmem:[%s0 + $0x10] sm:$0x3]
  %v41 = vld [vmem:[%s0 + $0x12] sm:$0x3]
  %v42 = vld [vmem:[%s0 + $0x14] sm:$0x3]
  %v43 = vld [vmem:[%s0 + $0x16] sm:$0x3]
  %v44 = vld [vmem:[%s0 + $0x18] sm:$0x3]
  %v45 = vld [vmem:[%s0 + $0x1a] sm:$0x3]
  %v46 = vld [vmem:[%s0 + $0x1c] sm:$0x3]
  %v47 = vld [vmem:[%s0 + $0x1e] sm:$0x3]
  %64 = vrot.lane.b32.xlu0 %v32, 4
  %v65 = vpop.permute.xlu0 %64
  %66 = vrot.lane.b32.xlu0 %v33, 4
  %v67 = vpop.permute.xlu0 %66
  %68 = vrot.lane.b32.xlu0 %v34, 4
  %v69 = vpop.permute.xlu0 %68
  %70 = vrot.lane.b32.xlu0 %v35, 4
  %v71 = vpop.permute.xlu0 %70
  %72 = vrot.lane.b32.xlu0 %v36, 4
  %v73 = vpop.permute.xlu0 %72
  %74 = vrot.lane.b32.xlu0 %v37, 4
  %v75 = vpop.permute.xlu0 %74
  %76 = vrot.lane.b32.xlu0 %v38, 4
  %v77 = vpop.permute.xlu0 %76
  %78 = vrot.lane.b32.xlu0 %v39, 4
  %v79 = vpop.permute.xlu0 %78
  %80 = vrot.lane.b32.xlu0 %v40, 4
  %v81 = vpop.permute.xlu0 %80
  %82 = vrot.lane.b32.xlu0 %v41, 4
  %v83 = vpop.permute.xlu0 %82
  %84 = vrot.lane.b32.xlu0 %v42, 4
  %v85 = vpop.permute.xlu0 %84
  %86 = vrot.lane.b32.xlu0 %v43, 4
  %v87 = vpop.permute.xlu0 %86
  %88 = vrot.lane.b32.xlu0 %v44, 4
  %v89 = vpop.permute.xlu0 %88
  %90 = vrot.lane.b32.xlu0 %v45, 4
  %v91 = vpop.permute.xlu0 %90
  %92 = vrot.lane.b32.xlu0 %v46, 4
  %v93 = vpop.permute.xlu0 %92
  %94 = vrot.lane.b32.xlu0 %v47, 4
  %v95 = vpop.permute.xlu0 %94
  %113 = vrot.lane.b32.xlu0 %v33, 8
  %v114 = vpop.permute.xlu0 %113
  %115 = vrot.lane.b32.xlu0 %v34, 8
  %v116 = vpop.permute.xlu0 %115
  %117 = vrot.lane.b32.xlu0 %v35, 8
  %v118 = vpop.permute.xlu0 %117
  %119 = vrot.lane.b32.xlu0 %v36, 8
  %v120 = vpop.permute.xlu0 %119
  %121 = vrot.lane.b32.xlu0 %v37, 8
  %v122 = vpop.permute.xlu0 %121
  %123 = vrot.lane.b32.xlu0 %v38, 8
  %v124 = vpop.permute.xlu0 %123
  %125 = vrot.lane.b32.xlu0 %v39, 8
  %v126 = vpop.permute.xlu0 %125
  %127 = vrot.lane.b32.xlu0 %v40, 8
  %v128 = vpop.permute.xlu0 %127
  %129 = vrot.lane.b32.xlu0 %v41, 8
  %v130 = vpop.permute.xlu0 %129
  %131 = vrot.lane.b32.xlu0 %v42, 8
  %v132 = vpop.permute.xlu0 %131
  %133 = vrot.lane.b32.xlu0 %v43, 8
  %v134 = vpop.permute.xlu0 %133
  %135 = vrot.lane.b32.xlu0 %v44, 8
  %v136 = vpop.permute.xlu0 %135
  %137 = vrot.lane.b32.xlu0 %v45, 8
  %v138 = vpop.permute.xlu0 %137
  %139 = vrot.lane.b32.xlu0 %v46, 8
  %v140 = vpop.permute.xlu0 %139
  %141 = vrot.lane.b32.xlu0 %v47, 8
  %v142 = vpop.permute.xlu0 %141
  %143 = vrot.lane.b32.xlu0 0.0, 8
  %v144 = vpop.permute.xlu0 %143
  %vm161 = vcmask 31744
  %v162 = vsel %vm161, 0.0, %v65
  %v163 = vsel %vm161, %v32, %v67
  %v164 = vsel %vm161, %v33, %v69
  %v165 = vsel %vm161, %v34, %v71
  %v166 = vsel %vm161, %v35, %v73
  %v167 = vsel %vm161, %v36, %v75
  %v168 = vsel %vm161, %v37, %v77
  %v169 = vsel %vm161, %v38, %v79
  %v170 = vsel %vm161, %v39, %v81
  %v171 = vsel %vm161, %v40, %v83
  %v172 = vsel %vm161, %v41, %v85
  %v173 = vsel %vm161, %v42, %v87
  %v174 = vsel %vm161, %v43, %v89
  %v175 = vsel %vm161, %v44, %v91
  %v176 = vsel %vm161, %v45, %v93
  %v177 = vsel %vm161, %v46, %v95
  %vm178 = vcmask 64512
  %v179 = vsel %vm178, %v162, %v114
  %v180 = vsel %vm178, %v163, %v116
  %v181 = vsel %vm178, %v164, %v118
  %v182 = vsel %vm178, %v165, %v120
  %v183 = vsel %vm178, %v166, %v122
  %v184 = vsel %vm178, %v167, %v124
  %v185 = vsel %vm178, %v168, %v126
  %v186 = vsel %vm178, %v169, %v128
  %v187 = vsel %vm178, %v170, %v130
  %v188 = vsel %vm178, %v171, %v132
  %v189 = vsel %vm178, %v172, %v134
  %v190 = vsel %vm178, %v173, %v136
  %v191 = vsel %vm178, %v174, %v138
  %v192 = vsel %vm178, %v175, %v140
  %v193 = vsel %vm178, %v176, %v142
  %v194 = vsel %vm178, %v177, %v144
  %v195 = vld [vmem:[%s1] sm:$0xff]
  %v196 = vld [vmem:[%s1 + $0x8] sm:$0xf]
  %v213 = vcombine.low %v179, %v180
  %v214 = vcombine.low %v181, %v182
  %v216 = vunpack.c.l.s4 1983009808
  %v217 = vunpack.c.0.s8 %v216
  %v218 = vlaneseq
  %v219 = vshrl.u32 %v218, 7
  %v220 = vsub.s32 %v217, %v219
  %v221 = vrot.slane %v213, %v220
  %v223 = vunpack.c.l.s4 1983009808
  %v224 = vunpack.c.0.s8 %v223
  %v225 = vlaneseq
  %v226 = vshrl.u32 %v225, 7
  %v227 = vsub.s32 %v224, %v226
  %v228 = vrot.slane %v214, %v227
  %v229 = vcombine.low %v221, %v228
  %v230 = vcombine.low %v183, %v184
  %v231 = vcombine.low %v185, %v186
  %v233 = vunpack.c.l.s4 1983009808
  %v234 = vunpack.c.0.s8 %v233
  %v235 = vlaneseq
  %v236 = vshrl.u32 %v235, 7
  %v237 = vsub.s32 %v234, %v236
  %v238 = vrot.slane %v230, %v237
  %v240 = vunpack.c.l.s4 1983009808
  %v241 = vunpack.c.0.s8 %v240
  %v242 = vlaneseq
  %v243 = vshrl.u32 %v242, 7
  %v244 = vsub.s32 %v241, %v243
  %v245 = vrot.slane %v231, %v244
  %v246 = vcombine.low %v238, %v245
  %v247 = vcombine.low %v187, %v188
  %v248 = vcombine.low %v189, %v190
  %v250 = vunpack.c.l.s4 1983009808
  %v251 = vunpack.c.0.s8 %v250
  %v252 = vlaneseq
  %v253 = vshrl.u32 %v252, 7
  %v254 = vsub.s32 %v251, %v253
  %v255 = vrot.slane %v247, %v254
  %v257 = vunpack.c.l.s4 1983009808
  %v258 = vunpack.c.0.s8 %v257
  %v259 = vlaneseq
  %v260 = vshrl.u32 %v259, 7
  %v261 = vsub.s32 %v258, %v260
  %v262 = vrot.slane %v248, %v261
  %v263 = vcombine.low %v255, %v262
  %v264 = vcombine.low %v191, %v192
  %v265 = vcombine.low %v193, %v194
  %v267 = vunpack.c.l.s4 1983009808
  %v268 = vunpack.c.0.s8 %v267
  %v269 = vlaneseq
  %v270 = vshrl.u32 %v269, 7
  %v271 = vsub.s32 %v268, %v270
  %v272 = vrot.slane %v264, %v271
  %v274 = vunpack.c.l.s4 1983009808
  %v275 = vunpack.c.0.s8 %v274
  %v276 = vlaneseq
  %v277 = vshrl.u32 %v276, 7
  %v278 = vsub.s32 %v275, %v277
  %v279 = vrot.slane %v265, %v278
  %v280 = vcombine.low %v272, %v279
  %vm281 = vcmask 97280
  %v282 = vsel %vm281, %v229, 0
  %v284 = vsel %vm281, %v246, 0
  %v286 = vsel %vm281, %v263, 0
  %v288 = vsel %vm281, %v280, 0
  %vm290 = vcmask 1043456
  %v292 = vsel %vm290, %v196, 0
  %294 = vmatprep.subr.mxu0 0.0
  %295 = vmatpush1.msra.mxu0 0.0
  %296 = vmatprep.subr.mxu0 0.0
  %297 = vmatpush1.msra.mxu0 0.0
  %298 = vmatprep.subr.mxu0 0.0
  %299 = vmatpush1.msra.mxu0 0.0
  %300 = vmatprep.subr.mxu0 0.0
  %301 = vmatpush1.msra.mxu0 0.0
  %302 = vmatprep.subr.mxu0 0.0
  %303 = vmatpush1.msra.mxu0 0.0
  %304 = vmatprep.subr.mxu0 0.0
  %305 = vmatpush1.msra.mxu0 0.0
  %306 = vmatprep.subr.mxu0 0.0
  %307 = vmatpush1.msra.mxu0 0.0
  %308 = vmatprep.subr.mxu0 0.0
  %309 = vmatpush1.msra.mxu0 0.0
  %310 = vmatprep.subr.mxu0 0.0
  %311 = vmatpush1.msra.mxu0 0.0
  %312 = vmatprep.subr.mxu0 0.0
  %313 = vmatpush1.msra.mxu0 0.0
  %314 = vmatprep.subr.mxu0 0.0
  %315 = vmatpush1.msra.mxu0 0.0
  %316 = vmatprep.subr.mxu0 0.0
  %317 = vmatpush1.msra.mxu0 0.0
  %318 = vmatprep.subr.mxu0 0.0
  %319 = vmatpush1.msra.mxu0 0.0
  %320 = vmatprep.subr.mxu0 0.0
  %321 = vmatpush1.msra.mxu0 0.0
  %322 = vmatprep.subr.mxu0 0.0
  %323 = vmatpush1.msra.mxu0 %v292
  %324 = vmatprep.subr.mxu0 0.0
  %325 = vmatpush1.msra.mxu0 %v195
  %326 = vmatprep.subr.mxu0 0.0
  %327 = vmatpush2.msra.mxu0 0.0
  %328 = vmatprep.subr.mxu0 0.0
  %329 = vmatpush2.msra.mxu0 0.0
  %330 = vmatprep.subr.mxu0 0.0
  %331 = vmatpush2.msra.mxu0 0.0
  %332 = vmatprep.subr.mxu0 0.0
  %333 = vmatpush2.msra.mxu0 0.0
  %334 = vmatprep.subr.mxu0 0.0
  %335 = vmatpush2.msra.mxu0 0.0
  %336 = vmatprep.subr.mxu0 0.0
  %337 = vmatpush2.msra.mxu0 0.0
  %338 = vmatprep.subr.mxu0 0.0
  %339 = vmatpush2.msra.mxu0 0.0
  %340 = vmatprep.subr.mxu0 0.0
  %341 = vmatpush2.msra.mxu0 0.0
  %342 = vmatprep.subr.mxu0 0.0
  %343 = vmatpush2.msra.mxu0 0.0
  %344 = vmatprep.subr.mxu0 0.0
  %345 = vmatpush2.msra.mxu0 0.0
  %346 = vmatprep.subr.mxu0 0.0
  %347 = vmatpush2.msra.mxu0 0.0
  %348 = vmatprep.subr.mxu0 0.0
  %349 = vmatpush2.msra.mxu0 0.0
  %350 = vmatprep.subr.mxu0 0.0
  %351 = vmatpush2.msra.mxu0 0.0
  %352 = vmatprep.subr.mxu0 0.0
  %353 = vmatpush2.msra.mxu0 0.0
  %354 = vmatprep.subr.mxu0 0.0
  %355 = vmatpush2.msra.mxu0 0.0
  %356 = vmatprep.subr.mxu0 0.0
  %357 = vmatpush2.msra.mxu0 0.0
  %358 = vmatprep.mubr.f32.mxu0 0.0
  %359 = vmatmul.mubr.f32.gmra.mxu0 %v282
  %v360 = vpop.f32.mrf.mxu0
  %v361 = vadd.f32 0.0, %v360
  %v362 = vpop.f32.mrf.mxu0
  %363 = vmatprep.mubr.f32.mxu0 0.0
  %364 = vmatmul.mubr.f32.gmra.mxu0 %v284
  %v365 = vpop.f32.mrf.mxu0
  %v366 = vadd.f32 0.0, %v365
  %v367 = vpop.f32.mrf.mxu0
  %368 = vmatprep.mubr.f32.mxu0 0.0
  %369 = vmatmul.mubr.f32.gmra.mxu0 %v286
  %v370 = vpop.f32.mrf.mxu0
  %v371 = vadd.f32 0.0, %v370
  %v372 = vpop.f32.mrf.mxu0
  %373 = vmatprep.mubr.f32.mxu0 0.0
  %374 = vmatmul.mubr.f32.gmra.mxu0 %v288
  %v375 = vpop.f32.mrf.mxu0
  %v376 = vadd.f32 0.0, %v375
  %v377 = vpop.f32.mrf.mxu0
  %378 = vdwg.mxu0
  %vm379 = vcmask 130048
  %v380 = vsel %vm379, %v361, 0.0
  %v381 = vsel %vm379, %v366, 0.0
  %v382 = vadd.f32 %v380, %v381
  %v383 = vsel %vm379, %v371, 0.0
  %v384 = vadd.f32 %v382, %v383
  %v385 = vsel %vm379, %v376, 0.0
  %v386 = vadd.f32 %v384, %v385
  %v387 = vrot.slane %v386, 4
  %v388 = vadd.f32 %v386, %v387
  %v389 = vrot.slane %v388, 2
  %v390 = vadd.f32 %v388, %v389
  %v391 = vrot.slane %v390, 1
  %v392 = vadd.f32 %v390, %v391
  %v393 = vrcp.pop 32.0
  %v394 = vmul.f32 %v392, %v393
  %v395 = vmul.f32 %v361, %v361
  %v396 = vmul.f32 %v366, %v366
  %v397 = vmul.f32 %v371, %v371
  %v398 = vmul.f32 %v376, %v376
  %v399 = vsel %vm379, %v395, 0.0
  %v400 = vsel %vm379, %v396, 0.0
  %v401 = vadd.f32 %v399, %v400
  %v402 = vsel %vm379, %v397, 0.0
  %v403 = vadd.f32 %v401, %v402
  %v404 = vsel %vm379, %v398, 0.0
  %v405 = vadd.f32 %v403, %v404
  %v406 = vrot.slane %v405, 4
  %v407 = vadd.f32 %v405, %v406
  %v408 = vrot.slane %v407, 2
  %v409 = vadd.f32 %v407, %v408
  %v410 = vrot.slane %v409, 1
  %v411 = vadd.f32 %v409, %v410
  %v412 = vmul.f32 %v411, %v393
  %v413 = vmul.f32 %v394, %v394
  %v414 = vsub.f32 %v412, %v413
  %v415 = vld [vmem:[%s2] sm:$0x1]
  %v416 = vadd.f32 %v414, 1e-05
  %v417 = vrsqrt.pop %v416
  %v418 = vmul.f32 %v415, %v417
  %v419 = vld [vmem:[%s2 + $0x1] sm:$0x1]
  %v420 = vmul.f32 %v394, %v418
  %v421 = vsub.f32 %v419, %v420
  %v422 = vlaneseq
  %v423 = vshrl.u32 %v422, 7
  %v424 = vsub.s32 0, %v423
  %v425 = vrot.slane %v418, %v424
  %v426 = vmul.f32 %v361, %v425
  %v427 = vmul.f32 %v366, %v425
  %v428 = vmul.f32 %v371, %v425
  %v429 = vmul.f32 %v376, %v425
  %v430 = vlaneseq
  %v431 = vshrl.u32 %v430, 7
  %v432 = vsub.s32 0, %v431
  %v433 = vrot.slane %v421, %v432
  %v434 = vadd.f32 %v426, %v433
  %v435 = vadd.f32 %v427, %v433
  %v436 = vadd.f32 %v428, %v433
  %v437 = vadd.f32 %v429, %v433
  %v438 = vmax.f32 %v434, 0.0
  %v439 = vmax.f32 %v435, 0.0
  %v440 = vmax.f32 %v436, 0.0
  %v441 = vmax.f32 %v437, 0.0
  %v446 = vcombine.high %v438, %v438
  %v448 = vunpack.c.l.s4 1983009808
  %v449 = vunpack.c.0.s8 %v448
  %v450 = vlaneseq
  %v451 = vshrl.u32 %v450, 7
  %v452 = vsub.s32 %v449, %v451
  %v453 = vrot.slane %v438, %v452
  %v455 = vunpack.c.l.s4 1983009808
  %v456 = vunpack.c.0.s8 %v455
  %v457 = vlaneseq
  %v458 = vshrl.u32 %v457, 7
  %v459 = vsub.s32 %v456, %v458
  %v460 = vrot.slane %v446, %v459
  %v461 = vcombine.high %v453, %v453
  %v462 = vcombine.high %v460, %v460
  %v463 = vcombine.high %v439, %v439
  %v465 = vunpack.c.l.s4 1983009808
  %v466 = vunpack.c.0.s8 %v465
  %v467 = vlaneseq
  %v468 = vshrl.u32 %v467, 7
  %v469 = vsub.s32 %v466, %v468
  %v470 = vrot.slane %v439, %v469
  %v472 = vunpack.c.l.s4 1983009808
  %v473 = vunpack.c.0.s8 %v472
  %v474 = vlaneseq
  %v475 = vshrl.u32 %v474, 7
  %v476 = vsub.s32 %v473, %v475
  %v477 = vrot.slane %v463, %v476
  %v478 = vcombine.high %v470, %v470
  %v479 = vcombine.high %v477, %v477
  %v480 = vcombine.high %v440, %v440
  %v482 = vunpack.c.l.s4 1983009808
  %v483 = vunpack.c.0.s8 %v482
  %v484 = vlaneseq
  %v485 = vshrl.u32 %v484, 7
  %v486 = vsub.s32 %v483, %v485
  %v487 = vrot.slane %v440, %v486
  %v489 = vunpack.c.l.s4 1983009808
  %v490 = vunpack.c.0.s8 %v489
  %v491 = vlaneseq
  %v492 = vshrl.u32 %v491, 7
  %v493 = vsub.s32 %v490, %v492
  %v494 = vrot.slane %v480, %v493
  %v495 = vcombine.high %v487, %v487
  %v496 = vcombine.high %v494, %v494
  %v497 = vcombine.high %v441, %v441
  %v499 = vunpack.c.l.s4 1983009808
  %v500 = vunpack.c.0.s8 %v499
  %v501 = vlaneseq
  %v502 = vshrl.u32 %v501, 7
  %v503 = vsub.s32 %v500, %v502
  %v504 = vrot.slane %v441, %v503
  %v506 = vunpack.c.l.s4 1983009808
  %v507 = vunpack.c.0.s8 %v506
  %v508 = vlaneseq
  %v509 = vshrl.u32 %v508, 7
  %v510 = vsub.s32 %v507, %v509
  %v511 = vrot.slane %v497, %v510
  %v512 = vcombine.high %v504, %v504
  %v513 = vcombine.high %v511, %v511
  %529 = vrot.lane.b32.xlu0 %v453, 16
  %v530 = vpop.permute.xlu0 %529
  %531 = vrot.lane.b32.xlu0 %v461, 16
  %v532 = vpop.permute.xlu0 %531
  %533 = vrot.lane.b32.xlu0 %v460, 16
  %v534 = vpop.permute.xlu0 %533
  %535 = vrot.lane.b32.xlu0 %v462, 16
  %v536 = vpop.permute.xlu0 %535
  %537 = vrot.lane.b32.xlu0 %v470, 16
  %v538 = vpop.permute.xlu0 %537
  %539 = vrot.lane.b32.xlu0 %v478, 16
  %v540 = vpop.permute.xlu0 %539
  %541 = vrot.lane.b32.xlu0 %v477, 16
  %v542 = vpop.permute.xlu0 %541
  %543 = vrot.lane.b32.xlu0 %v479, 16
  %v544 = vpop.permute.xlu0 %543
  %545 = vrot.lane.b32.xlu0 %v487, 16
  %v546 = vpop.permute.xlu0 %545
  %547 = vrot.lane.b32.xlu0 %v495, 16
  %v548 = vpop.permute.xlu0 %547
  %549 = vrot.lane.b32.xlu0 %v494, 16
  %v550 = vpop.permute.xlu0 %549
  %551 = vrot.lane.b32.xlu0 %v496, 16
  %v552 = vpop.permute.xlu0 %551
  %553 = vrot.lane.b32.xlu0 %v504, 16
  %v554 = vpop.permute.xlu0 %553
  %555 = vrot.lane.b32.xlu0 %v512, 16
  %v556 = vpop.permute.xlu0 %555
  %557 = vrot.lane.b32.xlu0 %v511, 16
  %v558 = vpop.permute.xlu0 %557
  %559 = vrot.lane.b32.xlu0 %v513, 16
  %v560 = vpop.permute.xlu0 %559
  %577 = vrot.lane.b32.xlu0 %v461, 32
  %v578 = vpop.permute.xlu0 %577
  %579 = vrot.lane.b32.xlu0 %v460, 32
  %v580 = vpop.permute.xlu0 %579
  %581 = vrot.lane.b32.xlu0 %v462, 32
  %v582 = vpop.permute.xlu0 %581
  %583 = vrot.lane.b32.xlu0 %v470, 32
  %v584 = vpop.permute.xlu0 %583
  %585 = vrot.lane.b32.xlu0 %v478, 32
  %v586 = vpop.permute.xlu0 %585
  %587 = vrot.lane.b32.xlu0 %v477, 32
  %v588 = vpop.permute.xlu0 %587
  %589 = vrot.lane.b32.xlu0 %v479, 32
  %v590 = vpop.permute.xlu0 %589
  %591 = vrot.lane.b32.xlu0 %v487, 32
  %v592 = vpop.permute.xlu0 %591
  %593 = vrot.lane.b32.xlu0 %v495, 32
  %v594 = vpop.permute.xlu0 %593
  %595 = vrot.lane.b32.xlu0 %v494, 32
  %v596 = vpop.permute.xlu0 %595
  %597 = vrot.lane.b32.xlu0 %v496, 32
  %v598 = vpop.permute.xlu0 %597
  %599 = vrot.lane.b32.xlu0 %v504, 32
  %v600 = vpop.permute.xlu0 %599
  %601 = vrot.lane.b32.xlu0 %v512, 32
  %v602 = vpop.permute.xlu0 %601
  %603 = vrot.lane.b32.xlu0 %v511, 32
  %v604 = vpop.permute.xlu0 %603
  %605 = vrot.lane.b32.xlu0 %v513, 32
  %v606 = vpop.permute.xlu0 %605
  %607 = vrot.lane.b32.xlu0 0.0, 32
  %v608 = vpop.permute.xlu0 %607
  %v625 = vsel %vm379, 0.0, %v530
  %v626 = vsel %vm379, %v453, %v532
  %v627 = vsel %vm379, %v461, %v534
  %v628 = vsel %vm379, %v460, %v536
  %v629 = vsel %vm379, %v462, %v538
  %v630 = vsel %vm379, %v470, %v540
  %v631 = vsel %vm379, %v478, %v542
  %v632 = vsel %vm379, %v477, %v544
  %v633 = vsel %vm379, %v479, %v546
  %v634 = vsel %vm379, %v487, %v548
  %v635 = vsel %vm379, %v495, %v550
  %v636 = vsel %vm379, %v494, %v552
  %v637 = vsel %vm379, %v496, %v554
  %v638 = vsel %vm379, %v504, %v556
  %v639 = vsel %vm379, %v512, %v558
  %v640 = vsel %vm379, %v511, %v560
  %vm641 = vcmask 261120
  %v642 = vsel %vm641, %v625, %v578
  %v643 = vsel %vm641, %v626, %v580
  %v644 = vsel %vm641, %v627, %v582
  %v645 = vsel %vm641, %v628, %v584
  %v646 = vsel %vm641, %v629, %v586
  %v647 = vsel %vm641, %v630, %v588
  %v648 = vsel %vm641, %v631, %v590
  %v649 = vsel %vm641, %v632, %v592
  %v650 = vsel %vm641, %v633, %v594
  %v651 = vsel %vm641, %v634, %v596
  %v652 = vsel %vm641, %v635, %v598
  %v653 = vsel %vm641, %v636, %v600
  %v654 = vsel %vm641, %v637, %v602
  %v655 = vsel %vm641, %v638, %v604
  %v656 = vsel %vm641, %v639, %v606
  %v657 = vsel %vm641, %v640, %v608
  %v658 = vld [vmem:[%s3] sm:$0xff]
  %v659 = vld [vmem:[%s3 + $0x8] sm:$0xff]
  %v660 = vld [vmem:[%s3 + $0x10] sm:$0xff]
  %v661 = vld [vmem:[%s3 + $0x18] sm:$0xff]
  %v662 = vld [vmem:[%s3 + $0x20] sm:$0xff]
  %v663 = vld [vmem:[%s3 + $0x28] sm:$0xff]
  %v680 = vcombine.low %v642, %v643
  %v681 = vcombine.low %v644, %v645
  %v683 = vunpack.c.l.s4 1983009808
  %v684 = vunpack.c.0.s8 %v683
  %v685 = vlaneseq
  %v686 = vshrl.u32 %v685, 7
  %v687 = vsub.s32 %v684, %v686
  %v688 = vrot.slane %v680, %v687
  %v690 = vunpack.c.l.s4 1983009808
  %v691 = vunpack.c.0.s8 %v690
  %v692 = vlaneseq
  %v693 = vshrl.u32 %v692, 7
  %v694 = vsub.s32 %v691, %v693
  %v695 = vrot.slane %v681, %v694
  %v696 = vcombine.low %v688, %v695
  %v697 = vcombine.low %v646, %v647
  %v698 = vcombine.low %v648, %v649
  %v700 = vunpack.c.l.s4 1983009808
  %v701 = vunpack.c.0.s8 %v700
  %v702 = vlaneseq
  %v703 = vshrl.u32 %v702, 7
  %v704 = vsub.s32 %v701, %v703
  %v705 = vrot.slane %v697, %v704
  %v707 = vunpack.c.l.s4 1983009808
  %v708 = vunpack.c.0.s8 %v707
  %v709 = vlaneseq
  %v710 = vshrl.u32 %v709, 7
  %v711 = vsub.s32 %v708, %v710
  %v712 = vrot.slane %v698, %v711
  %v713 = vcombine.low %v705, %v712
  %v714 = vcombine.low %v650, %v651
  %v715 = vcombine.low %v652, %v653
  %v717 = vunpack.c.l.s4 1983009808
  %v718 = vunpack.c.0.s8 %v717
  %v719 = vlaneseq
  %v720 = vshrl.u32 %v719, 7
  %v721 = vsub.s32 %v718, %v720
  %v722 = vrot.slane %v714, %v721
  %v724 = vunpack.c.l.s4 1983009808
  %v725 = vunpack.c.0.s8 %v724
  %v726 = vlaneseq
  %v727 = vshrl.u32 %v726, 7
  %v728 = vsub.s32 %v725, %v727
  %v729 = vrot.slane %v715, %v728
  %v730 = vcombine.low %v722, %v729
  %v731 = vcombine.low %v654, %v655
  %v732 = vcombine.low %v656, %v657
  %v734 = vunpack.c.l.s4 1983009808
  %v735 = vunpack.c.0.s8 %v734
  %v736 = vlaneseq
  %v737 = vshrl.u32 %v736, 7
  %v738 = vsub.s32 %v735, %v737
  %v739 = vrot.slane %v731, %v738
  %v741 = vunpack.c.l.s4 1983009808
  %v742 = vunpack.c.0.s8 %v741
  %v743 = vlaneseq
  %v744 = vshrl.u32 %v743, 7
  %v745 = vsub.s32 %v742, %v744
  %v746 = vrot.slane %v732, %v745
  %v747 = vcombine.low %v739, %v746
  %vm748 = vcmask 392192
  %v749 = vsel %vm748, %v696, 0
  %v751 = vsel %vm748, %v713, 0
  %v753 = vsel %vm748, %v730, 0
  %v755 = vsel %vm748, %v747, 0
  %757 = vmatprep.subr.mxu0 0.0
  %758 = vmatpush1.msra.mxu0 0.0
  %759 = vmatprep.subr.mxu0 0.0
  %760 = vmatpush1.msra.mxu0 0.0
  %761 = vmatprep.subr.mxu0 0.0
  %762 = vmatpush1.msra.mxu0 0.0
  %763 = vmatprep.subr.mxu0 0.0
  %764 = vmatpush1.msra.mxu0 0.0
  %765 = vmatprep.subr.mxu0 0.0
  %766 = vmatpush1.msra.mxu0 0.0
  %767 = vmatprep.subr.mxu0 0.0
  %768 = vmatpush1.msra.mxu0 0.0
  %769 = vmatprep.subr.mxu0 0.0
  %770 = vmatpush1.msra.mxu0 0.0
  %771 = vmatprep.subr.mxu0 0.0
  %772 = vmatpush1.msra.mxu0 0.0
  %773 = vmatprep.subr.mxu0 0.0
  %774 = vmatpush1.msra.mxu0 0.0
  %775 = vmatprep.subr.mxu0 0.0
  %776 = vmatpush1.msra.mxu0 0.0
  %777 = vmatprep.subr.mxu0 0.0
  %778 = vmatpush1.msra.mxu0 %v663
  %779 = vmatprep.subr.mxu0 0.0
  %780 = vmatpush1.msra.mxu0 %v662
  %781 = vmatprep.subr.mxu0 0.0
  %782 = vmatpush1.msra.mxu0 %v661
  %783 = vmatprep.subr.mxu0 0.0
  %784 = vmatpush1.msra.mxu0 %v660
  %785 = vmatprep.subr.mxu0 0.0
  %786 = vmatpush1.msra.mxu0 %v659
  %787 = vmatprep.subr.mxu0 0.0
  %788 = vmatpush1.msra.mxu0 %v658
  %789 = vmatprep.subr.mxu0 0.0
  %790 = vmatpush2.msra.mxu0 0.0
  %791 = vmatprep.subr.mxu0 0.0
  %792 = vmatpush2.msra.mxu0 0.0
  %793 = vmatprep.subr.mxu0 0.0
  %794 = vmatpush2.msra.mxu0 0.0
  %795 = vmatprep.subr.mxu0 0.0
  %796 = vmatpush2.msra.mxu0 0.0
  %797 = vmatprep.subr.mxu0 0.0
  %798 = vmatpush2.msra.mxu0 0.0
  %799 = vmatprep.subr.mxu0 0.0
  %800 = vmatpush2.msra.mxu0 0.0
  %801 = vmatprep.subr.mxu0 0.0
  %802 = vmatpush2.msra.mxu0 0.0
  %803 = vmatprep.subr.mxu0 0.0
  %804 = vmatpush2.msra.mxu0 0.0
  %805 = vmatprep.subr.mxu0 0.0
  %806 = vmatpush2.msra.mxu0 0.0
  %807 = vmatprep.subr.mxu0 0.0
  %808 = vmatpush2.msra.mxu0 0.0
  %809 = vmatprep.subr.mxu0 0.0
  %810 = vmatpush2.msra.mxu0 0.0
  %811 = vmatprep.subr.mxu0 0.0
  %812 = vmatpush2.msra.mxu0 0.0
  %813 = vmatprep.subr.mxu0 0.0
  %814 = vmatpush2.msra.mxu0 0.0
  %815 = vmatprep.subr.mxu0 0.0
  %816 = vmatpush2.msra.mxu0 0.0
  %817 = vmatprep.subr.mxu0 0.0
  %818 = vmatpush2.msra.mxu0 0.0
  %819 = vmatprep.subr.mxu0 0.0
  %820 = vmatpush2.msra.mxu0 0.0
  %821 = vmatprep.mubr.f32.mxu0 0.0
  %822 = vmatmul.mubr.f32.gmra.mxu0 %v749
  %v823 = vpop.f32.mrf.mxu0
  %v824 = vadd.f32 0.0, %v823
  %v825 = vpop.f32.mrf.mxu0
  %826 = vmatprep.mubr.f32.mxu0 0.0
  %827 = vmatmul.mubr.f32.gmra.mxu0 %v751
  %v828 = vpop.f32.mrf.mxu0
  %v829 = vadd.f32 0.0, %v828
  %v830 = vpop.f32.mrf.mxu0
  %831 = vmatprep.mubr.f32.mxu0 0.0
  %832 = vmatmul.mubr.f32.gmra.mxu0 %v753
  %v833 = vpop.f32.mrf.mxu0
  %v834 = vadd.f32 0.0, %v833
  %v835 = vpop.f32.mrf.mxu0
  %836 = vmatprep.mubr.f32.mxu0 0.0
  %837 = vmatmul.mubr.f32.gmra.mxu0 %v755
  %v838 = vpop.f32.mrf.mxu0
  %v839 = vadd.f32 0.0, %v838
  %v840 = vpop.f32.mrf.mxu0
  %841 = vdwg.mxu0
  %v842 = vsel %vm641, %v824, 0.0
  %v843 = vsel %vm641, %v829, 0.0
  %v844 = vadd.f32 %v842, %v843
  %v845 = vsel %vm641, %v834, 0.0
  %v846 = vadd.f32 %v844, %v845
  %v847 = vsel %vm641, %v839, 0.0
  %v848 = vadd.f32 %v846, %v847
  %v849 = vrot.slane %v848, 4
  %v850 = vadd.f32 %v848, %v849
  %v851 = vrot.slane %v850, 2
  %v852 = vadd.f32 %v850, %v851
  %v853 = vrot.slane %v852, 1
  %v854 = vadd.f32 %v852, %v853
  %v855 = vmul.f32 %v854, %v393
  %v856 = vmul.f32 %v824, %v824
  %v857 = vmul.f32 %v829, %v829
  %v858 = vmul.f32 %v834, %v834
  %v859 = vmul.f32 %v839, %v839
  %v860 = vsel %vm641, %v856, 0.0
  %v861 = vsel %vm641, %v857, 0.0
  %v862 = vadd.f32 %v860, %v861
  %v863 = vsel %vm641, %v858, 0.0
  %v864 = vadd.f32 %v862, %v863
  %v865 = vsel %vm641, %v859, 0.0
  %v866 = vadd.f32 %v864, %v865
  %v867 = vrot.slane %v866, 4
  %v868 = vadd.f32 %v866, %v867
  %v869 = vrot.slane %v868, 2
  %v870 = vadd.f32 %v868, %v869
  %v871 = vrot.slane %v870, 1
  %v872 = vadd.f32 %v870, %v871
  %v873 = vmul.f32 %v872, %v393
  %v874 = vmul.f32 %v855, %v855
  %v875 = vsub.f32 %v873, %v874
  %v876 = vld [vmem:[%s4] sm:$0x1]
  %v877 = vadd.f32 %v875, 1e-05
  %v878 = vrsqrt.pop %v877
  %v879 = vmul.f32 %v876, %v878
  %v880 = vld [vmem:[%s4 + $0x1] sm:$0x1]
  %v881 = vmul.f32 %v855, %v879
  %v882 = vsub.f32 %v880, %v881
  %v883 = vlaneseq
  %v884 = vshrl.u32 %v883, 7
  %v885 = vsub.s32 0, %v884
  %v886 = vrot.slane %v879, %v885
  %v887 = vmul.f32 %v824, %v886
  %v888 = vmul.f32 %v829, %v886
  %v889 = vmul.f32 %v834, %v886
  %v890 = vmul.f32 %v839, %v886
  %v891 = vlaneseq
  %v892 = vshrl.u32 %v891, 7
  %v893 = vsub.s32 0, %v892
  %v894 = vrot.slane %v882, %v893
  %v895 = vadd.f32 %v887, %v894
  %v896 = vadd.f32 %v888, %v894
  %v897 = vadd.f32 %v889, %v894
  %v898 = vadd.f32 %v890, %v894
  %v899 = vmax.f32 %v895, 0.0
  %v900 = vmax.f32 %v896, 0.0
  %v901 = vmax.f32 %v897, 0.0
  %v902 = vmax.f32 %v898, 0.0
  %v903 = vld [vmem:[%s5] sm:$0xff]
  %v904 = vld [vmem:[%s5 + $0x8] sm:$0xff]
  %v905 = vld [vmem:[%s5 + $0x10] sm:$0xff]
  %v906 = vld [vmem:[%s5 + $0x18] sm:$0xff]
  %v907 = vld [vmem:[%s5 + $0x20] sm:$0x1]
  %v908 = vlaneseq
  %v909 = vshrl.u32 %v908, 7
  %v910 = vsub.s32 0, %v909
  %v911 = vrot.slane %v907, %v910
  %v913 = vsel %vm641, %v899, 0
  %v916 = vsel %vm641, %v900, 0
  %v919 = vsel %vm641, %v901, 0
  %v922 = vsel %vm641, %v902, 0
  %924 = vmatprep.subr.mxu0 0.0
  %925 = vmatpush1.msra.mxu0 0.0
  %926 = vmatprep.subr.mxu0 0.0
  %927 = vmatpush1.msra.mxu0 0.0
  %928 = vmatprep.subr.mxu0 0.0
  %929 = vmatpush1.msra.mxu0 0.0
  %930 = vmatprep.subr.mxu0 0.0
  %931 = vmatpush1.msra.mxu0 0.0
  %932 = vmatprep.subr.mxu0 0.0
  %933 = vmatpush1.msra.mxu0 0.0
  %934 = vmatprep.subr.mxu0 0.0
  %935 = vmatpush1.msra.mxu0 0.0
  %936 = vmatprep.subr.mxu0 0.0
  %937 = vmatpush1.msra.mxu0 0.0
  %938 = vmatprep.subr.mxu0 0.0
  %939 = vmatpush1.msra.mxu0 0.0
  %940 = vmatprep.subr.mxu0 0.0
  %941 = vmatpush1.msra.mxu0 0.0
  %942 = vmatprep.subr.mxu0 0.0
  %943 = vmatpush1.msra.mxu0 0.0
  %944 = vmatprep.subr.mxu0 0.0
  %945 = vmatpush1.msra.mxu0 0.0
  %946 = vmatprep.subr.mxu0 0.0
  %947 = vmatpush1.msra.mxu0 0.0
  %948 = vmatprep.subr.mxu0 0.0
  %949 = vmatpush1.msra.mxu0 %v906
  %950 = vmatprep.subr.mxu0 0.0
  %951 = vmatpush1.msra.mxu0 %v905
  %952 = vmatprep.subr.mxu0 0.0
  %953 = vmatpush1.msra.mxu0 %v904
  %954 = vmatprep.subr.mxu0 0.0
  %955 = vmatpush1.msra.mxu0 %v903
  %956 = vmatprep.subr.mxu0 0.0
  %957 = vmatpush2.msra.mxu0 0.0
  %958 = vmatprep.subr.mxu0 0.0
  %959 = vmatpush2.msra.mxu0 0.0
  %960 = vmatprep.subr.mxu0 0.0
  %961 = vmatpush2.msra.mxu0 0.0
  %962 = vmatprep.subr.mxu0 0.0
  %963 = vmatpush2.msra.mxu0 0.0
  %964 = vmatprep.subr.mxu0 0.0
  %965 = vmatpush2.msra.mxu0 0.0
  %966 = vmatprep.subr.mxu0 0.0
  %967 = vmatpush2.msra.mxu0 0.0
  %968 = vmatprep.subr.mxu0 0.0
  %969 = vmatpush2.msra.mxu0 0.0
  %970 = vmatprep.subr.mxu0 0.0
  %971 = vmatpush2.msra.mxu0 0.0
  %972 = vmatprep.subr.mxu0 0.0
  %973 = vmatpush2.msra.mxu0 0.0
  %974 = vmatprep.subr.mxu0 0.0
  %975 = vmatpush2.msra.mxu0 0.0
  %976 = vmatprep.subr.mxu0 0.0
  %977 = vmatpush2.msra.mxu0 0.0
  %978 = vmatprep.subr.mxu0 0.0
  %979 = vmatpush2.msra.mxu0 0.0
  %980 = vmatprep.subr.mxu0 0.0
  %981 = vmatpush2.msra.mxu0 0.0
  %982 = vmatprep.subr.mxu0 0.0
  %983 = vmatpush2.msra.mxu0 0.0
  %984 = vmatprep.subr.mxu0 0.0
  %985 = vmatpush2.msra.mxu0 0.0
  %986 = vmatprep.subr.mxu0 0.0
  %987 = vmatpush2.msra.mxu0 0.0
  %988 = vmatprep.mubr.f32.mxu0 0.0
  %989 = vmatmul.mubr.f32.gmra.mxu0 %v913
  %v990 = vpop.f32.mrf.mxu0
  %v991 = vadd.f32 %v911, %v990
  %v992 = vpop.f32.mrf.mxu0
  %993 = vmatprep.mubr.f32.mxu0 0.0
  %994 = vmatmul.mubr.f32.gmra.mxu0 %v916
  %v995 = vpop.f32.mrf.mxu0
  %v996 = vadd.f32 %v911, %v995
  %v997 = vpop.f32.mrf.mxu0
  %998 = vmatprep.mubr.f32.mxu0 0.0
  %999 = vmatmul.mubr.f32.gmra.mxu0 %v919
  %v1000 = vpop.f32.mrf.mxu0
  %v1001 = vadd.f32 %v911, %v1000
  %v1002 = vpop.f32.mrf.mxu0
  %1003 = vmatprep.mubr.f32.mxu0 0.0
  %1004 = vmatmul.mubr.f32.gmra.mxu0 %v922
  %v1005 = vpop.f32.mrf.mxu0
  %v1006 = vadd.f32 %v911, %v1005
  %v1007 = vpop.f32.mrf.mxu0
  %1008 = vdwg.mxu0
  %v1013 = vcombine.high %v991, %v991
  %v1015 = vunpack.c.l.s4 1983009808
  %v1016 = vunpack.c.0.s8 %v1015
  %v1017 = vlaneseq
  %v1018 = vshrl.u32 %v1017, 7
  %v1019 = vsub.s32 %v1016, %v1018
  %v1020 = vrot.slane %v991, %v1019
  %v1022 = vunpack.c.l.s4 1983009808
  %v1023 = vunpack.c.0.s8 %v1022
  %v1024 = vlaneseq
  %v1025 = vshrl.u32 %v1024, 7
  %v1026 = vsub.s32 %v1023, %v1025
  %v1027 = vrot.slane %v1013, %v1026
  %v1028 = vcombine.high %v1020, %v1020
  %v1029 = vcombine.high %v1027, %v1027
  %v1030 = vcombine.high %v996, %v996
  %v1032 = vunpack.c.l.s4 1983009808
  %v1033 = vunpack.c.0.s8 %v1032
  %v1034 = vlaneseq
  %v1035 = vshrl.u32 %v1034, 7
  %v1036 = vsub.s32 %v1033, %v1035
  %v1037 = vrot.slane %v996, %v1036
  %v1039 = vunpack.c.l.s4 1983009808
  %v1040 = vunpack.c.0.s8 %v1039
  %v1041 = vlaneseq
  %v1042 = vshrl.u32 %v1041, 7
  %v1043 = vsub.s32 %v1040, %v1042
  %v1044 = vrot.slane %v1030, %v1043
  %v1045 = vcombine.high %v1037, %v1037
  %v1046 = vcombine.high %v1044, %v1044
  %v1047 = vcombine.high %v1001, %v1001
  %v1049 = vunpack.c.l.s4 1983009808
  %v1050 = vunpack.c.0.s8 %v1049
  %v1051 = vlaneseq
  %v1052 = vshrl.u32 %v1051, 7
  %v1053 = vsub.s32 %v1050, %v1052
  %v1054 = vrot.slane %v1001, %v1053
  %v1056 = vunpack.c.l.s4 1983009808
  %v1057 = vunpack.c.0.s8 %v1056
  %v1058 = vlaneseq
  %v1059 = vshrl.u32 %v1058, 7
  %v1060 = vsub.s32 %v1057, %v1059
  %v1061 = vrot.slane %v1047, %v1060
  %v1062 = vcombine.high %v1054, %v1054
  %v1063 = vcombine.high %v1061, %v1061
  %v1064 = vcombine.high %v1006, %v1006
  %v1066 = vunpack.c.l.s4 1983009808
  %v1067 = vunpack.c.0.s8 %v1066
  %v1068 = vlaneseq
  %v1069 = vshrl.u32 %v1068, 7
  %v1070 = vsub.s32 %v1067, %v1069
  %v1071 = vrot.slane %v1006, %v1070
  %v1073 = vunpack.c.l.s4 1983009808
  %v1074 = vunpack.c.0.s8 %v1073
  %v1075 = vlaneseq
  %v1076 = vshrl.u32 %v1075, 7
  %v1077 = vsub.s32 %v1074, %v1076
  %v1078 = vrot.slane %v1064, %v1077
  %v1079 = vcombine.high %v1071, %v1071
  %v1080 = vcombine.high %v1078, %v1078
  %v1097 = vld [vmem:[%s6] sm:$0xff]
  %v1098 = vld [vmem:[%s6 + $0x8] sm:$0xff]
  %v1099 = vld [vmem:[%s6 + $0x10] sm:$0xff]
  %v1100 = vld [vmem:[%s6 + $0x18] sm:$0xff]
  %v1101 = vld [vmem:[%s7] sm:$0xff]
  %v1102 = vld [vmem:[%s7 + $0x8] sm:$0xff]
  %v1103 = vld [vmem:[%s7 + $0x10] sm:$0xff]
  %v1104 = vld [vmem:[%s7 + $0x18] sm:$0xff]
  %v1105 = vld [vmem:[%s7 + $0x20] sm:$0xff]
  %v1106 = vld [vmem:[%s7 + $0x28] sm:$0xff]
  %v1107 = vld [vmem:[%s7 + $0x30] sm:$0xff]
  %v1108 = vld [vmem:[%s7 + $0x38] sm:$0xff]
  %v1109 = vld [vmem:[%s7 + $0x40] sm:$0x1]
  %v1110 = vlaneseq
  %v1111 = vshrl.u32 %v1110, 7
  %v1112 = vsub.s32 0, %v1111
  %v1113 = vrot.slane %v1109, %v1112
  %v1114 = vsel %vm641, 0.0, 0
  %1116 = vmatprep.subr.mxu0 0.0
  %1117 = vmatpush1.msra.mxu0 0.0
  %1118 = vmatprep.subr.mxu0 0.0
  %1119 = vmatpush1.msra.mxu0 0.0
  %1120 = vmatprep.subr.mxu0 0.0
  %1121 = vmatpush1.msra.mxu0 0.0
  %1122 = vmatprep.subr.mxu0 0.0
  %1123 = vmatpush1.msra.mxu0 0.0
  %1124 = vmatprep.subr.mxu0 0.0
  %1125 = vmatpush1.msra.mxu0 0.0
  %1126 = vmatprep.subr.mxu0 0.0
  %1127 = vmatpush1.msra.mxu0 0.0
  %1128 = vmatprep.subr.mxu0 0.0
  %1129 = vmatpush1.msra.mxu0 0.0
  %1130 = vmatprep.subr.mxu0 0.0
  %1131 = vmatpush1.msra.mxu0 0.0
  %1132 = vmatprep.subr.mxu0 0.0
  %1133 = vmatpush1.msra.mxu0 0.0
  %1134 = vmatprep.subr.mxu0 0.0
  %1135 = vmatpush1.msra.mxu0 0.0
  %1136 = vmatprep.subr.mxu0 0.0
  %1137 = vmatpush1.msra.mxu0 0.0
  %1138 = vmatprep.subr.mxu0 0.0
  %1139 = vmatpush1.msra.mxu0 0.0
  %1140 = vmatprep.subr.mxu0 0.0
  %1141 = vmatpush1.msra.mxu0 %v1100
  %1142 = vmatprep.subr.mxu0 0.0
  %1143 = vmatpush1.msra.mxu0 %v1099
  %1144 = vmatprep.subr.mxu0 0.0
  %1145 = vmatpush1.msra.mxu0 %v1098
  %1146 = vmatprep.subr.mxu0 0.0
  %1147 = vmatpush1.msra.mxu0 %v1097
  %1148 = vmatprep.subr.mxu0 0.0
  %1149 = vmatpush2.msra.mxu0 0.0
  %1150 = vmatprep.subr.mxu0 0.0
  %1151 = vmatpush2.msra.mxu0 0.0
  %1152 = vmatprep.subr.mxu0 0.0
  %1153 = vmatpush2.msra.mxu0 0.0
  %1154 = vmatprep.subr.mxu0 0.0
  %1155 = vmatpush2.msra.mxu0 0.0
  %1156 = vmatprep.subr.mxu0 0.0
  %1157 = vmatpush2.msra.mxu0 0.0
  %1158 = vmatprep.subr.mxu0 0.0
  %1159 = vmatpush2.msra.mxu0 0.0
  %1160 = vmatprep.subr.mxu0 0.0
  %1161 = vmatpush2.msra.mxu0 0.0
  %1162 = vmatprep.subr.mxu0 0.0
  %1163 = vmatpush2.msra.mxu0 0.0
  %1164 = vmatprep.subr.mxu0 0.0
  %1165 = vmatpush2.msra.mxu0 0.0
  %1166 = vmatprep.subr.mxu0 0.0
  %1167 = vmatpush2.msra.mxu0 0.0
  %1168 = vmatprep.subr.mxu0 0.0
  %1169 = vmatpush2.msra.mxu0 0.0
  %1170 = vmatprep.subr.mxu0 0.0
  %1171 = vmatpush2.msra.mxu0 0.0
  %1172 = vmatprep.subr.mxu0 0.0
  %1173 = vmatpush2.msra.mxu0 0.0
  %1174 = vmatprep.subr.mxu0 0.0
  %1175 = vmatpush2.msra.mxu0 0.0
  %1176 = vmatprep.subr.mxu0 0.0
  %1177 = vmatpush2.msra.mxu0 0.0
  %1178 = vmatprep.subr.mxu0 0.0
  %1179 = vmatpush2.msra.mxu0 0.0
  %1180 = vmatprep.mubr.f32.mxu0 0.0
  %1181 = vmatmul.mubr.f32.gmra.mxu0 %v1114
  %v1182 = vpop.f32.mrf.mxu0
  %v1183 = vadd.f32 0.0, %v1182
  %v1184 = vpop.f32.mrf.mxu0
  %1185 = vdwg.mxu0
  %v1186 = vadd.f32 %v1020, %v1183
  %v1187 = vxor.u32 %v1186, 2147483648
  %v1188 = vmul.f32 %v1187, 1.442695
  %v1189 = vpow.pop %v1188
  %v1190 = vadd.f32 %v1189, 1.0
  %v1191 = vrcp.pop %v1190
  %v1192 = vmul.f32 1.0, %v1191
  %1194 = vrot.lane.b32.xlu0 %v1186, 32
  %v1195 = vpop.permute.xlu0 %1194
  %v1197 = vmul.f32 %v1192, %v1195
  %1199 = vrot.lane.b32.xlu0 %v1197, 64
  %v1200 = vpop.permute.xlu0 %1199
  %v1202 = vadd.f32 %v1186, %v1200
  %v1203 = vtanh.pop %v1202
  %v1204 = vsub.f32 1.0, %v1192
  %1206 = vrot.lane.b32.xlu0 %v1203, 96
  %v1207 = vpop.permute.xlu0 %1206
  %v1209 = vmul.f32 %v1204, %v1207
  %v1210 = vmul.f32 %v1192, 0.0
  %v1211 = vadd.f32 %v1209, %v1210
  %v1214 = vunpack.c.l.s4 1983009808
  %v1215 = vunpack.c.0.s8 %v1214
  %v1216 = vlaneseq
  %v1217 = vshrl.u32 %v1216, 7
  %v1218 = vsub.s32 %v1215, %v1217
  %v1219 = vrot.slane %v1211, %v1218
  %1220 = vrot.lane.b32.xlu0 %v1219, 96
  %v1221 = vpop.permute.xlu0 %1220
  %v1223 = vsel %vm641, %v1221, 0.0
  %vm1224 = vcmask 523264
  %v1226 = vsel %vm1224, %v1223, 0
  %1228 = vmatprep.subr.mxu0 0.0
  %1229 = vmatpush1.msra.mxu0 0.0
  %1230 = vmatprep.subr.mxu0 0.0
  %1231 = vmatpush1.msra.mxu0 0.0
  %1232 = vmatprep.subr.mxu0 0.0
  %1233 = vmatpush1.msra.mxu0 0.0
  %1234 = vmatprep.subr.mxu0 0.0
  %1235 = vmatpush1.msra.mxu0 0.0
  %1236 = vmatprep.subr.mxu0 0.0
  %1237 = vmatpush1.msra.mxu0 0.0
  %1238 = vmatprep.subr.mxu0 0.0
  %1239 = vmatpush1.msra.mxu0 0.0
  %1240 = vmatprep.subr.mxu0 0.0
  %1241 = vmatpush1.msra.mxu0 0.0
  %1242 = vmatprep.subr.mxu0 0.0
  %1243 = vmatpush1.msra.mxu0 0.0
  %1244 = vmatprep.subr.mxu0 0.0
  %1245 = vmatpush1.msra.mxu0 %v1108
  %1246 = vmatprep.subr.mxu0 0.0
  %1247 = vmatpush1.msra.mxu0 %v1107
  %1248 = vmatprep.subr.mxu0 0.0
  %1249 = vmatpush1.msra.mxu0 %v1106
  %1250 = vmatprep.subr.mxu0 0.0
  %1251 = vmatpush1.msra.mxu0 %v1105
  %1252 = vmatprep.subr.mxu0 0.0
  %1253 = vmatpush1.msra.mxu0 %v1104
  %1254 = vmatprep.subr.mxu0 0.0
  %1255 = vmatpush1.msra.mxu0 %v1103
  %1256 = vmatprep.subr.mxu0 0.0
  %1257 = vmatpush1.msra.mxu0 %v1102
  %1258 = vmatprep.subr.mxu0 0.0
  %1259 = vmatpush1.msra.mxu0 %v1101
  %1260 = vmatprep.subr.mxu0 0.0
  %1261 = vmatpush2.msra.mxu0 0.0
  %1262 = vmatprep.subr.mxu0 0.0
  %1263 = vmatpush2.msra.mxu0 0.0
  %1264 = vmatprep.subr.mxu0 0.0
  %1265 = vmatpush2.msra.mxu0 0.0
  %1266 = vmatprep.subr.mxu0 0.0
  %1267 = vmatpush2.msra.mxu0 0.0
  %1268 = vmatprep.subr.mxu0 0.0
  %1269 = vmatpush2.msra.mxu0 0.0
  %1270 = vmatprep.subr.mxu0 0.0
  %1271 = vmatpush2.msra.mxu0 0.0
  %1272 = vmatprep.subr.mxu0 0.0
  %1273 = vmatpush2.msra.mxu0 0.0
  %1274 = vmatprep.subr.mxu0 0.0
  %1275 = vmatpush2.msra.mxu0 0.0
  %1276 = vmatprep.subr.mxu0 0.0
  %1277 = vmatpush2.msra.mxu0 0.0
  %1278 = vmatprep.subr.mxu0 0.0
  %1279 = vmatpush2.msra.mxu0 0.0
  %1280 = vmatprep.subr.mxu0 0.0
  %1281 = vmatpush2.msra.mxu0 0.0
  %1282 = vmatprep.subr.mxu0 0.0
  %1283 = vmatpush2.msra.mxu0 0.0
  %1284 = vmatprep.subr.mxu0 0.0
  %1285 = vmatpush2.msra.mxu0 0.0
  %1286 = vmatprep.subr.mxu0 0.0
  %1287 = vmatpush2.msra.mxu0 0.0
  %1288 = vmatprep.subr.mxu0 0.0
  %1289 = vmatpush2.msra.mxu0 0.0
  %1290 = vmatprep.subr.mxu0 0.0
  %1291 = vmatpush2.msra.mxu0 0.0
  %1292 = vmatprep.mubr.f32.mxu0 0.0
  %1293 = vmatmul.mubr.f32.gmra.mxu0 %v1226
  %v1294 = vpop.f32.mrf.mxu0
  %v1295 = vadd.f32 %v1113, %v1294
  %v1296 = vpop.f32.mrf.mxu0
  %1297 = vdwg.mxu0
  %v1298 = vxor.u32 %v1295, 2147483648
  %v1299 = vmul.f32 %v1298, 1.442695
  %v1300 = vpow.pop %v1299
  %v1301 = vadd.f32 %v1300, 1.0
  %v1302 = vrcp.pop %v1301
  %v1303 = vmul.f32 1.0, %v1302
  %1305 = vrot.lane.b32.xlu0 %v1295, 32
  %v1306 = vpop.permute.xlu0 %1305
  %v1308 = vmul.f32 %v1303, %v1306
  %1310 = vrot.lane.b32.xlu0 %v1308, 64
  %v1311 = vpop.permute.xlu0 %1310
  %v1313 = vadd.f32 %v1295, %v1311
  %v1314 = vtanh.pop %v1313
  %v1315 = vsub.f32 1.0, %v1303
  %1317 = vrot.lane.b32.xlu0 %v1314, 96
  %v1318 = vpop.permute.xlu0 %1317
  %v1320 = vmul.f32 %v1315, %v1318
  %v1321 = vmul.f32 %v1303, 0.0
  %v1322 = vadd.f32 %v1320, %v1321
  %v1323 = vsel %vm641, %v1221, 0
  %1325 = vmatprep.subr.mxu0 0.0
  %1326 = vmatpush1.msra.mxu0 0.0
  %1327 = vmatprep.subr.mxu0 0.0
  %1328 = vmatpush1.msra.mxu0 0.0
  %1329 = vmatprep.subr.mxu0 0.0
  %1330 = vmatpush1.msra.mxu0 0.0
  %1331 = vmatprep.subr.mxu0 0.0
  %1332 = vmatpush1.msra.mxu0 0.0
  %1333 = vmatprep.subr.mxu0 0.0
  %1334 = vmatpush1.msra.mxu0 0.0
  %1335 = vmatprep.subr.mxu0 0.0
  %1336 = vmatpush1.msra.mxu0 0.0
  %1337 = vmatprep.subr.mxu0 0.0
  %1338 = vmatpush1.msra.mxu0 0.0
  %1339 = vmatprep.subr.mxu0 0.0
  %1340 = vmatpush1.msra.mxu0 0.0
  %1341 = vmatprep.subr.mxu0 0.0
  %1342 = vmatpush1.msra.mxu0 0.0
  %1343 = vmatprep.subr.mxu0 0.0
  %1344 = vmatpush1.msra.mxu0 0.0
  %1345 = vmatprep.subr.mxu0 0.0
  %1346 = vmatpush1.msra.mxu0 0.0
  %1347 = vmatprep.subr.mxu0 0.0
  %1348 = vmatpush1.msra.mxu0 0.0
  %1349 = vmatprep.subr.mxu0 0.0
  %1350 = vmatpush1.msra.mxu0 %v1100
  %1351 = vmatprep.subr.mxu0 0.0
  %1352 = vmatpush1.msra.mxu0 %v1099
  %1353 = vmatprep.subr.mxu0 0.0
  %1354 = vmatpush1.msra.mxu0 %v1098
  %1355 = vmatprep.subr.mxu0 0.0
  %1356 = vmatpush1.msra.mxu0 %v1097
  %1357 = vmatprep.subr.mxu0 0.0
  %1358 = vmatpush2.msra.mxu0 0.0
  %1359 = vmatprep.subr.mxu0 0.0
  %1360 = vmatpush2.msra.mxu0 0.0
  %1361 = vmatprep.subr.mxu0 0.0
  %1362 = vmatpush2.msra.mxu0 0.0
  %1363 = vmatprep.subr.mxu0 0.0
  %1364 = vmatpush2.msra.mxu0 0.0
  %1365 = vmatprep.subr.mxu0 0.0
  %1366 = vmatpush2.msra.mxu0 0.0
  %1367 = vmatprep.subr.mxu0 0.0
  %1368 = vmatpush2.msra.mxu0 0.0
  %1369 = vmatprep.subr.mxu0 0.0
  %1370 = vmatpush2.msra.mxu0 0.0
  %1371 = vmatprep.subr.mxu0 0.0
  %1372 = vmatpush2.msra.mxu0 0.0
  %1373 = vmatprep.subr.mxu0 0.0
  %1374 = vmatpush2.msra.mxu0 0.0
  %1375 = vmatprep.subr.mxu0 0.0
  %1376 = vmatpush2.msra.mxu0 0.0
  %1377 = vmatprep.subr.mxu0 0.0
  %1378 = vmatpush2.msra.mxu0 0.0
  %1379 = vmatprep.subr.mxu0 0.0
  %1380 = vmatpush2.msra.mxu0 0.0
  %1381 = vmatprep.subr.mxu0 0.0
  %1382 = vmatpush2.msra.mxu0 0.0
  %1383 = vmatprep.subr.mxu0 0.0
  %1384 = vmatpush2.msra.mxu0 0.0
  %1385 = vmatprep.subr.mxu0 0.0
  %1386 = vmatpush2.msra.mxu0 0.0
  %1387 = vmatprep.subr.mxu0 0.0
  %1388 = vmatpush2.msra.mxu0 0.0
  %1389 = vmatprep.mubr.f32.mxu0 0.0
  %1390 = vmatmul.mubr.f32.gmra.mxu0 %v1323
  %v1391 = vpop.f32.mrf.mxu0
  %v1392 = vadd.f32 0.0, %v1391
  %v1393 = vpop.f32.mrf.mxu0
  %1394 = vdwg.mxu0
  %v1395 = vadd.f32 %v1028, %v1392
  %v1396 = vxor.u32 %v1395, 2147483648
  %v1397 = vmul.f32 %v1396, 1.442695
  %v1398 = vpow.pop %v1397
  %v1399 = vadd.f32 %v1398, 1.0
  %v1400 = vrcp.pop %v1399
  %v1401 = vmul.f32 1.0, %v1400
  %1403 = vrot.lane.b32.xlu0 %v1395, 32
  %v1404 = vpop.permute.xlu0 %1403
  %v1406 = vmul.f32 %v1401, %v1404
  %1408 = vrot.lane.b32.xlu0 %v1406, 64
  %v1409 = vpop.permute.xlu0 %1408
  %v1411 = vadd.f32 %v1395, %v1409
  %v1412 = vtanh.pop %v1411
  %v1413 = vsub.f32 1.0, %v1401
  %1415 = vrot.lane.b32.xlu0 %v1412, 96
  %v1416 = vpop.permute.xlu0 %1415
  %v1418 = vmul.f32 %v1413, %v1416
  %v1419 = vmul.f32 %v1401, %v1211
  %v1420 = vadd.f32 %v1418, %v1419
  %v1423 = vunpack.c.l.s4 1983009808
  %v1424 = vunpack.c.0.s8 %v1423
  %v1425 = vlaneseq
  %v1426 = vshrl.u32 %v1425, 7
  %v1427 = vsub.s32 %v1424, %v1426
  %v1428 = vrot.slane %v1420, %v1427
  %1429 = vrot.lane.b32.xlu0 %v1428, 96
  %v1430 = vpop.permute.xlu0 %1429
  %v1432 = vsel %vm641, %v1430, %v1322
  %v1434 = vsel %vm1224, %v1432, 0
  %1436 = vmatprep.subr.mxu0 0.0
  %1437 = vmatpush1.msra.mxu0 0.0
  %1438 = vmatprep.subr.mxu0 0.0
  %1439 = vmatpush1.msra.mxu0 0.0
  %1440 = vmatprep.subr.mxu0 0.0
  %1441 = vmatpush1.msra.mxu0 0.0
  %1442 = vmatprep.subr.mxu0 0.0
  %1443 = vmatpush1.msra.mxu0 0.0
  %1444 = vmatprep.subr.mxu0 0.0
  %1445 = vmatpush1.msra.mxu0 0.0
  %1446 = vmatprep.subr.mxu0 0.0
  %1447 = vmatpush1.msra.mxu0 0.0
  %1448 = vmatprep.subr.mxu0 0.0
  %1449 = vmatpush1.msra.mxu0 0.0
  %1450 = vmatprep.subr.mxu0 0.0
  %1451 = vmatpush1.msra.mxu0 0.0
  %1452 = vmatprep.subr.mxu0 0.0
  %1453 = vmatpush1.msra.mxu0 %v1108
  %1454 = vmatprep.subr.mxu0 0.0
  %1455 = vmatpush1.msra.mxu0 %v1107
  %1456 = vmatprep.subr.mxu0 0.0
  %1457 = vmatpush1.msra.mxu0 %v1106
  %1458 = vmatprep.subr.mxu0 0.0
  %1459 = vmatpush1.msra.mxu0 %v1105
  %1460 = vmatprep.subr.mxu0 0.0
  %1461 = vmatpush1.msra.mxu0 %v1104
  %1462 = vmatprep.subr.mxu0 0.0
  %1463 = vmatpush1.msra.mxu0 %v1103
  %1464 = vmatprep.subr.mxu0 0.0
  %1465 = vmatpush1.msra.mxu0 %v1102
  %1466 = vmatprep.subr.mxu0 0.0
  %1467 = vmatpush1.msra.mxu0 %v1101
  %1468 = vmatprep.subr.mxu0 0.0
  %1469 = vmatpush2.msra.mxu0 0.0
  %1470 = vmatprep.subr.mxu0 0.0
  %1471 = vmatpush2.msra.mxu0 0.0
  %1472 = vmatprep.subr.mxu0 0.0
  %1473 = vmatpush2.msra.mxu0 0.0
  %1474 = vmatprep.subr.mxu0 0.0
  %1475 = vmatpush2.msra.mxu0 0.0
  %1476 = vmatprep.subr.mxu0 0.0
  %1477 = vmatpush2.msra.mxu0 0.0
  %1478 = vmatprep.subr.mxu0 0.0
  %1479 = vmatpush2.msra.mxu0 0.0
  %1480 = vmatprep.subr.mxu0 0.0
  %1481 = vmatpush2.msra.mxu0 0.0
  %1482 = vmatprep.subr.mxu0 0.0
  %1483 = vmatpush2.msra.mxu0 0.0
  %1484 = vmatprep.subr.mxu0 0.0
  %1485 = vmatpush2.msra.mxu0 0.0
  %1486 = vmatprep.subr.mxu0 0.0
  %1487 = vmatpush2.msra.mxu0 0.0
  %1488 = vmatprep.subr.mxu0 0.0
  %1489 = vmatpush2.msra.mxu0 0.0
  %1490 = vmatprep.subr.mxu0 0.0
  %1491 = vmatpush2.msra.mxu0 0.0
  %1492 = vmatprep.subr.mxu0 0.0
  %1493 = vmatpush2.msra.mxu0 0.0
  %1494 = vmatprep.subr.mxu0 0.0
  %1495 = vmatpush2.msra.mxu0 0.0
  %1496 = vmatprep.subr.mxu0 0.0
  %1497 = vmatpush2.msra.mxu0 0.0
  %1498 = vmatprep.subr.mxu0 0.0
  %1499 = vmatpush2.msra.mxu0 0.0
  %1500 = vmatprep.mubr.f32.mxu0 0.0
  %1501 = vmatmul.mubr.f32.gmra.mxu0 %v1434
  %v1502 = vpop.f32.mrf.mxu0
  %v1503 = vadd.f32 %v1113, %v1502
  %v1504 = vpop.f32.mrf.mxu0
  %1505 = vdwg.mxu0
  %v1506 = vxor.u32 %v1503, 2147483648
  %v1507 = vmul.f32 %v1506, 1.442695
  %v1508 = vpow.pop %v1507
  %v1509 = vadd.f32 %v1508, 1.0
  %v1510 = vrcp.pop %v1509
  %v1511 = vmul.f32 1.0, %v1510
  %1513 = vrot.lane.b32.xlu0 %v1503, 32
  %v1514 = vpop.permute.xlu0 %1513
  %v1516 = vmul.f32 %v1511, %v1514
  %1518 = vrot.lane.b32.xlu0 %v1516, 64
  %v1519 = vpop.permute.xlu0 %1518
  %v1521 = vadd.f32 %v1503, %v1519
  %v1522 = vtanh.pop %v1521
  %v1523 = vsub.f32 1.0, %v1511
  %1525 = vrot.lane.b32.xlu0 %v1522, 96
  %v1526 = vpop.permute.xlu0 %1525
  %v1528 = vmul.f32 %v1523, %v1526
  %v1529 = vmul.f32 %v1511, %v1322
  %v1530 = vadd.f32 %v1528, %v1529
  %v1531 = vsel %vm641, %v1430, 0
  %1533 = vmatprep.subr.mxu0 0.0
  %1534 = vmatpush1.msra.mxu0 0.0
  %1535 = vmatprep.subr.mxu0 0.0
  %1536 = vmatpush1.msra.mxu0 0.0
  %1537 = vmatprep.subr.mxu0 0.0
  %1538 = vmatpush1.msra.mxu0 0.0
  %1539 = vmatprep.subr.mxu0 0.0
  %1540 = vmatpush1.msra.mxu0 0.0
  %1541 = vmatprep.subr.mxu0 0.0
  %1542 = vmatpush1.msra.mxu0 0.0
  %1543 = vmatprep.subr.mxu0 0.0
  %1544 = vmatpush1.msra.mxu0 0.0
  %1545 = vmatprep.subr.mxu0 0.0
  %1546 = vmatpush1.msra.mxu0 0.0
  %1547 = vmatprep.subr.mxu0 0.0
  %1548 = vmatpush1.msra.mxu0 0.0
  %1549 = vmatprep.subr.mxu0 0.0
  %1550 = vmatpush1.msra.mxu0 0.0
  %1551 = vmatprep.subr.mxu0 0.0
  %1552 = vmatpush1.msra.mxu0 0.0
  %1553 = vmatprep.subr.mxu0 0.0
  %1554 = vmatpush1.msra.mxu0 0.0
  %1555 = vmatprep.subr.mxu0 0.0
  %1556 = vmatpush1.msra.mxu0 0.0
  %1557 = vmatprep.subr.mxu0 0.0
  %1558 = vmatpush1.msra.mxu0 %v1100
  %1559 = vmatprep.subr.mxu0 0.0
  %1560 = vmatpush1.msra.mxu0 %v1099
  %1561 = vmatprep.subr.mxu0 0.0
  %1562 = vmatpush1.msra.mxu0 %v1098
  %1563 = vmatprep.subr.mxu0 0.0
  %1564 = vmatpush1.msra.mxu0 %v1097
  %1565 = vmatprep.subr.mxu0 0.0
  %1566 = vmatpush2.msra.mxu0 0.0
  %1567 = vmatprep.subr.mxu0 0.0
  %1568 = vmatpush2.msra.mxu0 0.0
  %1569 = vmatprep.subr.mxu0 0.0
  %1570 = vmatpush2.msra.mxu0 0.0
  %1571 = vmatprep.subr.mxu0 0.0
  %1572 = vmatpush2.msra.mxu0 0.0
  %1573 = vmatprep.subr.mxu0 0.0
  %1574 = vmatpush2.msra.mxu0 0.0
  %1575 = vmatprep.subr.mxu0 0.0
  %1576 = vmatpush2.msra.mxu0 0.0
  %1577 = vmatprep.subr.mxu0 0.0
  %1578 = vmatpush2.msra.mxu0 0.0
  %1579 = vmatprep.subr.mxu0 0.0
  %1580 = vmatpush2.msra.mxu0 0.0
  %1581 = vmatprep.subr.mxu0 0.0
  %1582 = vmatpush2.msra.mxu0 0.0
  %1583 = vmatprep.subr.mxu0 0.0
  %1584 = vmatpush2.msra.mxu0 0.0
  %1585 = vmatprep.subr.mxu0 0.0
  %1586 = vmatpush2.msra.mxu0 0.0
  %1587 = vmatprep.subr.mxu0 0.0
  %1588 = vmatpush2.msra.mxu0 0.0
  %1589 = vmatprep.subr.mxu0 0.0
  %1590 = vmatpush2.msra.mxu0 0.0
  %1591 = vmatprep.subr.mxu0 0.0
  %1592 = vmatpush2.msra.mxu0 0.0
  %1593 = vmatprep.subr.mxu0 0.0
  %1594 = vmatpush2.msra.mxu0 0.0
  %1595 = vmatprep.subr.mxu0 0.0
  %1596 = vmatpush2.msra.mxu0 0.0
  %1597 = vmatprep.mubr.f32.mxu0 0.0
  %1598 = vmatmul.mubr.f32.gmra.mxu0 %v1531
  %v1599 = vpop.f32.mrf.mxu0
  %v1600 = vadd.f32 0.0, %v1599
  %v1601 = vpop.f32.mrf.mxu0
  %1602 = vdwg.mxu0
  %v1603 = vadd.f32 %v1027, %v1600
  %v1604 = vxor.u32 %v1603, 2147483648
  %v1605 = vmul.f32 %v1604, 1.442695
  %v1606 = vpow.pop %v1605
  %v1607 = vadd.f32 %v1606, 1.0
  %v1608 = vrcp.pop %v1607
  %v1609 = vmul.f32 1.0, %v1608
  %1611 = vrot.lane.b32.xlu0 %v1603, 32
  %v1612 = vpop.permute.xlu0 %1611
  %v1614 = vmul.f32 %v1609, %v1612
  %1616 = vrot.lane.b32.xlu0 %v1614, 64
  %v1617 = vpop.permute.xlu0 %1616
  %v1619 = vadd.f32 %v1603, %v1617
  %v1620 = vtanh.pop %v1619
  %v1621 = vsub.f32 1.0, %v1609
  %1623 = vrot.lane.b32.xlu0 %v1620, 96
  %v1624 = vpop.permute.xlu0 %1623
  %v1626 = vmul.f32 %v1621, %v1624
  %v1627 = vmul.f32 %v1609, %v1420
  %v1628 = vadd.f32 %v1626, %v1627
  %v1631 = vunpack.c.l.s4 1983009808
  %v1632 = vunpack.c.0.s8 %v1631
  %v1633 = vlaneseq
  %v1634 = vshrl.u32 %v1633, 7
  %v1635 = vsub.s32 %v1632, %v1634
  %v1636 = vrot.slane %v1628, %v1635
  %1637 = vrot.lane.b32.xlu0 %v1636, 96
  %v1638 = vpop.permute.xlu0 %1637
  %v1640 = vsel %vm641, %v1638, %v1530
  %v1642 = vsel %vm1224, %v1640, 0
  %1644 = vmatprep.subr.mxu0 0.0
  %1645 = vmatpush1.msra.mxu0 0.0
  %1646 = vmatprep.subr.mxu0 0.0
  %1647 = vmatpush1.msra.mxu0 0.0
  %1648 = vmatprep.subr.mxu0 0.0
  %1649 = vmatpush1.msra.mxu0 0.0
  %1650 = vmatprep.subr.mxu0 0.0
  %1651 = vmatpush1.msra.mxu0 0.0
  %1652 = vmatprep.subr.mxu0 0.0
  %1653 = vmatpush1.msra.mxu0 0.0
  %1654 = vmatprep.subr.mxu0 0.0
  %1655 = vmatpush1.msra.mxu0 0.0
  %1656 = vmatprep.subr.mxu0 0.0
  %1657 = vmatpush1.msra.mxu0 0.0
  %1658 = vmatprep.subr.mxu0 0.0
  %1659 = vmatpush1.msra.mxu0 0.0
  %1660 = vmatprep.subr.mxu0 0.0
  %1661 = vmatpush1.msra.mxu0 %v1108
  %1662 = vmatprep.subr.mxu0 0.0
  %1663 = vmatpush1.msra.mxu0 %v1107
  %1664 = vmatprep.subr.mxu0 0.0
  %1665 = vmatpush1.msra.mxu0 %v1106
  %1666 = vmatprep.subr.mxu0 0.0
  %1667 = vmatpush1.msra.mxu0 %v1105
  %1668 = vmatprep.subr.mxu0 0.0
  %1669 = vmatpush1.msra.mxu0 %v1104
  %1670 = vmatprep.subr.mxu0 0.0
  %1671 = vmatpush1.msra.mxu0 %v1103
  %1672 = vmatprep.subr.mxu0 0.0
  %1673 = vmatpush1.msra.mxu0 %v1102
  %1674 = vmatprep.subr.mxu0 0.0
  %1675 = vmatpush1.msra.mxu0 %v1101
  %1676 = vmatprep.subr.mxu0 0.0
  %1677 = vmatpush2.msra.mxu0 0.0
  %1678 = vmatprep.subr.mxu0 0.0
  %1679 = vmatpush2.msra.mxu0 0.0
  %1680 = vmatprep.subr.mxu0 0.0
  %1681 = vmatpush2.msra.mxu0 0.0
  %1682 = vmatprep.subr.mxu0 0.0
  %1683 = vmatpush2.msra.mxu0 0.0
  %1684 = vmatprep.subr.mxu0 0.0
  %1685 = vmatpush2.msra.mxu0 0.0
  %1686 = vmatprep.subr.mxu0 0.0
  %1687 = vmatpush2.msra.mxu0 0.0
  %1688 = vmatprep.subr.mxu0 0.0
  %1689 = vmatpush2.msra.mxu0 0.0
  %1690 = vmatprep.subr.mxu0 0.0
  %1691 = vmatpush2.msra.mxu0 0.0
  %1692 = vmatprep.subr.mxu0 0.0
  %1693 = vmatpush2.msra.mxu0 0.0
  %1694 = vmatprep.subr.mxu0 0.0
  %1695 = vmatpush2.msra.mxu0 0.0
  %1696 = vmatprep.subr.mxu0 0.0
  %1697 = vmatpush2.msra.mxu0 0.0
  %1698 = vmatprep.subr.mxu0 0.0
  %1699 = vmatpush2.msra.mxu0 0.0
  %1700 = vmatprep.subr.mxu0 0.0
  %1701 = vmatpush2.msra.mxu0 0.0
  %1702 = vmatprep.subr.mxu0 0.0
  %1703 = vmatpush2.msra.mxu0 0.0
  %1704 = vmatprep.subr.mxu0 0.0
  %1705 = vmatpush2.msra.mxu0 0.0
  %1706 = vmatprep.subr.mxu0 0.0
  %1707 = vmatpush2.msra.mxu0 0.0
  %1708 = vmatprep.mubr.f32.mxu0 0.0
  %1709 = vmatmul.mubr.f32.gmra.mxu0 %v1642
  %v1710 = vpop.f32.mrf.mxu0
  %v1711 = vadd.f32 %v1113, %v1710
  %v1712 = vpop.f32.mrf.mxu0
  %1713 = vdwg.mxu0
  %v1714 = vxor.u32 %v1711, 2147483648
  %v1715 = vmul.f32 %v1714, 1.442695
  %v1716 = vpow.pop %v1715
  %v1717 = vadd.f32 %v1716, 1.0
  %v1718 = vrcp.pop %v1717
  %v1719 = vmul.f32 1.0, %v1718
  %1721 = vrot.lane.b32.xlu0 %v1711, 32
  %v1722 = vpop.permute.xlu0 %1721
  %v1724 = vmul.f32 %v1719, %v1722
  %1726 = vrot.lane.b32.xlu0 %v1724, 64
  %v1727 = vpop.permute.xlu0 %1726
  %v1729 = vadd.f32 %v1711, %v1727
  %v1730 = vtanh.pop %v1729
  %v1731 = vsub.f32 1.0, %v1719
  %1733 = vrot.lane.b32.xlu0 %v1730, 96
  %v1734 = vpop.permute.xlu0 %1733
  %v1736 = vmul.f32 %v1731, %v1734
  %v1737 = vmul.f32 %v1719, %v1530
  %v1738 = vadd.f32 %v1736, %v1737
  %v1739 = vsel %vm641, %v1638, 0
  %1741 = vmatprep.subr.mxu0 0.0
  %1742 = vmatpush1.msra.mxu0 0.0
  %1743 = vmatprep.subr.mxu0 0.0
  %1744 = vmatpush1.msra.mxu0 0.0
  %1745 = vmatprep.subr.mxu0 0.0
  %1746 = vmatpush1.msra.mxu0 0.0
  %1747 = vmatprep.subr.mxu0 0.0
  %1748 = vmatpush1.msra.mxu0 0.0
  %1749 = vmatprep.subr.mxu0 0.0
  %1750 = vmatpush1.msra.mxu0 0.0
  %1751 = vmatprep.subr.mxu0 0.0
  %1752 = vmatpush1.msra.mxu0 0.0
  %1753 = vmatprep.subr.mxu0 0.0
  %1754 = vmatpush1.msra.mxu0 0.0
  %1755 = vmatprep.subr.mxu0 0.0
  %1756 = vmatpush1.msra.mxu0 0.0
  %1757 = vmatprep.subr.mxu0 0.0
  %1758 = vmatpush1.msra.mxu0 0.0
  %1759 = vmatprep.subr.mxu0 0.0
  %1760 = vmatpush1.msra.mxu0 0.0
  %1761 = vmatprep.subr.mxu0 0.0
  %1762 = vmatpush1.msra.mxu0 0.0
  %1763 = vmatprep.subr.mxu0 0.0
  %1764 = vmatpush1.msra.mxu0 0.0
  %1765 = vmatprep.subr.mxu0 0.0
  %1766 = vmatpush1.msra.mxu0 %v1100
  %1767 = vmatprep.subr.mxu0 0.0
  %1768 = vmatpush1.msra.mxu0 %v1099
  %1769 = vmatprep.subr.mxu0 0.0
  %1770 = vmatpush1.msra.mxu0 %v1098
  %1771 = vmatprep.subr.mxu0 0.0
  %1772 = vmatpush1.msra.mxu0 %v1097
  %1773 = vmatprep.subr.mxu0 0.0
  %1774 = vmatpush2.msra.mxu0 0.0
  %1775 = vmatprep.subr.mxu0 0.0
  %1776 = vmatpush2.msra.mxu0 0.0
  %1777 = vmatprep.subr.mxu0 0.0
  %1778 = vmatpush2.msra.mxu0 0.0
  %1779 = vmatprep.subr.mxu0 0.0
  %1780 = vmatpush2.msra.mxu0 0.0
  %1781 = vmatprep.subr.mxu0 0.0
  %1782 = vmatpush2.msra.mxu0 0.0
  %1783 = vmatprep.subr.mxu0 0.0
  %1784 = vmatpush2.msra.mxu0 0.0
  %1785 = vmatprep.subr.mxu0 0.0
  %1786 = vmatpush2.msra.mxu0 0.0
  %1787 = vmatprep.subr.mxu0 0.0
  %1788 = vmatpush2.msra.mxu0 0.0
  %1789 = vmatprep.subr.mxu0 0.0
  %1790 = vmatpush2.msra.mxu0 0.0
  %1791 = vmatprep.subr.mxu0 0.0
  %1792 = vmatpush2.msra.mxu0 0.0
  %1793 = vmatprep.subr.mxu0 0.0
  %1794 = vmatpush2.msra.mxu0 0.0
  %1795 = vmatprep.subr.mxu0 0.0
  %1796 = vmatpush2.msra.mxu0 0.0
  %1797 = vmatprep.subr.mxu0 0.0
  %1798 = vmatpush2.msra.mxu0 0.0
  %1799 = vmatprep.subr.mxu0 0.0
  %1800 = vmatpush2.msra.mxu0 0.0
  %1801 = vmatprep.subr.mxu0 0.0
  %1802 = vmatpush2.msra.mxu0 0.0
  %1803 = vmatprep.subr.mxu0 0.0
  %1804 = vmatpush2.msra.mxu0 0.0
  %1805 = vmatprep.mubr.f32.mxu0 0.0
  %1806 = vmatmul.mubr.f32.gmra.mxu0 %v1739
  %v1807 = vpop.f32.mrf.mxu0
  %v1808 = vadd.f32 0.0, %v1807
  %v1809 = vpop.f32.mrf.mxu0
  %1810 = vdwg.mxu0
  %v1811 = vadd.f32 %v1029, %v1808
  %v1812 = vxor.u32 %v1811, 2147483648
  %v1813 = vmul.f32 %v1812, 1.442695
  %v1814 = vpow.pop %v1813
  %v1815 = vadd.f32 %v1814, 1.0
  %v1816 = vrcp.pop %v1815
  %v1817 = vmul.f32 1.0, %v1816
  %1819 = vrot.lane.b32.xlu0 %v1811, 32
  %v1820 = vpop.permute.xlu0 %1819
  %v1822 = vmul.f32 %v1817, %v1820
  %1824 = vrot.lane.b32.xlu0 %v1822, 64
  %v1825 = vpop.permute.xlu0 %1824
  %v1827 = vadd.f32 %v1811, %v1825
  %v1828 = vtanh.pop %v1827
  %v1829 = vsub.f32 1.0, %v1817
  %1831 = vrot.lane.b32.xlu0 %v1828, 96
  %v1832 = vpop.permute.xlu0 %1831
  %v1834 = vmul.f32 %v1829, %v1832
  %v1835 = vmul.f32 %v1817, %v1628
  %v1836 = vadd.f32 %v1834, %v1835
  %v1839 = vunpack.c.l.s4 1983009808
  %v1840 = vunpack.c.0.s8 %v1839
  %v1841 = vlaneseq
  %v1842 = vshrl.u32 %v1841, 7
  %v1843 = vsub.s32 %v1840, %v1842
  %v1844 = vrot.slane %v1836, %v1843
  %1845 = vrot.lane.b32.xlu0 %v1844, 96
  %v1846 = vpop.permute.xlu0 %1845
  %v1848 = vsel %vm641, %v1846, %v1738
  %v1850 = vsel %vm1224, %v1848, 0
  %1852 = vmatprep.subr.mxu0 0.0
  %1853 = vmatpush1.msra.mxu0 0.0
  %1854 = vmatprep.subr.mxu0 0.0
  %1855 = vmatpush1.msra.mxu0 0.0
  %1856 = vmatprep.subr.mxu0 0.0
  %1857 = vmatpush1.msra.mxu0 0.0
  %1858 = vmatprep.subr.mxu0 0.0
  %1859 = vmatpush1.msra.mxu0 0.0
  %1860 = vmatprep.subr.mxu0 0.0
  %1861 = vmatpush1.msra.mxu0 0.0
  %1862 = vmatprep.subr.mxu0 0.0
  %1863 = vmatpush1.msra.mxu0 0.0
  %1864 = vmatprep.subr.mxu0 0.0
  %1865 = vmatpush1.msra.mxu0 0.0
  %1866 = vmatprep.subr.mxu0 0.0
  %1867 = vmatpush1.msra.mxu0 0.0
  %1868 = vmatprep.subr.mxu0 0.0
  %1869 = vmatpush1.msra.mxu0 %v1108
  %1870 = vmatprep.subr.mxu0 0.0
  %1871 = vmatpush1.msra.mxu0 %v1107
  %1872 = vmatprep.subr.mxu0 0.0
  %1873 = vmatpush1.msra.mxu0 %v1106
  %1874 = vmatprep.subr.mxu0 0.0
  %1875 = vmatpush1.msra.mxu0 %v1105
  %1876 = vmatprep.subr.mxu0 0.0
  %1877 = vmatpush1.msra.mxu0 %v1104
  %1878 = vmatprep.subr.mxu0 0.0
  %1879 = vmatpush1.msra.mxu0 %v1103
  %1880 = vmatprep.subr.mxu0 0.0
  %1881 = vmatpush1.msra.mxu0 %v1102
  %1882 = vmatprep.subr.mxu0 0.0
  %1883 = vmatpush1.msra.mxu0 %v1101
  %1884 = vmatprep.subr.mxu0 0.0
  %1885 = vmatpush2.msra.mxu0 0.0
  %1886 = vmatprep.subr.mxu0 0.0
  %1887 = vmatpush2.msra.mxu0 0.0
  %1888 = vmatprep.subr.mxu0 0.0
  %1889 = vmatpush2.msra.mxu0 0.0
  %1890 = vmatprep.subr.mxu0 0.0
  %1891 = vmatpush2.msra.mxu0 0.0
  %1892 = vmatprep.subr.mxu0 0.0
  %1893 = vmatpush2.msra.mxu0 0.0
  %1894 = vmatprep.subr.mxu0 0.0
  %1895 = vmatpush2.msra.mxu0 0.0
  %1896 = vmatprep.subr.mxu0 0.0
  %1897 = vmatpush2.msra.mxu0 0.0
  %1898 = vmatprep.subr.mxu0 0.0
  %1899 = vmatpush2.msra.mxu0 0.0
  %1900 = vmatprep.subr.mxu0 0.0
  %1901 = vmatpush2.msra.mxu0 0.0
  %1902 = vmatprep.subr.mxu0 0.0
  %1903 = vmatpush2.msra.mxu0 0.0
  %1904 = vmatprep.subr.mxu0 0.0
  %1905 = vmatpush2.msra.mxu0 0.0
  %1906 = vmatprep.subr.mxu0 0.0
  %1907 = vmatpush2.msra.mxu0 0.0
  %1908 = vmatprep.subr.mxu0 0.0
  %1909 = vmatpush2.msra.mxu0 0.0
  %1910 = vmatprep.subr.mxu0 0.0
  %1911 = vmatpush2.msra.mxu0 0.0
  %1912 = vmatprep.subr.mxu0 0.0
  %1913 = vmatpush2.msra.mxu0 0.0
  %1914 = vmatprep.subr.mxu0 0.0
  %1915 = vmatpush2.msra.mxu0 0.0
  %1916 = vmatprep.mubr.f32.mxu0 0.0
  %1917 = vmatmul.mubr.f32.gmra.mxu0 %v1850
  %v1918 = vpop.f32.mrf.mxu0
  %v1919 = vadd.f32 %v1113, %v1918
  %v1920 = vpop.f32.mrf.mxu0
  %1921 = vdwg.mxu0
  %v1922 = vxor.u32 %v1919, 2147483648
  %v1923 = vmul.f32 %v1922, 1.442695
  %v1924 = vpow.pop %v1923
  %v1925 = vadd.f32 %v1924, 1.0
  %v1926 = vrcp.pop %v1925
  %v1927 = vmul.f32 1.0, %v1926
  %1929 = vrot.lane.b32.xlu0 %v1919, 32
  %v1930 = vpop.permute.xlu0 %1929
  %v1932 = vmul.f32 %v1927, %v1930
  %1934 = vrot.lane.b32.xlu0 %v1932, 64
  %v1935 = vpop.permute.xlu0 %1934
  %v1937 = vadd.f32 %v1919, %v1935
  %v1938 = vtanh.pop %v1937
  %v1939 = vsub.f32 1.0, %v1927
  %1941 = vrot.lane.b32.xlu0 %v1938, 96
  %v1942 = vpop.permute.xlu0 %1941
  %v1944 = vmul.f32 %v1939, %v1942
  %v1945 = vmul.f32 %v1927, %v1738
  %v1946 = vadd.f32 %v1944, %v1945
  %v1947 = vsel %vm641, %v1846, 0
  %1949 = vmatprep.subr.mxu0 0.0
  %1950 = vmatpush1.msra.mxu0 0.0
  %1951 = vmatprep.subr.mxu0 0.0
  %1952 = vmatpush1.msra.mxu0 0.0
  %1953 = vmatprep.subr.mxu0 0.0
  %1954 = vmatpush1.msra.mxu0 0.0
  %1955 = vmatprep.subr.mxu0 0.0
  %1956 = vmatpush1.msra.mxu0 0.0
  %1957 = vmatprep.subr.mxu0 0.0
  %1958 = vmatpush1.msra.mxu0 0.0
  %1959 = vmatprep.subr.mxu0 0.0
  %1960 = vmatpush1.msra.mxu0 0.0
  %1961 = vmatprep.subr.mxu0 0.0
  %1962 = vmatpush1.msra.mxu0 0.0
  %1963 = vmatprep.subr.mxu0 0.0
  %1964 = vmatpush1.msra.mxu0 0.0
  %1965 = vmatprep.subr.mxu0 0.0
  %1966 = vmatpush1.msra.mxu0 0.0
  %1967 = vmatprep.subr.mxu0 0.0
  %1968 = vmatpush1.msra.mxu0 0.0
  %1969 = vmatprep.subr.mxu0 0.0
  %1970 = vmatpush1.msra.mxu0 0.0
  %1971 = vmatprep.subr.mxu0 0.0
  %1972 = vmatpush1.msra.mxu0 0.0
  %1973 = vmatprep.subr.mxu0 0.0
  %1974 = vmatpush1.msra.mxu0 %v1100
  %1975 = vmatprep.subr.mxu0 0.0
  %1976 = vmatpush1.msra.mxu0 %v1099
  %1977 = vmatprep.subr.mxu0 0.0
  %1978 = vmatpush1.msra.mxu0 %v1098
  %1979 = vmatprep.subr.mxu0 0.0
  %1980 = vmatpush1.msra.mxu0 %v1097
  %1981 = vmatprep.subr.mxu0 0.0
  %1982 = vmatpush2.msra.mxu0 0.0
  %1983 = vmatprep.subr.mxu0 0.0
  %1984 = vmatpush2.msra.mxu0 0.0
  %1985 = vmatprep.subr.mxu0 0.0
  %1986 = vmatpush2.msra.mxu0 0.0
  %1987 = vmatprep.subr.mxu0 0.0
  %1988 = vmatpush2.msra.mxu0 0.0
  %1989 = vmatprep.subr.mxu0 0.0
  %1990 = vmatpush2.msra.mxu0 0.0
  %1991 = vmatprep.subr.mxu0 0.0
  %1992 = vmatpush2.msra.mxu0 0.0
  %1993 = vmatprep.subr.mxu0 0.0
  %1994 = vmatpush2.msra.mxu0 0.0
  %1995 = vmatprep.subr.mxu0 0.0
  %1996 = vmatpush2.msra.mxu0 0.0
  %1997 = vmatprep.subr.mxu0 0.0
  %1998 = vmatpush2.msra.mxu0 0.0
  %1999 = vmatprep.subr.mxu0 0.0
  %2000 = vmatpush2.msra.mxu0 0.0
  %2001 = vmatprep.subr.mxu0 0.0
  %2002 = vmatpush2.msra.mxu0 0.0
  %2003 = vmatprep.subr.mxu0 0.0
  %2004 = vmatpush2.msra.mxu0 0.0
  %2005 = vmatprep.subr.mxu0 0.0
  %2006 = vmatpush2.msra.mxu0 0.0
  %2007 = vmatprep.subr.mxu0 0.0
  %2008 = vmatpush2.msra.mxu0 0.0
  %2009 = vmatprep.subr.mxu0 0.0
  %2010 = vmatpush2.msra.mxu0 0.0
  %2011 = vmatprep.subr.mxu0 0.0
  %2012 = vmatpush2.msra.mxu0 0.0
  %2013 = vmatprep.mubr.f32.mxu0 0.0
  %2014 = vmatmul.mubr.f32.gmra.mxu0 %v1947
  %v2015 = vpop.f32.mrf.mxu0
  %v2016 = vadd.f32 0.0, %v2015
  %v2017 = vpop.f32.mrf.mxu0
  %2018 = vdwg.mxu0
  %v2019 = vadd.f32 %v1037, %v2016
  %v2020 = vxor.u32 %v2019, 2147483648
  %v2021 = vmul.f32 %v2020, 1.442695
  %v2022 = vpow.pop %v2021
  %v2023 = vadd.f32 %v2022, 1.0
  %v2024 = vrcp.pop %v2023
  %v2025 = vmul.f32 1.0, %v2024
  %2027 = vrot.lane.b32.xlu0 %v2019, 32
  %v2028 = vpop.permute.xlu0 %2027
  %v2030 = vmul.f32 %v2025, %v2028
  %2032 = vrot.lane.b32.xlu0 %v2030, 64
  %v2033 = vpop.permute.xlu0 %2032
  %v2035 = vadd.f32 %v2019, %v2033
  %v2036 = vtanh.pop %v2035
  %v2037 = vsub.f32 1.0, %v2025
  %2039 = vrot.lane.b32.xlu0 %v2036, 96
  %v2040 = vpop.permute.xlu0 %2039
  %v2042 = vmul.f32 %v2037, %v2040
  %v2043 = vmul.f32 %v2025, %v1836
  %v2044 = vadd.f32 %v2042, %v2043
  %v2047 = vunpack.c.l.s4 1983009808
  %v2048 = vunpack.c.0.s8 %v2047
  %v2049 = vlaneseq
  %v2050 = vshrl.u32 %v2049, 7
  %v2051 = vsub.s32 %v2048, %v2050
  %v2052 = vrot.slane %v2044, %v2051
  %2053 = vrot.lane.b32.xlu0 %v2052, 96
  %v2054 = vpop.permute.xlu0 %2053
  %v2056 = vsel %vm641, %v2054, %v1946
  %v2058 = vsel %vm1224, %v2056, 0
  %2060 = vmatprep.subr.mxu0 0.0
  %2061 = vmatpush1.msra.mxu0 0.0
  %2062 = vmatprep.subr.mxu0 0.0
  %2063 = vmatpush1.msra.mxu0 0.0
  %2064 = vmatprep.subr.mxu0 0.0
  %2065 = vmatpush1.msra.mxu0 0.0
  %2066 = vmatprep.subr.mxu0 0.0
  %2067 = vmatpush1.msra.mxu0 0.0
  %2068 = vmatprep.subr.mxu0 0.0
  %2069 = vmatpush1.msra.mxu0 0.0
  %2070 = vmatprep.subr.mxu0 0.0
  %2071 = vmatpush1.msra.mxu0 0.0
  %2072 = vmatprep.subr.mxu0 0.0
  %2073 = vmatpush1.msra.mxu0 0.0
  %2074 = vmatprep.subr.mxu0 0.0
  %2075 = vmatpush1.msra.mxu0 0.0
  %2076 = vmatprep.subr.mxu0 0.0
  %2077 = vmatpush1.msra.mxu0 %v1108
  %2078 = vmatprep.subr.mxu0 0.0
  %2079 = vmatpush1.msra.mxu0 %v1107
  %2080 = vmatprep.subr.mxu0 0.0
  %2081 = vmatpush1.msra.mxu0 %v1106
  %2082 = vmatprep.subr.mxu0 0.0
  %2083 = vmatpush1.msra.mxu0 %v1105
  %2084 = vmatprep.subr.mxu0 0.0
  %2085 = vmatpush1.msra.mxu0 %v1104
  %2086 = vmatprep.subr.mxu0 0.0
  %2087 = vmatpush1.msra.mxu0 %v1103
  %2088 = vmatprep.subr.mxu0 0.0
  %2089 = vmatpush1.msra.mxu0 %v1102
  %2090 = vmatprep.subr.mxu0 0.0
  %2091 = vmatpush1.msra.mxu0 %v1101
  %2092 = vmatprep.subr.mxu0 0.0
  %2093 = vmatpush2.msra.mxu0 0.0
  %2094 = vmatprep.subr.mxu0 0.0
  %2095 = vmatpush2.msra.mxu0 0.0
  %2096 = vmatprep.subr.mxu0 0.0
  %2097 = vmatpush2.msra.mxu0 0.0
  %2098 = vmatprep.subr.mxu0 0.0
  %2099 = vmatpush2.msra.mxu0 0.0
  %2100 = vmatprep.subr.mxu0 0.0
  %2101 = vmatpush2.msra.mxu0 0.0
  %2102 = vmatprep.subr.mxu0 0.0
  %2103 = vmatpush2.msra.mxu0 0.0
  %2104 = vmatprep.subr.mxu0 0.0
  %2105 = vmatpush2.msra.mxu0 0.0
  %2106 = vmatprep.subr.mxu0 0.0
  %2107 = vmatpush2.msra.mxu0 0.0
  %2108 = vmatprep.subr.mxu0 0.0
  %2109 = vmatpush2.msra.mxu0 0.0
  %2110 = vmatprep.subr.mxu0 0.0
  %2111 = vmatpush2.msra.mxu0 0.0
  %2112 = vmatprep.subr.mxu0 0.0
  %2113 = vmatpush2.msra.mxu0 0.0
  %2114 = vmatprep.subr.mxu0 0.0
  %2115 = vmatpush2.msra.mxu0 0.0
  %2116 = vmatprep.subr.mxu0 0.0
  %2117 = vmatpush2.msra.mxu0 0.0
  %2118 = vmatprep.subr.mxu0 0.0
  %2119 = vmatpush2.msra.mxu0 0.0
  %2120 = vmatprep.subr.mxu0 0.0
  %2121 = vmatpush2.msra.mxu0 0.0
  %2122 = vmatprep.subr.mxu0 0.0
  %2123 = vmatpush2.msra.mxu0 0.0
  %2124 = vmatprep.mubr.f32.mxu0 0.0
  %2125 = vmatmul.mubr.f32.gmra.mxu0 %v2058
  %v2126 = vpop.f32.mrf.mxu0
  %v2127 = vadd.f32 %v1113, %v2126
  %v2128 = vpop.f32.mrf.mxu0
  %2129 = vdwg.mxu0
  %v2130 = vxor.u32 %v2127, 2147483648
  %v2131 = vmul.f32 %v2130, 1.442695
  %v2132 = vpow.pop %v2131
  %v2133 = vadd.f32 %v2132, 1.0
  %v2134 = vrcp.pop %v2133
  %v2135 = vmul.f32 1.0, %v2134
  %2137 = vrot.lane.b32.xlu0 %v2127, 32
  %v2138 = vpop.permute.xlu0 %2137
  %v2140 = vmul.f32 %v2135, %v2138
  %2142 = vrot.lane.b32.xlu0 %v2140, 64
  %v2143 = vpop.permute.xlu0 %2142
  %v2145 = vadd.f32 %v2127, %v2143
  %v2146 = vtanh.pop %v2145
  %v2147 = vsub.f32 1.0, %v2135
  %2149 = vrot.lane.b32.xlu0 %v2146, 96
  %v2150 = vpop.permute.xlu0 %2149
  %v2152 = vmul.f32 %v2147, %v2150
  %v2153 = vmul.f32 %v2135, %v1946
  %v2154 = vadd.f32 %v2152, %v2153
  %v2155 = vsel %vm641, %v2054, 0
  %2157 = vmatprep.subr.mxu0 0.0
  %2158 = vmatpush1.msra.mxu0 0.0
  %2159 = vmatprep.subr.mxu0 0.0
  %2160 = vmatpush1.msra.mxu0 0.0
  %2161 = vmatprep.subr.mxu0 0.0
  %2162 = vmatpush1.msra.mxu0 0.0
  %2163 = vmatprep.subr.mxu0 0.0
  %2164 = vmatpush1.msra.mxu0 0.0
  %2165 = vmatprep.subr.mxu0 0.0
  %2166 = vmatpush1.msra.mxu0 0.0
  %2167 = vmatprep.subr.mxu0 0.0
  %2168 = vmatpush1.msra.mxu0 0.0
  %2169 = vmatprep.subr.mxu0 0.0
  %2170 = vmatpush1.msra.mxu0 0.0
  %2171 = vmatprep.subr.mxu0 0.0
  %2172 = vmatpush1.msra.mxu0 0.0
  %2173 = vmatprep.subr.mxu0 0.0
  %2174 = vmatpush1.msra.mxu0 0.0
  %2175 = vmatprep.subr.mxu0 0.0
  %2176 = vmatpush1.msra.mxu0 0.0
  %2177 = vmatprep.subr.mxu0 0.0
  %2178 = vmatpush1.msra.mxu0 0.0
  %2179 = vmatprep.subr.mxu0 0.0
  %2180 = vmatpush1.msra.mxu0 0.0
  %2181 = vmatprep.subr.mxu0 0.0
  %2182 = vmatpush1.msra.mxu0 %v1100
  %2183 = vmatprep.subr.mxu0 0.0
  %2184 = vmatpush1.msra.mxu0 %v1099
  %2185 = vmatprep.subr.mxu0 0.0
  %2186 = vmatpush1.msra.mxu0 %v1098
  %2187 = vmatprep.subr.mxu0 0.0
  %2188 = vmatpush1.msra.mxu0 %v1097
  %2189 = vmatprep.subr.mxu0 0.0
  %2190 = vmatpush2.msra.mxu0 0.0
  %2191 = vmatprep.subr.mxu0 0.0
  %2192 = vmatpush2.msra.mxu0 0.0
  %2193 = vmatprep.subr.mxu0 0.0
  %2194 = vmatpush2.msra.mxu0 0.0
  %2195 = vmatprep.subr.mxu0 0.0
  %2196 = vmatpush2.msra.mxu0 0.0
  %2197 = vmatprep.subr.mxu0 0.0
  %2198 = vmatpush2.msra.mxu0 0.0
  %2199 = vmatprep.subr.mxu0 0.0
  %2200 = vmatpush2.msra.mxu0 0.0
  %2201 = vmatprep.subr.mxu0 0.0
  %2202 = vmatpush2.msra.mxu0 0.0
  %2203 = vmatprep.subr.mxu0 0.0
  %2204 = vmatpush2.msra.mxu0 0.0
  %2205 = vmatprep.subr.mxu0 0.0
  %2206 = vmatpush2.msra.mxu0 0.0
  %2207 = vmatprep.subr.mxu0 0.0
  %2208 = vmatpush2.msra.mxu0 0.0
  %2209 = vmatprep.subr.mxu0 0.0
  %2210 = vmatpush2.msra.mxu0 0.0
  %2211 = vmatprep.subr.mxu0 0.0
  %2212 = vmatpush2.msra.mxu0 0.0
  %2213 = vmatprep.subr.mxu0 0.0
  %2214 = vmatpush2.msra.mxu0 0.0
  %2215 = vmatprep.subr.mxu0 0.0
  %2216 = vmatpush2.msra.mxu0 0.0
  %2217 = vmatprep.subr.mxu0 0.0
  %2218 = vmatpush2.msra.mxu0 0.0
  %2219 = vmatprep.subr.mxu0 0.0
  %2220 = vmatpush2.msra.mxu0 0.0
  %2221 = vmatprep.mubr.f32.mxu0 0.0
  %2222 = vmatmul.mubr.f32.gmra.mxu0 %v2155
  %v2223 = vpop.f32.mrf.mxu0
  %v2224 = vadd.f32 0.0, %v2223
  %v2225 = vpop.f32.mrf.mxu0
  %2226 = vdwg.mxu0
  %v2227 = vadd.f32 %v1045, %v2224
  %v2228 = vxor.u32 %v2227, 2147483648
  %v2229 = vmul.f32 %v2228, 1.442695
  %v2230 = vpow.pop %v2229
  %v2231 = vadd.f32 %v2230, 1.0
  %v2232 = vrcp.pop %v2231
  %v2233 = vmul.f32 1.0, %v2232
  %2235 = vrot.lane.b32.xlu0 %v2227, 32
  %v2236 = vpop.permute.xlu0 %2235
  %v2238 = vmul.f32 %v2233, %v2236
  %2240 = vrot.lane.b32.xlu0 %v2238, 64
  %v2241 = vpop.permute.xlu0 %2240
  %v2243 = vadd.f32 %v2227, %v2241
  %v2244 = vtanh.pop %v2243
  %v2245 = vsub.f32 1.0, %v2233
  %2247 = vrot.lane.b32.xlu0 %v2244, 96
  %v2248 = vpop.permute.xlu0 %2247
  %v2250 = vmul.f32 %v2245, %v2248
  %v2251 = vmul.f32 %v2233, %v2044
  %v2252 = vadd.f32 %v2250, %v2251
  %v2255 = vunpack.c.l.s4 1983009808
  %v2256 = vunpack.c.0.s8 %v2255
  %v2257 = vlaneseq
  %v2258 = vshrl.u32 %v2257, 7
  %v2259 = vsub.s32 %v2256, %v2258
  %v2260 = vrot.slane %v2252, %v2259
  %2261 = vrot.lane.b32.xlu0 %v2260, 96
  %v2262 = vpop.permute.xlu0 %2261
  %v2264 = vsel %vm641, %v2262, %v2154
  %v2266 = vsel %vm1224, %v2264, 0
  %2268 = vmatprep.subr.mxu0 0.0
  %2269 = vmatpush1.msra.mxu0 0.0
  %2270 = vmatprep.subr.mxu0 0.0
  %2271 = vmatpush1.msra.mxu0 0.0
  %2272 = vmatprep.subr.mxu0 0.0
  %2273 = vmatpush1.msra.mxu0 0.0
  %2274 = vmatprep.subr.mxu0 0.0
  %2275 = vmatpush1.msra.mxu0 0.0
  %2276 = vmatprep.subr.mxu0 0.0
  %2277 = vmatpush1.msra.mxu0 0.0
  %2278 = vmatprep.subr.mxu0 0.0
  %2279 = vmatpush1.msra.mxu0 0.0
  %2280 = vmatprep.subr.mxu0 0.0
  %2281 = vmatpush1.msra.mxu0 0.0
  %2282 = vmatprep.subr.mxu0 0.0
  %2283 = vmatpush1.msra.mxu0 0.0
  %2284 = vmatprep.subr.mxu0 0.0
  %2285 = vmatpush1.msra.mxu0 %v1108
  %2286 = vmatprep.subr.mxu0 0.0
  %2287 = vmatpush1.msra.mxu0 %v1107
  %2288 = vmatprep.subr.mxu0 0.0
  %2289 = vmatpush1.msra.mxu0 %v1106
  %2290 = vmatprep.subr.mxu0 0.0
  %2291 = vmatpush1.msra.mxu0 %v1105
  %2292 = vmatprep.subr.mxu0 0.0
  %2293 = vmatpush1.msra.mxu0 %v1104
  %2294 = vmatprep.subr.mxu0 0.0
  %2295 = vmatpush1.msra.mxu0 %v1103
  %2296 = vmatprep.subr.mxu0 0.0
  %2297 = vmatpush1.msra.mxu0 %v1102
  %2298 = vmatprep.subr.mxu0 0.0
  %2299 = vmatpush1.msra.mxu0 %v1101
  %2300 = vmatprep.subr.mxu0 0.0
  %2301 = vmatpush2.msra.mxu0 0.0
  %2302 = vmatprep.subr.mxu0 0.0
  %2303 = vmatpush2.msra.mxu0 0.0
  %2304 = vmatprep.subr.mxu0 0.0
  %2305 = vmatpush2.msra.mxu0 0.0
  %2306 = vmatprep.subr.mxu0 0.0
  %2307 = vmatpush2.msra.mxu0 0.0
  %2308 = vmatprep.subr.mxu0 0.0
  %2309 = vmatpush2.msra.mxu0 0.0
  %2310 = vmatprep.subr.mxu0 0.0
  %2311 = vmatpush2.msra.mxu0 0.0
  %2312 = vmatprep.subr.mxu0 0.0
  %2313 = vmatpush2.msra.mxu0 0.0
  %2314 = vmatprep.subr.mxu0 0.0
  %2315 = vmatpush2.msra.mxu0 0.0
  %2316 = vmatprep.subr.mxu0 0.0
  %2317 = vmatpush2.msra.mxu0 0.0
  %2318 = vmatprep.subr.mxu0 0.0
  %2319 = vmatpush2.msra.mxu0 0.0
  %2320 = vmatprep.subr.mxu0 0.0
  %2321 = vmatpush2.msra.mxu0 0.0
  %2322 = vmatprep.subr.mxu0 0.0
  %2323 = vmatpush2.msra.mxu0 0.0
  %2324 = vmatprep.subr.mxu0 0.0
  %2325 = vmatpush2.msra.mxu0 0.0
  %2326 = vmatprep.subr.mxu0 0.0
  %2327 = vmatpush2.msra.mxu0 0.0
  %2328 = vmatprep.subr.mxu0 0.0
  %2329 = vmatpush2.msra.mxu0 0.0
  %2330 = vmatprep.subr.mxu0 0.0
  %2331 = vmatpush2.msra.mxu0 0.0
  %2332 = vmatprep.mubr.f32.mxu0 0.0
  %2333 = vmatmul.mubr.f32.gmra.mxu0 %v2266
  %v2334 = vpop.f32.mrf.mxu0
  %v2335 = vadd.f32 %v1113, %v2334
  %v2336 = vpop.f32.mrf.mxu0
  %2337 = vdwg.mxu0
  %v2338 = vxor.u32 %v2335, 2147483648
  %v2339 = vmul.f32 %v2338, 1.442695
  %v2340 = vpow.pop %v2339
  %v2341 = vadd.f32 %v2340, 1.0
  %v2342 = vrcp.pop %v2341
  %v2343 = vmul.f32 1.0, %v2342
  %2345 = vrot.lane.b32.xlu0 %v2335, 32
  %v2346 = vpop.permute.xlu0 %2345
  %v2348 = vmul.f32 %v2343, %v2346
  %2350 = vrot.lane.b32.xlu0 %v2348, 64
  %v2351 = vpop.permute.xlu0 %2350
  %v2353 = vadd.f32 %v2335, %v2351
  %v2354 = vtanh.pop %v2353
  %v2355 = vsub.f32 1.0, %v2343
  %2357 = vrot.lane.b32.xlu0 %v2354, 96
  %v2358 = vpop.permute.xlu0 %2357
  %v2360 = vmul.f32 %v2355, %v2358
  %v2361 = vmul.f32 %v2343, %v2154
  %v2362 = vadd.f32 %v2360, %v2361
  %v2363 = vsel %vm641, %v2262, 0
  %2365 = vmatprep.subr.mxu0 0.0
  %2366 = vmatpush1.msra.mxu0 0.0
  %2367 = vmatprep.subr.mxu0 0.0
  %2368 = vmatpush1.msra.mxu0 0.0
  %2369 = vmatprep.subr.mxu0 0.0
  %2370 = vmatpush1.msra.mxu0 0.0
  %2371 = vmatprep.subr.mxu0 0.0
  %2372 = vmatpush1.msra.mxu0 0.0
  %2373 = vmatprep.subr.mxu0 0.0
  %2374 = vmatpush1.msra.mxu0 0.0
  %2375 = vmatprep.subr.mxu0 0.0
  %2376 = vmatpush1.msra.mxu0 0.0
  %2377 = vmatprep.subr.mxu0 0.0
  %2378 = vmatpush1.msra.mxu0 0.0
  %2379 = vmatprep.subr.mxu0 0.0
  %2380 = vmatpush1.msra.mxu0 0.0
  %2381 = vmatprep.subr.mxu0 0.0
  %2382 = vmatpush1.msra.mxu0 0.0
  %2383 = vmatprep.subr.mxu0 0.0
  %2384 = vmatpush1.msra.mxu0 0.0
  %2385 = vmatprep.subr.mxu0 0.0
  %2386 = vmatpush1.msra.mxu0 0.0
  %2387 = vmatprep.subr.mxu0 0.0
  %2388 = vmatpush1.msra.mxu0 0.0
  %2389 = vmatprep.subr.mxu0 0.0
  %2390 = vmatpush1.msra.mxu0 %v1100
  %2391 = vmatprep.subr.mxu0 0.0
  %2392 = vmatpush1.msra.mxu0 %v1099
  %2393 = vmatprep.subr.mxu0 0.0
  %2394 = vmatpush1.msra.mxu0 %v1098
  %2395 = vmatprep.subr.mxu0 0.0
  %2396 = vmatpush1.msra.mxu0 %v1097
  %2397 = vmatprep.subr.mxu0 0.0
  %2398 = vmatpush2.msra.mxu0 0.0
  %2399 = vmatprep.subr.mxu0 0.0
  %2400 = vmatpush2.msra.mxu0 0.0
  %2401 = vmatprep.subr.mxu0 0.0
  %2402 = vmatpush2.msra.mxu0 0.0
  %2403 = vmatprep.subr.mxu0 0.0
  %2404 = vmatpush2.msra.mxu0 0.0
  %2405 = vmatprep.subr.mxu0 0.0
  %2406 = vmatpush2.msra.mxu0 0.0
  %2407 = vmatprep.subr.mxu0 0.0
  %2408 = vmatpush2.msra.mxu0 0.0
  %2409 = vmatprep.subr.mxu0 0.0
  %2410 = vmatpush2.msra.mxu0 0.0
  %2411 = vmatprep.subr.mxu0 0.0
  %2412 = vmatpush2.msra.mxu0 0.0
  %2413 = vmatprep.subr.mxu0 0.0
  %2414 = vmatpush2.msra.mxu0 0.0
  %2415 = vmatprep.subr.mxu0 0.0
  %2416 = vmatpush2.msra.mxu0 0.0
  %2417 = vmatprep.subr.mxu0 0.0
  %2418 = vmatpush2.msra.mxu0 0.0
  %2419 = vmatprep.subr.mxu0 0.0
  %2420 = vmatpush2.msra.mxu0 0.0
  %2421 = vmatprep.subr.mxu0 0.0
  %2422 = vmatpush2.msra.mxu0 0.0
  %2423 = vmatprep.subr.mxu0 0.0
  %2424 = vmatpush2.msra.mxu0 0.0
  %2425 = vmatprep.subr.mxu0 0.0
  %2426 = vmatpush2.msra.mxu0 0.0
  %2427 = vmatprep.subr.mxu0 0.0
  %2428 = vmatpush2.msra.mxu0 0.0
  %2429 = vmatprep.mubr.f32.mxu0 0.0
  %2430 = vmatmul.mubr.f32.gmra.mxu0 %v2363
  %v2431 = vpop.f32.mrf.mxu0
  %v2432 = vadd.f32 0.0, %v2431
  %v2433 = vpop.f32.mrf.mxu0
  %2434 = vdwg.mxu0
  %v2435 = vadd.f32 %v1044, %v2432
  %v2436 = vxor.u32 %v2435, 2147483648
  %v2437 = vmul.f32 %v2436, 1.442695
  %v2438 = vpow.pop %v2437
  %v2439 = vadd.f32 %v2438, 1.0
  %v2440 = vrcp.pop %v2439
  %v2441 = vmul.f32 1.0, %v2440
  %2443 = vrot.lane.b32.xlu0 %v2435, 32
  %v2444 = vpop.permute.xlu0 %2443
  %v2446 = vmul.f32 %v2441, %v2444
  %2448 = vrot.lane.b32.xlu0 %v2446, 64
  %v2449 = vpop.permute.xlu0 %2448
  %v2451 = vadd.f32 %v2435, %v2449
  %v2452 = vtanh.pop %v2451
  %v2453 = vsub.f32 1.0, %v2441
  %2455 = vrot.lane.b32.xlu0 %v2452, 96
  %v2456 = vpop.permute.xlu0 %2455
  %v2458 = vmul.f32 %v2453, %v2456
  %v2459 = vmul.f32 %v2441, %v2252
  %v2460 = vadd.f32 %v2458, %v2459
  %v2463 = vunpack.c.l.s4 1983009808
  %v2464 = vunpack.c.0.s8 %v2463
  %v2465 = vlaneseq
  %v2466 = vshrl.u32 %v2465, 7
  %v2467 = vsub.s32 %v2464, %v2466
  %v2468 = vrot.slane %v2460, %v2467
  %2469 = vrot.lane.b32.xlu0 %v2468, 96
  %v2470 = vpop.permute.xlu0 %2469
  %v2472 = vsel %vm641, %v2470, %v2362
  %v2474 = vsel %vm1224, %v2472, 0
  %2476 = vmatprep.subr.mxu0 0.0
  %2477 = vmatpush1.msra.mxu0 0.0
  %2478 = vmatprep.subr.mxu0 0.0
  %2479 = vmatpush1.msra.mxu0 0.0
  %2480 = vmatprep.subr.mxu0 0.0
  %2481 = vmatpush1.msra.mxu0 0.0
  %2482 = vmatprep.subr.mxu0 0.0
  %2483 = vmatpush1.msra.mxu0 0.0
  %2484 = vmatprep.subr.mxu0 0.0
  %2485 = vmatpush1.msra.mxu0 0.0
  %2486 = vmatprep.subr.mxu0 0.0
  %2487 = vmatpush1.msra.mxu0 0.0
  %2488 = vmatprep.subr.mxu0 0.0
  %2489 = vmatpush1.msra.mxu0 0.0
  %2490 = vmatprep.subr.mxu0 0.0
  %2491 = vmatpush1.msra.mxu0 0.0
  %2492 = vmatprep.subr.mxu0 0.0
  %2493 = vmatpush1.msra.mxu0 %v1108
  %2494 = vmatprep.subr.mxu0 0.0
  %2495 = vmatpush1.msra.mxu0 %v1107
  %2496 = vmatprep.subr.mxu0 0.0
  %2497 = vmatpush1.msra.mxu0 %v1106
  %2498 = vmatprep.subr.mxu0 0.0
  %2499 = vmatpush1.msra.mxu0 %v1105
  %2500 = vmatprep.subr.mxu0 0.0
  %2501 = vmatpush1.msra.mxu0 %v1104
  %2502 = vmatprep.subr.mxu0 0.0
  %2503 = vmatpush1.msra.mxu0 %v1103
  %2504 = vmatprep.subr.mxu0 0.0
  %2505 = vmatpush1.msra.mxu0 %v1102
  %2506 = vmatprep.subr.mxu0 0.0
  %2507 = vmatpush1.msra.mxu0 %v1101
  %2508 = vmatprep.subr.mxu0 0.0
  %2509 = vmatpush2.msra.mxu0 0.0
  %2510 = vmatprep.subr.mxu0 0.0
  %2511 = vmatpush2.msra.mxu0 0.0
  %2512 = vmatprep.subr.mxu0 0.0
  %2513 = vmatpush2.msra.mxu0 0.0
  %2514 = vmatprep.subr.mxu0 0.0
  %2515 = vmatpush2.msra.mxu0 0.0
  %2516 = vmatprep.subr.mxu0 0.0
  %2517 = vmatpush2.msra.mxu0 0.0
  %2518 = vmatprep.subr.mxu0 0.0
  %2519 = vmatpush2.msra.mxu0 0.0
  %2520 = vmatprep.subr.mxu0 0.0
  %2521 = vmatpush2.msra.mxu0 0.0
  %2522 = vmatprep.subr.mxu0 0.0
  %2523 = vmatpush2.msra.mxu0 0.0
  %2524 = vmatprep.subr.mxu0 0.0
  %2525 = vmatpush2.msra.mxu0 0.0
  %2526 = vmatprep.subr.mxu0 0.0
  %2527 = vmatpush2.msra.mxu0 0.0
  %2528 = vmatprep.subr.mxu0 0.0
  %2529 = vmatpush2.msra.mxu0 0.0
  %2530 = vmatprep.subr.mxu0 0.0
  %2531 = vmatpush2.msra.mxu0 0.0
  %2532 = vmatprep.subr.mxu0 0.0
  %2533 = vmatpush2.msra.mxu0 0.0
  %2534 = vmatprep.subr.mxu0 0.0
  %2535 = vmatpush2.msra.mxu0 0.0
  %2536 = vmatprep.subr.mxu0 0.0
  %2537 = vmatpush2.msra.mxu0 0.0
  %2538 = vmatprep.subr.mxu0 0.0
  %2539 = vmatpush2.msra.mxu0 0.0
  %2540 = vmatprep.mubr.f32.mxu0 0.0
  %2541 = vmatmul.mubr.f32.gmra.mxu0 %v2474
  %v2542 = vpop.f32.mrf.mxu0
  %v2543 = vadd.f32 %v1113, %v2542
  %v2544 = vpop.f32.mrf.mxu0
  %2545 = vdwg.mxu0
  %v2546 = vxor.u32 %v2543, 2147483648
  %v2547 = vmul.f32 %v2546, 1.442695
  %v2548 = vpow.pop %v2547
  %v2549 = vadd.f32 %v2548, 1.0
  %v2550 = vrcp.pop %v2549
  %v2551 = vmul.f32 1.0, %v2550
  %2553 = vrot.lane.b32.xlu0 %v2543, 32
  %v2554 = vpop.permute.xlu0 %2553
  %v2556 = vmul.f32 %v2551, %v2554
  %2558 = vrot.lane.b32.xlu0 %v2556, 64
  %v2559 = vpop.permute.xlu0 %2558
  %v2561 = vadd.f32 %v2543, %v2559
  %v2562 = vtanh.pop %v2561
  %v2563 = vsub.f32 1.0, %v2551
  %2565 = vrot.lane.b32.xlu0 %v2562, 96
  %v2566 = vpop.permute.xlu0 %2565
  %v2568 = vmul.f32 %v2563, %v2566
  %v2569 = vmul.f32 %v2551, %v2362
  %v2570 = vadd.f32 %v2568, %v2569
  %v2571 = vsel %vm641, %v2470, 0
  %2573 = vmatprep.subr.mxu0 0.0
  %2574 = vmatpush1.msra.mxu0 0.0
  %2575 = vmatprep.subr.mxu0 0.0
  %2576 = vmatpush1.msra.mxu0 0.0
  %2577 = vmatprep.subr.mxu0 0.0
  %2578 = vmatpush1.msra.mxu0 0.0
  %2579 = vmatprep.subr.mxu0 0.0
  %2580 = vmatpush1.msra.mxu0 0.0
  %2581 = vmatprep.subr.mxu0 0.0
  %2582 = vmatpush1.msra.mxu0 0.0
  %2583 = vmatprep.subr.mxu0 0.0
  %2584 = vmatpush1.msra.mxu0 0.0
  %2585 = vmatprep.subr.mxu0 0.0
  %2586 = vmatpush1.msra.mxu0 0.0
  %2587 = vmatprep.subr.mxu0 0.0
  %2588 = vmatpush1.msra.mxu0 0.0
  %2589 = vmatprep.subr.mxu0 0.0
  %2590 = vmatpush1.msra.mxu0 0.0
  %2591 = vmatprep.subr.mxu0 0.0
  %2592 = vmatpush1.msra.mxu0 0.0
  %2593 = vmatprep.subr.mxu0 0.0
  %2594 = vmatpush1.msra.mxu0 0.0
  %2595 = vmatprep.subr.mxu0 0.0
  %2596 = vmatpush1.msra.mxu0 0.0
  %2597 = vmatprep.subr.mxu0 0.0
  %2598 = vmatpush1.msra.mxu0 %v1100
  %2599 = vmatprep.subr.mxu0 0.0
  %2600 = vmatpush1.msra.mxu0 %v1099
  %2601 = vmatprep.subr.mxu0 0.0
  %2602 = vmatpush1.msra.mxu0 %v1098
  %2603 = vmatprep.subr.mxu0 0.0
  %2604 = vmatpush1.msra.mxu0 %v1097
  %2605 = vmatprep.subr.mxu0 0.0
  %2606 = vmatpush2.msra.mxu0 0.0
  %2607 = vmatprep.subr.mxu0 0.0
  %2608 = vmatpush2.msra.mxu0 0.0
  %2609 = vmatprep.subr.mxu0 0.0
  %2610 = vmatpush2.msra.mxu0 0.0
  %2611 = vmatprep.subr.mxu0 0.0
  %2612 = vmatpush2.msra.mxu0 0.0
  %2613 = vmatprep.subr.mxu0 0.0
  %2614 = vmatpush2.msra.mxu0 0.0
  %2615 = vmatprep.subr.mxu0 0.0
  %2616 = vmatpush2.msra.mxu0 0.0
  %2617 = vmatprep.subr.mxu0 0.0
  %2618 = vmatpush2.msra.mxu0 0.0
  %2619 = vmatprep.subr.mxu0 0.0
  %2620 = vmatpush2.msra.mxu0 0.0
  %2621 = vmatprep.subr.mxu0 0.0
  %2622 = vmatpush2.msra.mxu0 0.0
  %2623 = vmatprep.subr.mxu0 0.0
  %2624 = vmatpush2.msra.mxu0 0.0
  %2625 = vmatprep.subr.mxu0 0.0
  %2626 = vmatpush2.msra.mxu0 0.0
  %2627 = vmatprep.subr.mxu0 0.0
  %2628 = vmatpush2.msra.mxu0 0.0
  %2629 = vmatprep.subr.mxu0 0.0
  %2630 = vmatpush2.msra.mxu0 0.0
  %2631 = vmatprep.subr.mxu0 0.0
  %2632 = vmatpush2.msra.mxu0 0.0
  %2633 = vmatprep.subr.mxu0 0.0
  %2634 = vmatpush2.msra.mxu0 0.0
  %2635 = vmatprep.subr.mxu0 0.0
  %2636 = vmatpush2.msra.mxu0 0.0
  %2637 = vmatprep.mubr.f32.mxu0 0.0
  %2638 = vmatmul.mubr.f32.gmra.mxu0 %v2571
  %v2639 = vpop.f32.mrf.mxu0
  %v2640 = vadd.f32 0.0, %v2639
  %v2641 = vpop.f32.mrf.mxu0
  %2642 = vdwg.mxu0
  %v2643 = vadd.f32 %v1046, %v2640
  %v2644 = vxor.u32 %v2643, 2147483648
  %v2645 = vmul.f32 %v2644, 1.442695
  %v2646 = vpow.pop %v2645
  %v2647 = vadd.f32 %v2646, 1.0
  %v2648 = vrcp.pop %v2647
  %v2649 = vmul.f32 1.0, %v2648
  %2651 = vrot.lane.b32.xlu0 %v2643, 32
  %v2652 = vpop.permute.xlu0 %2651
  %v2654 = vmul.f32 %v2649, %v2652
  %2656 = vrot.lane.b32.xlu0 %v2654, 64
  %v2657 = vpop.permute.xlu0 %2656
  %v2659 = vadd.f32 %v2643, %v2657
  %v2660 = vtanh.pop %v2659
  %v2661 = vsub.f32 1.0, %v2649
  %2663 = vrot.lane.b32.xlu0 %v2660, 96
  %v2664 = vpop.permute.xlu0 %2663
  %v2666 = vmul.f32 %v2661, %v2664
  %v2667 = vmul.f32 %v2649, %v2460
  %v2668 = vadd.f32 %v2666, %v2667
  %v2671 = vunpack.c.l.s4 1983009808
  %v2672 = vunpack.c.0.s8 %v2671
  %v2673 = vlaneseq
  %v2674 = vshrl.u32 %v2673, 7
  %v2675 = vsub.s32 %v2672, %v2674
  %v2676 = vrot.slane %v2668, %v2675
  %2677 = vrot.lane.b32.xlu0 %v2676, 96
  %v2678 = vpop.permute.xlu0 %2677
  %v2680 = vsel %vm641, %v2678, %v2570
  %v2682 = vsel %vm1224, %v2680, 0
  %2684 = vmatprep.subr.mxu0 0.0
  %2685 = vmatpush1.msra.mxu0 0.0
  %2686 = vmatprep.subr.mxu0 0.0
  %2687 = vmatpush1.msra.mxu0 0.0
  %2688 = vmatprep.subr.mxu0 0.0
  %2689 = vmatpush1.msra.mxu0 0.0
  %2690 = vmatprep.subr.mxu0 0.0
  %2691 = vmatpush1.msra.mxu0 0.0
  %2692 = vmatprep.subr.mxu0 0.0
  %2693 = vmatpush1.msra.mxu0 0.0
  %2694 = vmatprep.subr.mxu0 0.0
  %2695 = vmatpush1.msra.mxu0 0.0
  %2696 = vmatprep.subr.mxu0 0.0
  %2697 = vmatpush1.msra.mxu0 0.0
  %2698 = vmatprep.subr.mxu0 0.0
  %2699 = vmatpush1.msra.mxu0 0.0
  %2700 = vmatprep.subr.mxu0 0.0
  %2701 = vmatpush1.msra.mxu0 %v1108
  %2702 = vmatprep.subr.mxu0 0.0
  %2703 = vmatpush1.msra.mxu0 %v1107
  %2704 = vmatprep.subr.mxu0 0.0
  %2705 = vmatpush1.msra.mxu0 %v1106
  %2706 = vmatprep.subr.mxu0 0.0
  %2707 = vmatpush1.msra.mxu0 %v1105
  %2708 = vmatprep.subr.mxu0 0.0
  %2709 = vmatpush1.msra.mxu0 %v1104
  %2710 = vmatprep.subr.mxu0 0.0
  %2711 = vmatpush1.msra.mxu0 %v1103
  %2712 = vmatprep.subr.mxu0 0.0
  %2713 = vmatpush1.msra.mxu0 %v1102
  %2714 = vmatprep.subr.mxu0 0.0
  %2715 = vmatpush1.msra.mxu0 %v1101
  %2716 = vmatprep.subr.mxu0 0.0
  %2717 = vmatpush2.msra.mxu0 0.0
  %2718 = vmatprep.subr.mxu0 0.0
  %2719 = vmatpush2.msra.mxu0 0.0
  %2720 = vmatprep.subr.mxu0 0.0
  %2721 = vmatpush2.msra.mxu0 0.0
  %2722 = vmatprep.subr.mxu0 0.0
  %2723 = vmatpush2.msra.mxu0 0.0
  %2724 = vmatprep.subr.mxu0 0.0
  %2725 = vmatpush2.msra.mxu0 0.0
  %2726 = vmatprep.subr.mxu0 0.0
  %2727 = vmatpush2.msra.mxu0 0.0
  %2728 = vmatprep.subr.mxu0 0.0
  %2729 = vmatpush2.msra.mxu0 0.0
  %2730 = vmatprep.subr.mxu0 0.0
  %2731 = vmatpush2.msra.mxu0 0.0
  %2732 = vmatprep.subr.mxu0 0.0
  %2733 = vmatpush2.msra.mxu0 0.0
  %2734 = vmatprep.subr.mxu0 0.0
  %2735 = vmatpush2.msra.mxu0 0.0
  %2736 = vmatprep.subr.mxu0 0.0
  %2737 = vmatpush2.msra.mxu0 0.0
  %2738 = vmatprep.subr.mxu0 0.0
  %2739 = vmatpush2.msra.mxu0 0.0
  %2740 = vmatprep.subr.mxu0 0.0
  %2741 = vmatpush2.msra.mxu0 0.0
  %2742 = vmatprep.subr.mxu0 0.0
  %2743 = vmatpush2.msra.mxu0 0.0
  %2744 = vmatprep.subr.mxu0 0.0
  %2745 = vmatpush2.msra.mxu0 0.0
  %2746 = vmatprep.subr.mxu0 0.0
  %2747 = vmatpush2.msra.mxu0 0.0
  %2748 = vmatprep.mubr.f32.mxu0 0.0
  %2749 = vmatmul.mubr.f32.gmra.mxu0 %v2682
  %v2750 = vpop.f32.mrf.mxu0
  %v2751 = vadd.f32 %v1113, %v2750
  %v2752 = vpop.f32.mrf.mxu0
  %2753 = vdwg.mxu0
  %v2754 = vxor.u32 %v2751, 2147483648
  %v2755 = vmul.f32 %v2754, 1.442695
  %v2756 = vpow.pop %v2755
  %v2757 = vadd.f32 %v2756, 1.0
  %v2758 = vrcp.pop %v2757
  %v2759 = vmul.f32 1.0, %v2758
  %2761 = vrot.lane.b32.xlu0 %v2751, 32
  %v2762 = vpop.permute.xlu0 %2761
  %v2764 = vmul.f32 %v2759, %v2762
  %2766 = vrot.lane.b32.xlu0 %v2764, 64
  %v2767 = vpop.permute.xlu0 %2766
  %v2769 = vadd.f32 %v2751, %v2767
  %v2770 = vtanh.pop %v2769
  %v2771 = vsub.f32 1.0, %v2759
  %2773 = vrot.lane.b32.xlu0 %v2770, 96
  %v2774 = vpop.permute.xlu0 %2773
  %v2776 = vmul.f32 %v2771, %v2774
  %v2777 = vmul.f32 %v2759, %v2570
  %v2778 = vadd.f32 %v2776, %v2777
  %v2779 = vsel %vm641, %v2678, 0
  %2781 = vmatprep.subr.mxu0 0.0
  %2782 = vmatpush1.msra.mxu0 0.0
  %2783 = vmatprep.subr.mxu0 0.0
  %2784 = vmatpush1.msra.mxu0 0.0
  %2785 = vmatprep.subr.mxu0 0.0
  %2786 = vmatpush1.msra.mxu0 0.0
  %2787 = vmatprep.subr.mxu0 0.0
  %2788 = vmatpush1.msra.mxu0 0.0
  %2789 = vmatprep.subr.mxu0 0.0
  %2790 = vmatpush1.msra.mxu0 0.0
  %2791 = vmatprep.subr.mxu0 0.0
  %2792 = vmatpush1.msra.mxu0 0.0
  %2793 = vmatprep.subr.mxu0 0.0
  %2794 = vmatpush1.msra.mxu0 0.0
  %2795 = vmatprep.subr.mxu0 0.0
  %2796 = vmatpush1.msra.mxu0 0.0
  %2797 = vmatprep.subr.mxu0 0.0
  %2798 = vmatpush1.msra.mxu0 0.0
  %2799 = vmatprep.subr.mxu0 0.0
  %2800 = vmatpush1.msra.mxu0 0.0
  %2801 = vmatprep.subr.mxu0 0.0
  %2802 = vmatpush1.msra.mxu0 0.0
  %2803 = vmatprep.subr.mxu0 0.0
  %2804 = vmatpush1.msra.mxu0 0.0
  %2805 = vmatprep.subr.mxu0 0.0
  %2806 = vmatpush1.msra.mxu0 %v1100
  %2807 = vmatprep.subr.mxu0 0.0
  %2808 = vmatpush1.msra.mxu0 %v1099
  %2809 = vmatprep.subr.mxu0 0.0
  %2810 = vmatpush1.msra.mxu0 %v1098
  %2811 = vmatprep.subr.mxu0 0.0
  %2812 = vmatpush1.msra.mxu0 %v1097
  %2813 = vmatprep.subr.mxu0 0.0
  %2814 = vmatpush2.msra.mxu0 0.0
  %2815 = vmatprep.subr.mxu0 0.0
  %2816 = vmatpush2.msra.mxu0 0.0
  %2817 = vmatprep.subr.mxu0 0.0
  %2818 = vmatpush2.msra.mxu0 0.0
  %2819 = vmatprep.subr.mxu0 0.0
  %2820 = vmatpush2.msra.mxu0 0.0
  %2821 = vmatprep.subr.mxu0 0.0
  %2822 = vmatpush2.msra.mxu0 0.0
  %2823 = vmatprep.subr.mxu0 0.0
  %2824 = vmatpush2.msra.mxu0 0.0
  %2825 = vmatprep.subr.mxu0 0.0
  %2826 = vmatpush2.msra.mxu0 0.0
  %2827 = vmatprep.subr.mxu0 0.0
  %2828 = vmatpush2.msra.mxu0 0.0
  %2829 = vmatprep.subr.mxu0 0.0
  %2830 = vmatpush2.msra.mxu0 0.0
  %2831 = vmatprep.subr.mxu0 0.0
  %2832 = vmatpush2.msra.mxu0 0.0
  %2833 = vmatprep.subr.mxu0 0.0
  %2834 = vmatpush2.msra.mxu0 0.0
  %2835 = vmatprep.subr.mxu0 0.0
  %2836 = vmatpush2.msra.mxu0 0.0
  %2837 = vmatprep.subr.mxu0 0.0
  %2838 = vmatpush2.msra.mxu0 0.0
  %2839 = vmatprep.subr.mxu0 0.0
  %2840 = vmatpush2.msra.mxu0 0.0
  %2841 = vmatprep.subr.mxu0 0.0
  %2842 = vmatpush2.msra.mxu0 0.0
  %2843 = vmatprep.subr.mxu0 0.0
  %2844 = vmatpush2.msra.mxu0 0.0
  %2845 = vmatprep.mubr.f32.mxu0 0.0
  %2846 = vmatmul.mubr.f32.gmra.mxu0 %v2779
  %v2847 = vpop.f32.mrf.mxu0
  %v2848 = vadd.f32 0.0, %v2847
  %v2849 = vpop.f32.mrf.mxu0
  %2850 = vdwg.mxu0
  %v2851 = vadd.f32 %v1054, %v2848
  %v2852 = vxor.u32 %v2851, 2147483648
  %v2853 = vmul.f32 %v2852, 1.442695
  %v2854 = vpow.pop %v2853
  %v2855 = vadd.f32 %v2854, 1.0
  %v2856 = vrcp.pop %v2855
  %v2857 = vmul.f32 1.0, %v2856
  %2859 = vrot.lane.b32.xlu0 %v2851, 32
  %v2860 = vpop.permute.xlu0 %2859
  %v2862 = vmul.f32 %v2857, %v2860
  %2864 = vrot.lane.b32.xlu0 %v2862, 64
  %v2865 = vpop.permute.xlu0 %2864
  %v2867 = vadd.f32 %v2851, %v2865
  %v2868 = vtanh.pop %v2867
  %v2869 = vsub.f32 1.0, %v2857
  %2871 = vrot.lane.b32.xlu0 %v2868, 96
  %v2872 = vpop.permute.xlu0 %2871
  %v2874 = vmul.f32 %v2869, %v2872
  %v2875 = vmul.f32 %v2857, %v2668
  %v2876 = vadd.f32 %v2874, %v2875
  %v2879 = vunpack.c.l.s4 1983009808
  %v2880 = vunpack.c.0.s8 %v2879
  %v2881 = vlaneseq
  %v2882 = vshrl.u32 %v2881, 7
  %v2883 = vsub.s32 %v2880, %v2882
  %v2884 = vrot.slane %v2876, %v2883
  %2885 = vrot.lane.b32.xlu0 %v2884, 96
  %v2886 = vpop.permute.xlu0 %2885
  %v2888 = vsel %vm641, %v2886, %v2778
  %v2890 = vsel %vm1224, %v2888, 0
  %2892 = vmatprep.subr.mxu0 0.0
  %2893 = vmatpush1.msra.mxu0 0.0
  %2894 = vmatprep.subr.mxu0 0.0
  %2895 = vmatpush1.msra.mxu0 0.0
  %2896 = vmatprep.subr.mxu0 0.0
  %2897 = vmatpush1.msra.mxu0 0.0
  %2898 = vmatprep.subr.mxu0 0.0
  %2899 = vmatpush1.msra.mxu0 0.0
  %2900 = vmatprep.subr.mxu0 0.0
  %2901 = vmatpush1.msra.mxu0 0.0
  %2902 = vmatprep.subr.mxu0 0.0
  %2903 = vmatpush1.msra.mxu0 0.0
  %2904 = vmatprep.subr.mxu0 0.0
  %2905 = vmatpush1.msra.mxu0 0.0
  %2906 = vmatprep.subr.mxu0 0.0
  %2907 = vmatpush1.msra.mxu0 0.0
  %2908 = vmatprep.subr.mxu0 0.0
  %2909 = vmatpush1.msra.mxu0 %v1108
  %2910 = vmatprep.subr.mxu0 0.0
  %2911 = vmatpush1.msra.mxu0 %v1107
  %2912 = vmatprep.subr.mxu0 0.0
  %2913 = vmatpush1.msra.mxu0 %v1106
  %2914 = vmatprep.subr.mxu0 0.0
  %2915 = vmatpush1.msra.mxu0 %v1105
  %2916 = vmatprep.subr.mxu0 0.0
  %2917 = vmatpush1.msra.mxu0 %v1104
  %2918 = vmatprep.subr.mxu0 0.0
  %2919 = vmatpush1.msra.mxu0 %v1103
  %2920 = vmatprep.subr.mxu0 0.0
  %2921 = vmatpush1.msra.mxu0 %v1102
  %2922 = vmatprep.subr.mxu0 0.0
  %2923 = vmatpush1.msra.mxu0 %v1101
  %2924 = vmatprep.subr.mxu0 0.0
  %2925 = vmatpush2.msra.mxu0 0.0
  %2926 = vmatprep.subr.mxu0 0.0
  %2927 = vmatpush2.msra.mxu0 0.0
  %2928 = vmatprep.subr.mxu0 0.0
  %2929 = vmatpush2.msra.mxu0 0.0
  %2930 = vmatprep.subr.mxu0 0.0
  %2931 = vmatpush2.msra.mxu0 0.0
  %2932 = vmatprep.subr.mxu0 0.0
  %2933 = vmatpush2.msra.mxu0 0.0
  %2934 = vmatprep.subr.mxu0 0.0
  %2935 = vmatpush2.msra.mxu0 0.0
  %2936 = vmatprep.subr.mxu0 0.0
  %2937 = vmatpush2.msra.mxu0 0.0
  %2938 = vmatprep.subr.mxu0 0.0
  %2939 = vmatpush2.msra.mxu0 0.0
  %2940 = vmatprep.subr.mxu0 0.0
  %2941 = vmatpush2.msra.mxu0 0.0
  %2942 = vmatprep.subr.mxu0 0.0
  %2943 = vmatpush2.msra.mxu0 0.0
  %2944 = vmatprep.subr.mxu0 0.0
  %2945 = vmatpush2.msra.mxu0 0.0
  %2946 = vmatprep.subr.mxu0 0.0
  %2947 = vmatpush2.msra.mxu0 0.0
  %2948 = vmatprep.subr.mxu0 0.0
  %2949 = vmatpush2.msra.mxu0 0.0
  %2950 = vmatprep.subr.mxu0 0.0
  %2951 = vmatpush2.msra.mxu0 0.0
  %2952 = vmatprep.subr.mxu0 0.0
  %2953 = vmatpush2.msra.mxu0 0.0
  %2954 = vmatprep.subr.mxu0 0.0
  %2955 = vmatpush2.msra.mxu0 0.0
  %2956 = vmatprep.mubr.f32.mxu0 0.0
  %2957 = vmatmul.mubr.f32.gmra.mxu0 %v2890
  %v2958 = vpop.f32.mrf.mxu0
  %v2959 = vadd.f32 %v1113, %v2958
  %v2960 = vpop.f32.mrf.mxu0
  %2961 = vdwg.mxu0
  %v2962 = vxor.u32 %v2959, 2147483648
  %v2963 = vmul.f32 %v2962, 1.442695
  %v2964 = vpow.pop %v2963
  %v2965 = vadd.f32 %v2964, 1.0
  %v2966 = vrcp.pop %v2965
  %v2967 = vmul.f32 1.0, %v2966
  %2969 = vrot.lane.b32.xlu0 %v2959, 32
  %v2970 = vpop.permute.xlu0 %2969
  %v2972 = vmul.f32 %v2967, %v2970
  %2974 = vrot.lane.b32.xlu0 %v2972, 64
  %v2975 = vpop.permute.xlu0 %2974
  %v2977 = vadd.f32 %v2959, %v2975
  %v2978 = vtanh.pop %v2977
  %v2979 = vsub.f32 1.0, %v2967
  %2981 = vrot.lane.b32.xlu0 %v2978, 96
  %v2982 = vpop.permute.xlu0 %2981
  %v2984 = vmul.f32 %v2979, %v2982
  %v2985 = vmul.f32 %v2967, %v2778
  %v2986 = vadd.f32 %v2984, %v2985
  %v2987 = vsel %vm641, %v2886, 0
  %2989 = vmatprep.subr.mxu0 0.0
  %2990 = vmatpush1.msra.mxu0 0.0
  %2991 = vmatprep.subr.mxu0 0.0
  %2992 = vmatpush1.msra.mxu0 0.0
  %2993 = vmatprep.subr.mxu0 0.0
  %2994 = vmatpush1.msra.mxu0 0.0
  %2995 = vmatprep.subr.mxu0 0.0
  %2996 = vmatpush1.msra.mxu0 0.0
  %2997 = vmatprep.subr.mxu0 0.0
  %2998 = vmatpush1.msra.mxu0 0.0
  %2999 = vmatprep.subr.mxu0 0.0
  %3000 = vmatpush1.msra.mxu0 0.0
  %3001 = vmatprep.subr.mxu0 0.0
  %3002 = vmatpush1.msra.mxu0 0.0
  %3003 = vmatprep.subr.mxu0 0.0
  %3004 = vmatpush1.msra.mxu0 0.0
  %3005 = vmatprep.subr.mxu0 0.0
  %3006 = vmatpush1.msra.mxu0 0.0
  %3007 = vmatprep.subr.mxu0 0.0
  %3008 = vmatpush1.msra.mxu0 0.0
  %3009 = vmatprep.subr.mxu0 0.0
  %3010 = vmatpush1.msra.mxu0 0.0
  %3011 = vmatprep.subr.mxu0 0.0
  %3012 = vmatpush1.msra.mxu0 0.0
  %3013 = vmatprep.subr.mxu0 0.0
  %3014 = vmatpush1.msra.mxu0 %v1100
  %3015 = vmatprep.subr.mxu0 0.0
  %3016 = vmatpush1.msra.mxu0 %v1099
  %3017 = vmatprep.subr.mxu0 0.0
  %3018 = vmatpush1.msra.mxu0 %v1098
  %3019 = vmatprep.subr.mxu0 0.0
  %3020 = vmatpush1.msra.mxu0 %v1097
  %3021 = vmatprep.subr.mxu0 0.0
  %3022 = vmatpush2.msra.mxu0 0.0
  %3023 = vmatprep.subr.mxu0 0.0
  %3024 = vmatpush2.msra.mxu0 0.0
  %3025 = vmatprep.subr.mxu0 0.0
  %3026 = vmatpush2.msra.mxu0 0.0
  %3027 = vmatprep.subr.mxu0 0.0
  %3028 = vmatpush2.msra.mxu0 0.0
  %3029 = vmatprep.subr.mxu0 0.0
  %3030 = vmatpush2.msra.mxu0 0.0
  %3031 = vmatprep.subr.mxu0 0.0
  %3032 = vmatpush2.msra.mxu0 0.0
  %3033 = vmatprep.subr.mxu0 0.0
  %3034 = vmatpush2.msra.mxu0 0.0
  %3035 = vmatprep.subr.mxu0 0.0
  %3036 = vmatpush2.msra.mxu0 0.0
  %3037 = vmatprep.subr.mxu0 0.0
  %3038 = vmatpush2.msra.mxu0 0.0
  %3039 = vmatprep.subr.mxu0 0.0
  %3040 = vmatpush2.msra.mxu0 0.0
  %3041 = vmatprep.subr.mxu0 0.0
  %3042 = vmatpush2.msra.mxu0 0.0
  %3043 = vmatprep.subr.mxu0 0.0
  %3044 = vmatpush2.msra.mxu0 0.0
  %3045 = vmatprep.subr.mxu0 0.0
  %3046 = vmatpush2.msra.mxu0 0.0
  %3047 = vmatprep.subr.mxu0 0.0
  %3048 = vmatpush2.msra.mxu0 0.0
  %3049 = vmatprep.subr.mxu0 0.0
  %3050 = vmatpush2.msra.mxu0 0.0
  %3051 = vmatprep.subr.mxu0 0.0
  %3052 = vmatpush2.msra.mxu0 0.0
  %3053 = vmatprep.mubr.f32.mxu0 0.0
  %3054 = vmatmul.mubr.f32.gmra.mxu0 %v2987
  %v3055 = vpop.f32.mrf.mxu0
  %v3056 = vadd.f32 0.0, %v3055
  %v3057 = vpop.f32.mrf.mxu0
  %3058 = vdwg.mxu0
  %v3059 = vadd.f32 %v1062, %v3056
  %v3060 = vxor.u32 %v3059, 2147483648
  %v3061 = vmul.f32 %v3060, 1.442695
  %v3062 = vpow.pop %v3061
  %v3063 = vadd.f32 %v3062, 1.0
  %v3064 = vrcp.pop %v3063
  %v3065 = vmul.f32 1.0, %v3064
  %3067 = vrot.lane.b32.xlu0 %v3059, 32
  %v3068 = vpop.permute.xlu0 %3067
  %v3070 = vmul.f32 %v3065, %v3068
  %3072 = vrot.lane.b32.xlu0 %v3070, 64
  %v3073 = vpop.permute.xlu0 %3072
  %v3075 = vadd.f32 %v3059, %v3073
  %v3076 = vtanh.pop %v3075
  %v3077 = vsub.f32 1.0, %v3065
  %3079 = vrot.lane.b32.xlu0 %v3076, 96
  %v3080 = vpop.permute.xlu0 %3079
  %v3082 = vmul.f32 %v3077, %v3080
  %v3083 = vmul.f32 %v3065, %v2876
  %v3084 = vadd.f32 %v3082, %v3083
  %v3087 = vunpack.c.l.s4 1983009808
  %v3088 = vunpack.c.0.s8 %v3087
  %v3089 = vlaneseq
  %v3090 = vshrl.u32 %v3089, 7
  %v3091 = vsub.s32 %v3088, %v3090
  %v3092 = vrot.slane %v3084, %v3091
  %3093 = vrot.lane.b32.xlu0 %v3092, 96
  %v3094 = vpop.permute.xlu0 %3093
  %v3096 = vsel %vm641, %v3094, %v2986
  %v3098 = vsel %vm1224, %v3096, 0
  %3100 = vmatprep.subr.mxu0 0.0
  %3101 = vmatpush1.msra.mxu0 0.0
  %3102 = vmatprep.subr.mxu0 0.0
  %3103 = vmatpush1.msra.mxu0 0.0
  %3104 = vmatprep.subr.mxu0 0.0
  %3105 = vmatpush1.msra.mxu0 0.0
  %3106 = vmatprep.subr.mxu0 0.0
  %3107 = vmatpush1.msra.mxu0 0.0
  %3108 = vmatprep.subr.mxu0 0.0
  %3109 = vmatpush1.msra.mxu0 0.0
  %3110 = vmatprep.subr.mxu0 0.0
  %3111 = vmatpush1.msra.mxu0 0.0
  %3112 = vmatprep.subr.mxu0 0.0
  %3113 = vmatpush1.msra.mxu0 0.0
  %3114 = vmatprep.subr.mxu0 0.0
  %3115 = vmatpush1.msra.mxu0 0.0
  %3116 = vmatprep.subr.mxu0 0.0
  %3117 = vmatpush1.msra.mxu0 %v1108
  %3118 = vmatprep.subr.mxu0 0.0
  %3119 = vmatpush1.msra.mxu0 %v1107
  %3120 = vmatprep.subr.mxu0 0.0
  %3121 = vmatpush1.msra.mxu0 %v1106
  %3122 = vmatprep.subr.mxu0 0.0
  %3123 = vmatpush1.msra.mxu0 %v1105
  %3124 = vmatprep.subr.mxu0 0.0
  %3125 = vmatpush1.msra.mxu0 %v1104
  %3126 = vmatprep.subr.mxu0 0.0
  %3127 = vmatpush1.msra.mxu0 %v1103
  %3128 = vmatprep.subr.mxu0 0.0
  %3129 = vmatpush1.msra.mxu0 %v1102
  %3130 = vmatprep.subr.mxu0 0.0
  %3131 = vmatpush1.msra.mxu0 %v1101
  %3132 = vmatprep.subr.mxu0 0.0
  %3133 = vmatpush2.msra.mxu0 0.0
  %3134 = vmatprep.subr.mxu0 0.0
  %3135 = vmatpush2.msra.mxu0 0.0
  %3136 = vmatprep.subr.mxu0 0.0
  %3137 = vmatpush2.msra.mxu0 0.0
  %3138 = vmatprep.subr.mxu0 0.0
  %3139 = vmatpush2.msra.mxu0 0.0
  %3140 = vmatprep.subr.mxu0 0.0
  %3141 = vmatpush2.msra.mxu0 0.0
  %3142 = vmatprep.subr.mxu0 0.0
  %3143 = vmatpush2.msra.mxu0 0.0
  %3144 = vmatprep.subr.mxu0 0.0
  %3145 = vmatpush2.msra.mxu0 0.0
  %3146 = vmatprep.subr.mxu0 0.0
  %3147 = vmatpush2.msra.mxu0 0.0
  %3148 = vmatprep.subr.mxu0 0.0
  %3149 = vmatpush2.msra.mxu0 0.0
  %3150 = vmatprep.subr.mxu0 0.0
  %3151 = vmatpush2.msra.mxu0 0.0
  %3152 = vmatprep.subr.mxu0 0.0
  %3153 = vmatpush2.msra.mxu0 0.0
  %3154 = vmatprep.subr.mxu0 0.0
  %3155 = vmatpush2.msra.mxu0 0.0
  %3156 = vmatprep.subr.mxu0 0.0
  %3157 = vmatpush2.msra.mxu0 0.0
  %3158 = vmatprep.subr.mxu0 0.0
  %3159 = vmatpush2.msra.mxu0 0.0
  %3160 = vmatprep.subr.mxu0 0.0
  %3161 = vmatpush2.msra.mxu0 0.0
  %3162 = vmatprep.subr.mxu0 0.0
  %3163 = vmatpush2.msra.mxu0 0.0
  %3164 = vmatprep.mubr.f32.mxu0 0.0
  %3165 = vmatmul.mubr.f32.gmra.mxu0 %v3098
  %v3166 = vpop.f32.mrf.mxu0
  %v3167 = vadd.f32 %v1113, %v3166
  %v3168 = vpop.f32.mrf.mxu0
  %3169 = vdwg.mxu0
  %v3170 = vxor.u32 %v3167, 2147483648
  %v3171 = vmul.f32 %v3170, 1.442695
  %v3172 = vpow.pop %v3171
  %v3173 = vadd.f32 %v3172, 1.0
  %v3174 = vrcp.pop %v3173
  %v3175 = vmul.f32 1.0, %v3174
  %3177 = vrot.lane.b32.xlu0 %v3167, 32
  %v3178 = vpop.permute.xlu0 %3177
  %v3180 = vmul.f32 %v3175, %v3178
  %3182 = vrot.lane.b32.xlu0 %v3180, 64
  %v3183 = vpop.permute.xlu0 %3182
  %v3185 = vadd.f32 %v3167, %v3183
  %v3186 = vtanh.pop %v3185
  %v3187 = vsub.f32 1.0, %v3175
  %3189 = vrot.lane.b32.xlu0 %v3186, 96
  %v3190 = vpop.permute.xlu0 %3189
  %v3192 = vmul.f32 %v3187, %v3190
  %v3193 = vmul.f32 %v3175, %v2986
  %v3194 = vadd.f32 %v3192, %v3193
  %v3195 = vsel %vm641, %v3094, 0
  %3197 = vmatprep.subr.mxu0 0.0
  %3198 = vmatpush1.msra.mxu0 0.0
  %3199 = vmatprep.subr.mxu0 0.0
  %3200 = vmatpush1.msra.mxu0 0.0
  %3201 = vmatprep.subr.mxu0 0.0
  %3202 = vmatpush1.msra.mxu0 0.0
  %3203 = vmatprep.subr.mxu0 0.0
  %3204 = vmatpush1.msra.mxu0 0.0
  %3205 = vmatprep.subr.mxu0 0.0
  %3206 = vmatpush1.msra.mxu0 0.0
  %3207 = vmatprep.subr.mxu0 0.0
  %3208 = vmatpush1.msra.mxu0 0.0
  %3209 = vmatprep.subr.mxu0 0.0
  %3210 = vmatpush1.msra.mxu0 0.0
  %3211 = vmatprep.subr.mxu0 0.0
  %3212 = vmatpush1.msra.mxu0 0.0
  %3213 = vmatprep.subr.mxu0 0.0
  %3214 = vmatpush1.msra.mxu0 0.0
  %3215 = vmatprep.subr.mxu0 0.0
  %3216 = vmatpush1.msra.mxu0 0.0
  %3217 = vmatprep.subr.mxu0 0.0
  %3218 = vmatpush1.msra.mxu0 0.0
  %3219 = vmatprep.subr.mxu0 0.0
  %3220 = vmatpush1.msra.mxu0 0.0
  %3221 = vmatprep.subr.mxu0 0.0
  %3222 = vmatpush1.msra.mxu0 %v1100
  %3223 = vmatprep.subr.mxu0 0.0
  %3224 = vmatpush1.msra.mxu0 %v1099
  %3225 = vmatprep.subr.mxu0 0.0
  %3226 = vmatpush1.msra.mxu0 %v1098
  %3227 = vmatprep.subr.mxu0 0.0
  %3228 = vmatpush1.msra.mxu0 %v1097
  %3229 = vmatprep.subr.mxu0 0.0
  %3230 = vmatpush2.msra.mxu0 0.0
  %3231 = vmatprep.subr.mxu0 0.0
  %3232 = vmatpush2.msra.mxu0 0.0
  %3233 = vmatprep.subr.mxu0 0.0
  %3234 = vmatpush2.msra.mxu0 0.0
  %3235 = vmatprep.subr.mxu0 0.0
  %3236 = vmatpush2.msra.mxu0 0.0
  %3237 = vmatprep.subr.mxu0 0.0
  %3238 = vmatpush2.msra.mxu0 0.0
  %3239 = vmatprep.subr.mxu0 0.0
  %3240 = vmatpush2.msra.mxu0 0.0
  %3241 = vmatprep.subr.mxu0 0.0
  %3242 = vmatpush2.msra.mxu0 0.0
  %3243 = vmatprep.subr.mxu0 0.0
  %3244 = vmatpush2.msra.mxu0 0.0
  %3245 = vmatprep.subr.mxu0 0.0
  %3246 = vmatpush2.msra.mxu0 0.0
  %3247 = vmatprep.subr.mxu0 0.0
  %3248 = vmatpush2.msra.mxu0 0.0
  %3249 = vmatprep.subr.mxu0 0.0
  %3250 = vmatpush2.msra.mxu0 0.0
  %3251 = vmatprep.subr.mxu0 0.0
  %3252 = vmatpush2.msra.mxu0 0.0
  %3253 = vmatprep.subr.mxu0 0.0
  %3254 = vmatpush2.msra.mxu0 0.0
  %3255 = vmatprep.subr.mxu0 0.0
  %3256 = vmatpush2.msra.mxu0 0.0
  %3257 = vmatprep.subr.mxu0 0.0
  %3258 = vmatpush2.msra.mxu0 0.0
  %3259 = vmatprep.subr.mxu0 0.0
  %3260 = vmatpush2.msra.mxu0 0.0
  %3261 = vmatprep.mubr.f32.mxu0 0.0
  %3262 = vmatmul.mubr.f32.gmra.mxu0 %v3195
  %v3263 = vpop.f32.mrf.mxu0
  %v3264 = vadd.f32 0.0, %v3263
  %v3265 = vpop.f32.mrf.mxu0
  %3266 = vdwg.mxu0
  %v3267 = vadd.f32 %v1061, %v3264
  %v3268 = vxor.u32 %v3267, 2147483648
  %v3269 = vmul.f32 %v3268, 1.442695
  %v3270 = vpow.pop %v3269
  %v3271 = vadd.f32 %v3270, 1.0
  %v3272 = vrcp.pop %v3271
  %v3273 = vmul.f32 1.0, %v3272
  %3275 = vrot.lane.b32.xlu0 %v3267, 32
  %v3276 = vpop.permute.xlu0 %3275
  %v3278 = vmul.f32 %v3273, %v3276
  %3280 = vrot.lane.b32.xlu0 %v3278, 64
  %v3281 = vpop.permute.xlu0 %3280
  %v3283 = vadd.f32 %v3267, %v3281
  %v3284 = vtanh.pop %v3283
  %v3285 = vsub.f32 1.0, %v3273
  %3287 = vrot.lane.b32.xlu0 %v3284, 96
  %v3288 = vpop.permute.xlu0 %3287
  %v3290 = vmul.f32 %v3285, %v3288
  %v3291 = vmul.f32 %v3273, %v3084
  %v3292 = vadd.f32 %v3290, %v3291
  %v3295 = vunpack.c.l.s4 1983009808
  %v3296 = vunpack.c.0.s8 %v3295
  %v3297 = vlaneseq
  %v3298 = vshrl.u32 %v3297, 7
  %v3299 = vsub.s32 %v3296, %v3298
  %v3300 = vrot.slane %v3292, %v3299
  %3301 = vrot.lane.b32.xlu0 %v3300, 96
  %v3302 = vpop.permute.xlu0 %3301
  %v3304 = vsel %vm641, %v3302, %v3194
  %v3306 = vsel %vm1224, %v3304, 0
  %3308 = vmatprep.subr.mxu0 0.0
  %3309 = vmatpush1.msra.mxu0 0.0
  %3310 = vmatprep.subr.mxu0 0.0
  %3311 = vmatpush1.msra.mxu0 0.0
  %3312 = vmatprep.subr.mxu0 0.0
  %3313 = vmatpush1.msra.mxu0 0.0
  %3314 = vmatprep.subr.mxu0 0.0
  %3315 = vmatpush1.msra.mxu0 0.0
  %3316 = vmatprep.subr.mxu0 0.0
  %3317 = vmatpush1.msra.mxu0 0.0
  %3318 = vmatprep.subr.mxu0 0.0
  %3319 = vmatpush1.msra.mxu0 0.0
  %3320 = vmatprep.subr.mxu0 0.0
  %3321 = vmatpush1.msra.mxu0 0.0
  %3322 = vmatprep.subr.mxu0 0.0
  %3323 = vmatpush1.msra.mxu0 0.0
  %3324 = vmatprep.subr.mxu0 0.0
  %3325 = vmatpush1.msra.mxu0 %v1108
  %3326 = vmatprep.subr.mxu0 0.0
  %3327 = vmatpush1.msra.mxu0 %v1107
  %3328 = vmatprep.subr.mxu0 0.0
  %3329 = vmatpush1.msra.mxu0 %v1106
  %3330 = vmatprep.subr.mxu0 0.0
  %3331 = vmatpush1.msra.mxu0 %v1105
  %3332 = vmatprep.subr.mxu0 0.0
  %3333 = vmatpush1.msra.mxu0 %v1104
  %3334 = vmatprep.subr.mxu0 0.0
  %3335 = vmatpush1.msra.mxu0 %v1103
  %3336 = vmatprep.subr.mxu0 0.0
  %3337 = vmatpush1.msra.mxu0 %v1102
  %3338 = vmatprep.subr.mxu0 0.0
  %3339 = vmatpush1.msra.mxu0 %v1101
  %3340 = vmatprep.subr.mxu0 0.0
  %3341 = vmatpush2.msra.mxu0 0.0
  %3342 = vmatprep.subr.mxu0 0.0
  %3343 = vmatpush2.msra.mxu0 0.0
  %3344 = vmatprep.subr.mxu0 0.0
  %3345 = vmatpush2.msra.mxu0 0.0
  %3346 = vmatprep.subr.mxu0 0.0
  %3347 = vmatpush2.msra.mxu0 0.0
  %3348 = vmatprep.subr.mxu0 0.0
  %3349 = vmatpush2.msra.mxu0 0.0
  %3350 = vmatprep.subr.mxu0 0.0
  %3351 = vmatpush2.msra.mxu0 0.0
  %3352 = vmatprep.subr.mxu0 0.0
  %3353 = vmatpush2.msra.mxu0 0.0
  %3354 = vmatprep.subr.mxu0 0.0
  %3355 = vmatpush2.msra.mxu0 0.0
  %3356 = vmatprep.subr.mxu0 0.0
  %3357 = vmatpush2.msra.mxu0 0.0
  %3358 = vmatprep.subr.mxu0 0.0
  %3359 = vmatpush2.msra.mxu0 0.0
  %3360 = vmatprep.subr.mxu0 0.0
  %3361 = vmatpush2.msra.mxu0 0.0
  %3362 = vmatprep.subr.mxu0 0.0
  %3363 = vmatpush2.msra.mxu0 0.0
  %3364 = vmatprep.subr.mxu0 0.0
  %3365 = vmatpush2.msra.mxu0 0.0
  %3366 = vmatprep.subr.mxu0 0.0
  %3367 = vmatpush2.msra.mxu0 0.0
  %3368 = vmatprep.subr.mxu0 0.0
  %3369 = vmatpush2.msra.mxu0 0.0
  %3370 = vmatprep.subr.mxu0 0.0
  %3371 = vmatpush2.msra.mxu0 0.0
  %3372 = vmatprep.mubr.f32.mxu0 0.0
  %3373 = vmatmul.mubr.f32.gmra.mxu0 %v3306
  %v3374 = vpop.f32.mrf.mxu0
  %v3375 = vadd.f32 %v1113, %v3374
  %v3376 = vpop.f32.mrf.mxu0
  %3377 = vdwg.mxu0
  %v3378 = vxor.u32 %v3375, 2147483648
  %v3379 = vmul.f32 %v3378, 1.442695
  %v3380 = vpow.pop %v3379
  %v3381 = vadd.f32 %v3380, 1.0
  %v3382 = vrcp.pop %v3381
  %v3383 = vmul.f32 1.0, %v3382
  %3385 = vrot.lane.b32.xlu0 %v3375, 32
  %v3386 = vpop.permute.xlu0 %3385
  %v3388 = vmul.f32 %v3383, %v3386
  %3390 = vrot.lane.b32.xlu0 %v3388, 64
  %v3391 = vpop.permute.xlu0 %3390
  %v3393 = vadd.f32 %v3375, %v3391
  %v3394 = vtanh.pop %v3393
  %v3395 = vsub.f32 1.0, %v3383
  %3397 = vrot.lane.b32.xlu0 %v3394, 96
  %v3398 = vpop.permute.xlu0 %3397
  %v3400 = vmul.f32 %v3395, %v3398
  %v3401 = vmul.f32 %v3383, %v3194
  %v3402 = vadd.f32 %v3400, %v3401
  %v3403 = vsel %vm641, %v3302, 0
  %3405 = vmatprep.subr.mxu0 0.0
  %3406 = vmatpush1.msra.mxu0 0.0
  %3407 = vmatprep.subr.mxu0 0.0
  %3408 = vmatpush1.msra.mxu0 0.0
  %3409 = vmatprep.subr.mxu0 0.0
  %3410 = vmatpush1.msra.mxu0 0.0
  %3411 = vmatprep.subr.mxu0 0.0
  %3412 = vmatpush1.msra.mxu0 0.0
  %3413 = vmatprep.subr.mxu0 0.0
  %3414 = vmatpush1.msra.mxu0 0.0
  %3415 = vmatprep.subr.mxu0 0.0
  %3416 = vmatpush1.msra.mxu0 0.0
  %3417 = vmatprep.subr.mxu0 0.0
  %3418 = vmatpush1.msra.mxu0 0.0
  %3419 = vmatprep.subr.mxu0 0.0
  %3420 = vmatpush1.msra.mxu0 0.0
  %3421 = vmatprep.subr.mxu0 0.0
  %3422 = vmatpush1.msra.mxu0 0.0
  %3423 = vmatprep.subr.mxu0 0.0
  %3424 = vmatpush1.msra.mxu0 0.0
  %3425 = vmatprep.subr.mxu0 0.0
  %3426 = vmatpush1.msra.mxu0 0.0
  %3427 = vmatprep.subr.mxu0 0.0
  %3428 = vmatpush1.msra.mxu0 0.0
  %3429 = vmatprep.subr.mxu0 0.0
  %3430 = vmatpush1.msra.mxu0 %v1100
  %3431 = vmatprep.subr.mxu0 0.0
  %3432 = vmatpush1.msra.mxu0 %v1099
  %3433 = vmatprep.subr.mxu0 0.0
  %3434 = vmatpush1.msra.mxu0 %v1098
  %3435 = vmatprep.subr.mxu0 0.0
  %3436 = vmatpush1.msra.mxu0 %v1097
  %3437 = vmatprep.subr.mxu0 0.0
  %3438 = vmatpush2.msra.mxu0 0.0
  %3439 = vmatprep.subr.mxu0 0.0
  %3440 = vmatpush2.msra.mxu0 0.0
  %3441 = vmatprep.subr.mxu0 0.0
  %3442 = vmatpush2.msra.mxu0 0.0
  %3443 = vmatprep.subr.mxu0 0.0
  %3444 = vmatpush2.msra.mxu0 0.0
  %3445 = vmatprep.subr.mxu0 0.0
  %3446 = vmatpush2.msra.mxu0 0.0
  %3447 = vmatprep.subr.mxu0 0.0
  %3448 = vmatpush2.msra.mxu0 0.0
  %3449 = vmatprep.subr.mxu0 0.0
  %3450 = vmatpush2.msra.mxu0 0.0
  %3451 = vmatprep.subr.mxu0 0.0
  %3452 = vmatpush2.msra.mxu0 0.0
  %3453 = vmatprep.subr.mxu0 0.0
  %3454 = vmatpush2.msra.mxu0 0.0
  %3455 = vmatprep.subr.mxu0 0.0
  %3456 = vmatpush2.msra.mxu0 0.0
  %3457 = vmatprep.subr.mxu0 0.0
  %3458 = vmatpush2.msra.mxu0 0.0
  %3459 = vmatprep.subr.mxu0 0.0
  %3460 = vmatpush2.msra.mxu0 0.0
  %3461 = vmatprep.subr.mxu0 0.0
  %3462 = vmatpush2.msra.mxu0 0.0
  %3463 = vmatprep.subr.mxu0 0.0
  %3464 = vmatpush2.msra.mxu0 0.0
  %3465 = vmatprep.subr.mxu0 0.0
  %3466 = vmatpush2.msra.mxu0 0.0
  %3467 = vmatprep.subr.mxu0 0.0
  %3468 = vmatpush2.msra.mxu0 0.0
  %3469 = vmatprep.mubr.f32.mxu0 0.0
  %3470 = vmatmul.mubr.f32.gmra.mxu0 %v3403
  %v3471 = vpop.f32.mrf.mxu0
  %v3472 = vadd.f32 0.0, %v3471
  %v3473 = vpop.f32.mrf.mxu0
  %3474 = vdwg.mxu0
  %v3475 = vadd.f32 %v1063, %v3472
  %v3476 = vxor.u32 %v3475, 2147483648
  %v3477 = vmul.f32 %v3476, 1.442695
  %v3478 = vpow.pop %v3477
  %v3479 = vadd.f32 %v3478, 1.0
  %v3480 = vrcp.pop %v3479
  %v3481 = vmul.f32 1.0, %v3480
  %3483 = vrot.lane.b32.xlu0 %v3475, 32
  %v3484 = vpop.permute.xlu0 %3483
  %v3486 = vmul.f32 %v3481, %v3484
  %3488 = vrot.lane.b32.xlu0 %v3486, 64
  %v3489 = vpop.permute.xlu0 %3488
  %v3491 = vadd.f32 %v3475, %v3489
  %v3492 = vtanh.pop %v3491
  %v3493 = vsub.f32 1.0, %v3481
  %3495 = vrot.lane.b32.xlu0 %v3492, 96
  %v3496 = vpop.permute.xlu0 %3495
  %v3498 = vmul.f32 %v3493, %v3496
  %v3499 = vmul.f32 %v3481, %v3292
  %v3500 = vadd.f32 %v3498, %v3499
  %v3503 = vunpack.c.l.s4 1983009808
  %v3504 = vunpack.c.0.s8 %v3503
  %v3505 = vlaneseq
  %v3506 = vshrl.u32 %v3505, 7
  %v3507 = vsub.s32 %v3504, %v3506
  %v3508 = vrot.slane %v3500, %v3507
  %3509 = vrot.lane.b32.xlu0 %v3508, 96
  %v3510 = vpop.permute.xlu0 %3509
  %v3512 = vsel %vm641, %v3510, %v3402
  %v3514 = vsel %vm1224, %v3512, 0
  %3516 = vmatprep.subr.mxu0 0.0
  %3517 = vmatpush1.msra.mxu0 0.0
  %3518 = vmatprep.subr.mxu0 0.0
  %3519 = vmatpush1.msra.mxu0 0.0
  %3520 = vmatprep.subr.mxu0 0.0
  %3521 = vmatpush1.msra.mxu0 0.0
  %3522 = vmatprep.subr.mxu0 0.0
  %3523 = vmatpush1.msra.mxu0 0.0
  %3524 = vmatprep.subr.mxu0 0.0
  %3525 = vmatpush1.msra.mxu0 0.0
  %3526 = vmatprep.subr.mxu0 0.0
  %3527 = vmatpush1.msra.mxu0 0.0
  %3528 = vmatprep.subr.mxu0 0.0
  %3529 = vmatpush1.msra.mxu0 0.0
  %3530 = vmatprep.subr.mxu0 0.0
  %3531 = vmatpush1.msra.mxu0 0.0
  %3532 = vmatprep.subr.mxu0 0.0
  %3533 = vmatpush1.msra.mxu0 %v1108
  %3534 = vmatprep.subr.mxu0 0.0
  %3535 = vmatpush1.msra.mxu0 %v1107
  %3536 = vmatprep.subr.mxu0 0.0
  %3537 = vmatpush1.msra.mxu0 %v1106
  %3538 = vmatprep.subr.mxu0 0.0
  %3539 = vmatpush1.msra.mxu0 %v1105
  %3540 = vmatprep.subr.mxu0 0.0
  %3541 = vmatpush1.msra.mxu0 %v1104
  %3542 = vmatprep.subr.mxu0 0.0
  %3543 = vmatpush1.msra.mxu0 %v1103
  %3544 = vmatprep.subr.mxu0 0.0
  %3545 = vmatpush1.msra.mxu0 %v1102
  %3546 = vmatprep.subr.mxu0 0.0
  %3547 = vmatpush1.msra.mxu0 %v1101
  %3548 = vmatprep.subr.mxu0 0.0
  %3549 = vmatpush2.msra.mxu0 0.0
  %3550 = vmatprep.subr.mxu0 0.0
  %3551 = vmatpush2.msra.mxu0 0.0
  %3552 = vmatprep.subr.mxu0 0.0
  %3553 = vmatpush2.msra.mxu0 0.0
  %3554 = vmatprep.subr.mxu0 0.0
  %3555 = vmatpush2.msra.mxu0 0.0
  %3556 = vmatprep.subr.mxu0 0.0
  %3557 = vmatpush2.msra.mxu0 0.0
  %3558 = vmatprep.subr.mxu0 0.0
  %3559 = vmatpush2.msra.mxu0 0.0
  %3560 = vmatprep.subr.mxu0 0.0
  %3561 = vmatpush2.msra.mxu0 0.0
  %3562 = vmatprep.subr.mxu0 0.0
  %3563 = vmatpush2.msra.mxu0 0.0
  %3564 = vmatprep.subr.mxu0 0.0
  %3565 = vmatpush2.msra.mxu0 0.0
  %3566 = vmatprep.subr.mxu0 0.0
  %3567 = vmatpush2.msra.mxu0 0.0
  %3568 = vmatprep.subr.mxu0 0.0
  %3569 = vmatpush2.msra.mxu0 0.0
  %3570 = vmatprep.subr.mxu0 0.0
  %3571 = vmatpush2.msra.mxu0 0.0
  %3572 = vmatprep.subr.mxu0 0.0
  %3573 = vmatpush2.msra.mxu0 0.0
  %3574 = vmatprep.subr.mxu0 0.0
  %3575 = vmatpush2.msra.mxu0 0.0
  %3576 = vmatprep.subr.mxu0 0.0
  %3577 = vmatpush2.msra.mxu0 0.0
  %3578 = vmatprep.subr.mxu0 0.0
  %3579 = vmatpush2.msra.mxu0 0.0
  %3580 = vmatprep.mubr.f32.mxu0 0.0
  %3581 = vmatmul.mubr.f32.gmra.mxu0 %v3514
  %v3582 = vpop.f32.mrf.mxu0
  %v3583 = vadd.f32 %v1113, %v3582
  %v3584 = vpop.f32.mrf.mxu0
  %3585 = vdwg.mxu0
  %v3586 = vxor.u32 %v3583, 2147483648
  %v3587 = vmul.f32 %v3586, 1.442695
  %v3588 = vpow.pop %v3587
  %v3589 = vadd.f32 %v3588, 1.0
  %v3590 = vrcp.pop %v3589
  %v3591 = vmul.f32 1.0, %v3590
  %3593 = vrot.lane.b32.xlu0 %v3583, 32
  %v3594 = vpop.permute.xlu0 %3593
  %v3596 = vmul.f32 %v3591, %v3594
  %3598 = vrot.lane.b32.xlu0 %v3596, 64
  %v3599 = vpop.permute.xlu0 %3598
  %v3601 = vadd.f32 %v3583, %v3599
  %v3602 = vtanh.pop %v3601
  %v3603 = vsub.f32 1.0, %v3591
  %3605 = vrot.lane.b32.xlu0 %v3602, 96
  %v3606 = vpop.permute.xlu0 %3605
  %v3608 = vmul.f32 %v3603, %v3606
  %v3609 = vmul.f32 %v3591, %v3402
  %v3610 = vadd.f32 %v3608, %v3609
  %v3611 = vsel %vm641, %v3510, 0
  %3613 = vmatprep.subr.mxu0 0.0
  %3614 = vmatpush1.msra.mxu0 0.0
  %3615 = vmatprep.subr.mxu0 0.0
  %3616 = vmatpush1.msra.mxu0 0.0
  %3617 = vmatprep.subr.mxu0 0.0
  %3618 = vmatpush1.msra.mxu0 0.0
  %3619 = vmatprep.subr.mxu0 0.0
  %3620 = vmatpush1.msra.mxu0 0.0
  %3621 = vmatprep.subr.mxu0 0.0
  %3622 = vmatpush1.msra.mxu0 0.0
  %3623 = vmatprep.subr.mxu0 0.0
  %3624 = vmatpush1.msra.mxu0 0.0
  %3625 = vmatprep.subr.mxu0 0.0
  %3626 = vmatpush1.msra.mxu0 0.0
  %3627 = vmatprep.subr.mxu0 0.0
  %3628 = vmatpush1.msra.mxu0 0.0
  %3629 = vmatprep.subr.mxu0 0.0
  %3630 = vmatpush1.msra.mxu0 0.0
  %3631 = vmatprep.subr.mxu0 0.0
  %3632 = vmatpush1.msra.mxu0 0.0
  %3633 = vmatprep.subr.mxu0 0.0
  %3634 = vmatpush1.msra.mxu0 0.0
  %3635 = vmatprep.subr.mxu0 0.0
  %3636 = vmatpush1.msra.mxu0 0.0
  %3637 = vmatprep.subr.mxu0 0.0
  %3638 = vmatpush1.msra.mxu0 %v1100
  %3639 = vmatprep.subr.mxu0 0.0
  %3640 = vmatpush1.msra.mxu0 %v1099
  %3641 = vmatprep.subr.mxu0 0.0
  %3642 = vmatpush1.msra.mxu0 %v1098
  %3643 = vmatprep.subr.mxu0 0.0
  %3644 = vmatpush1.msra.mxu0 %v1097
  %3645 = vmatprep.subr.mxu0 0.0
  %3646 = vmatpush2.msra.mxu0 0.0
  %3647 = vmatprep.subr.mxu0 0.0
  %3648 = vmatpush2.msra.mxu0 0.0
  %3649 = vmatprep.subr.mxu0 0.0
  %3650 = vmatpush2.msra.mxu0 0.0
  %3651 = vmatprep.subr.mxu0 0.0
  %3652 = vmatpush2.msra.mxu0 0.0
  %3653 = vmatprep.subr.mxu0 0.0
  %3654 = vmatpush2.msra.mxu0 0.0
  %3655 = vmatprep.subr.mxu0 0.0
  %3656 = vmatpush2.msra.mxu0 0.0
  %3657 = vmatprep.subr.mxu0 0.0
  %3658 = vmatpush2.msra.mxu0 0.0
  %3659 = vmatprep.subr.mxu0 0.0
  %3660 = vmatpush2.msra.mxu0 0.0
  %3661 = vmatprep.subr.mxu0 0.0
  %3662 = vmatpush2.msra.mxu0 0.0
  %3663 = vmatprep.subr.mxu0 0.0
  %3664 = vmatpush2.msra.mxu0 0.0
  %3665 = vmatprep.subr.mxu0 0.0
  %3666 = vmatpush2.msra.mxu0 0.0
  %3667 = vmatprep.subr.mxu0 0.0
  %3668 = vmatpush2.msra.mxu0 0.0
  %3669 = vmatprep.subr.mxu0 0.0
  %3670 = vmatpush2.msra.mxu0 0.0
  %3671 = vmatprep.subr.mxu0 0.0
  %3672 = vmatpush2.msra.mxu0 0.0
  %3673 = vmatprep.subr.mxu0 0.0
  %3674 = vmatpush2.msra.mxu0 0.0
  %3675 = vmatprep.subr.mxu0 0.0
  %3676 = vmatpush2.msra.mxu0 0.0
  %3677 = vmatprep.mubr.f32.mxu0 0.0
  %3678 = vmatmul.mubr.f32.gmra.mxu0 %v3611
  %v3679 = vpop.f32.mrf.mxu0
  %v3680 = vadd.f32 0.0, %v3679
  %v3681 = vpop.f32.mrf.mxu0
  %3682 = vdwg.mxu0
  %v3683 = vadd.f32 %v1071, %v3680
  %v3684 = vxor.u32 %v3683, 2147483648
  %v3685 = vmul.f32 %v3684, 1.442695
  %v3686 = vpow.pop %v3685
  %v3687 = vadd.f32 %v3686, 1.0
  %v3688 = vrcp.pop %v3687
  %v3689 = vmul.f32 1.0, %v3688
  %3691 = vrot.lane.b32.xlu0 %v3683, 32
  %v3692 = vpop.permute.xlu0 %3691
  %v3694 = vmul.f32 %v3689, %v3692
  %3696 = vrot.lane.b32.xlu0 %v3694, 64
  %v3697 = vpop.permute.xlu0 %3696
  %v3699 = vadd.f32 %v3683, %v3697
  %v3700 = vtanh.pop %v3699
  %v3701 = vsub.f32 1.0, %v3689
  %3703 = vrot.lane.b32.xlu0 %v3700, 96
  %v3704 = vpop.permute.xlu0 %3703
  %v3706 = vmul.f32 %v3701, %v3704
  %v3707 = vmul.f32 %v3689, %v3500
  %v3708 = vadd.f32 %v3706, %v3707
  %v3711 = vunpack.c.l.s4 1983009808
  %v3712 = vunpack.c.0.s8 %v3711
  %v3713 = vlaneseq
  %v3714 = vshrl.u32 %v3713, 7
  %v3715 = vsub.s32 %v3712, %v3714
  %v3716 = vrot.slane %v3708, %v3715
  %3717 = vrot.lane.b32.xlu0 %v3716, 96
  %v3718 = vpop.permute.xlu0 %3717
  %v3720 = vsel %vm641, %v3718, %v3610
  %v3722 = vsel %vm1224, %v3720, 0
  %3724 = vmatprep.subr.mxu0 0.0
  %3725 = vmatpush1.msra.mxu0 0.0
  %3726 = vmatprep.subr.mxu0 0.0
  %3727 = vmatpush1.msra.mxu0 0.0
  %3728 = vmatprep.subr.mxu0 0.0
  %3729 = vmatpush1.msra.mxu0 0.0
  %3730 = vmatprep.subr.mxu0 0.0
  %3731 = vmatpush1.msra.mxu0 0.0
  %3732 = vmatprep.subr.mxu0 0.0
  %3733 = vmatpush1.msra.mxu0 0.0
  %3734 = vmatprep.subr.mxu0 0.0
  %3735 = vmatpush1.msra.mxu0 0.0
  %3736 = vmatprep.subr.mxu0 0.0
  %3737 = vmatpush1.msra.mxu0 0.0
  %3738 = vmatprep.subr.mxu0 0.0
  %3739 = vmatpush1.msra.mxu0 0.0
  %3740 = vmatprep.subr.mxu0 0.0
  %3741 = vmatpush1.msra.mxu0 %v1108
  %3742 = vmatprep.subr.mxu0 0.0
  %3743 = vmatpush1.msra.mxu0 %v1107
  %3744 = vmatprep.subr.mxu0 0.0
  %3745 = vmatpush1.msra.mxu0 %v1106
  %3746 = vmatprep.subr.mxu0 0.0
  %3747 = vmatpush1.msra.mxu0 %v1105
  %3748 = vmatprep.subr.mxu0 0.0
  %3749 = vmatpush1.msra.mxu0 %v1104
  %3750 = vmatprep.subr.mxu0 0.0
  %3751 = vmatpush1.msra.mxu0 %v1103
  %3752 = vmatprep.subr.mxu0 0.0
  %3753 = vmatpush1.msra.mxu0 %v1102
  %3754 = vmatprep.subr.mxu0 0.0
  %3755 = vmatpush1.msra.mxu0 %v1101
  %3756 = vmatprep.subr.mxu0 0.0
  %3757 = vmatpush2.msra.mxu0 0.0
  %3758 = vmatprep.subr.mxu0 0.0
  %3759 = vmatpush2.msra.mxu0 0.0
  %3760 = vmatprep.subr.mxu0 0.0
  %3761 = vmatpush2.msra.mxu0 0.0
  %3762 = vmatprep.subr.mxu0 0.0
  %3763 = vmatpush2.msra.mxu0 0.0
  %3764 = vmatprep.subr.mxu0 0.0
  %3765 = vmatpush2.msra.mxu0 0.0
  %3766 = vmatprep.subr.mxu0 0.0
  %3767 = vmatpush2.msra.mxu0 0.0
  %3768 = vmatprep.subr.mxu0 0.0
  %3769 = vmatpush2.msra.mxu0 0.0
  %3770 = vmatprep.subr.mxu0 0.0
  %3771 = vmatpush2.msra.mxu0 0.0
  %3772 = vmatprep.subr.mxu0 0.0
  %3773 = vmatpush2.msra.mxu0 0.0
  %3774 = vmatprep.subr.mxu0 0.0
  %3775 = vmatpush2.msra.mxu0 0.0
  %3776 = vmatprep.subr.mxu0 0.0
  %3777 = vmatpush2.msra.mxu0 0.0
  %3778 = vmatprep.subr.mxu0 0.0
  %3779 = vmatpush2.msra.mxu0 0.0
  %3780 = vmatprep.subr.mxu0 0.0
  %3781 = vmatpush2.msra.mxu0 0.0
  %3782 = vmatprep.subr.mxu0 0.0
  %3783 = vmatpush2.msra.mxu0 0.0
  %3784 = vmatprep.subr.mxu0 0.0
  %3785 = vmatpush2.msra.mxu0 0.0
  %3786 = vmatprep.subr.mxu0 0.0
  %3787 = vmatpush2.msra.mxu0 0.0
  %3788 = vmatprep.mubr.f32.mxu0 0.0
  %3789 = vmatmul.mubr.f32.gmra.mxu0 %v3722
  %v3790 = vpop.f32.mrf.mxu0
  %v3791 = vadd.f32 %v1113, %v3790
  %v3792 = vpop.f32.mrf.mxu0
  %3793 = vdwg.mxu0
  %v3794 = vxor.u32 %v3791, 2147483648
  %v3795 = vmul.f32 %v3794, 1.442695
  %v3796 = vpow.pop %v3795
  %v3797 = vadd.f32 %v3796, 1.0
  %v3798 = vrcp.pop %v3797
  %v3799 = vmul.f32 1.0, %v3798
  %3801 = vrot.lane.b32.xlu0 %v3791, 32
  %v3802 = vpop.permute.xlu0 %3801
  %v3804 = vmul.f32 %v3799, %v3802
  %3806 = vrot.lane.b32.xlu0 %v3804, 64
  %v3807 = vpop.permute.xlu0 %3806
  %v3809 = vadd.f32 %v3791, %v3807
  %v3810 = vtanh.pop %v3809
  %v3811 = vsub.f32 1.0, %v3799
  %3813 = vrot.lane.b32.xlu0 %v3810, 96
  %v3814 = vpop.permute.xlu0 %3813
  %v3816 = vmul.f32 %v3811, %v3814
  %v3817 = vmul.f32 %v3799, %v3610
  %v3818 = vadd.f32 %v3816, %v3817
  %v3819 = vsel %vm641, %v3718, 0
  %3821 = vmatprep.subr.mxu0 0.0
  %3822 = vmatpush1.msra.mxu0 0.0
  %3823 = vmatprep.subr.mxu0 0.0
  %3824 = vmatpush1.msra.mxu0 0.0
  %3825 = vmatprep.subr.mxu0 0.0
  %3826 = vmatpush1.msra.mxu0 0.0
  %3827 = vmatprep.subr.mxu0 0.0
  %3828 = vmatpush1.msra.mxu0 0.0
  %3829 = vmatprep.subr.mxu0 0.0
  %3830 = vmatpush1.msra.mxu0 0.0
  %3831 = vmatprep.subr.mxu0 0.0
  %3832 = vmatpush1.msra.mxu0 0.0
  %3833 = vmatprep.subr.mxu0 0.0
  %3834 = vmatpush1.msra.mxu0 0.0
  %3835 = vmatprep.subr.mxu0 0.0
  %3836 = vmatpush1.msra.mxu0 0.0
  %3837 = vmatprep.subr.mxu0 0.0
  %3838 = vmatpush1.msra.mxu0 0.0
  %3839 = vmatprep.subr.mxu0 0.0
  %3840 = vmatpush1.msra.mxu0 0.0
  %3841 = vmatprep.subr.mxu0 0.0
  %3842 = vmatpush1.msra.mxu0 0.0
  %3843 = vmatprep.subr.mxu0 0.0
  %3844 = vmatpush1.msra.mxu0 0.0
  %3845 = vmatprep.subr.mxu0 0.0
  %3846 = vmatpush1.msra.mxu0 %v1100
  %3847 = vmatprep.subr.mxu0 0.0
  %3848 = vmatpush1.msra.mxu0 %v1099
  %3849 = vmatprep.subr.mxu0 0.0
  %3850 = vmatpush1.msra.mxu0 %v1098
  %3851 = vmatprep.subr.mxu0 0.0
  %3852 = vmatpush1.msra.mxu0 %v1097
  %3853 = vmatprep.subr.mxu0 0.0
  %3854 = vmatpush2.msra.mxu0 0.0
  %3855 = vmatprep.subr.mxu0 0.0
  %3856 = vmatpush2.msra.mxu0 0.0
  %3857 = vmatprep.subr.mxu0 0.0
  %3858 = vmatpush2.msra.mxu0 0.0
  %3859 = vmatprep.subr.mxu0 0.0
  %3860 = vmatpush2.msra.mxu0 0.0
  %3861 = vmatprep.subr.mxu0 0.0
  %3862 = vmatpush2.msra.mxu0 0.0
  %3863 = vmatprep.subr.mxu0 0.0
  %3864 = vmatpush2.msra.mxu0 0.0
  %3865 = vmatprep.subr.mxu0 0.0
  %3866 = vmatpush2.msra.mxu0 0.0
  %3867 = vmatprep.subr.mxu0 0.0
  %3868 = vmatpush2.msra.mxu0 0.0
  %3869 = vmatprep.subr.mxu0 0.0
  %3870 = vmatpush2.msra.mxu0 0.0
  %3871 = vmatprep.subr.mxu0 0.0
  %3872 = vmatpush2.msra.mxu0 0.0
  %3873 = vmatprep.subr.mxu0 0.0
  %3874 = vmatpush2.msra.mxu0 0.0
  %3875 = vmatprep.subr.mxu0 0.0
  %3876 = vmatpush2.msra.mxu0 0.0
  %3877 = vmatprep.subr.mxu0 0.0
  %3878 = vmatpush2.msra.mxu0 0.0
  %3879 = vmatprep.subr.mxu0 0.0
  %3880 = vmatpush2.msra.mxu0 0.0
  %3881 = vmatprep.subr.mxu0 0.0
  %3882 = vmatpush2.msra.mxu0 0.0
  %3883 = vmatprep.subr.mxu0 0.0
  %3884 = vmatpush2.msra.mxu0 0.0
  %3885 = vmatprep.mubr.f32.mxu0 0.0
  %3886 = vmatmul.mubr.f32.gmra.mxu0 %v3819
  %v3887 = vpop.f32.mrf.mxu0
  %v3888 = vadd.f32 0.0, %v3887
  %v3889 = vpop.f32.mrf.mxu0
  %3890 = vdwg.mxu0
  %v3891 = vadd.f32 %v1079, %v3888
  %v3892 = vxor.u32 %v3891, 2147483648
  %v3893 = vmul.f32 %v3892, 1.442695
  %v3894 = vpow.pop %v3893
  %v3895 = vadd.f32 %v3894, 1.0
  %v3896 = vrcp.pop %v3895
  %v3897 = vmul.f32 1.0, %v3896
  %3899 = vrot.lane.b32.xlu0 %v3891, 32
  %v3900 = vpop.permute.xlu0 %3899
  %v3902 = vmul.f32 %v3897, %v3900
  %3904 = vrot.lane.b32.xlu0 %v3902, 64
  %v3905 = vpop.permute.xlu0 %3904
  %v3907 = vadd.f32 %v3891, %v3905
  %v3908 = vtanh.pop %v3907
  %v3909 = vsub.f32 1.0, %v3897
  %3911 = vrot.lane.b32.xlu0 %v3908, 96
  %v3912 = vpop.permute.xlu0 %3911
  %v3914 = vmul.f32 %v3909, %v3912
  %v3915 = vmul.f32 %v3897, %v3708
  %v3916 = vadd.f32 %v3914, %v3915
  %v3919 = vunpack.c.l.s4 1983009808
  %v3920 = vunpack.c.0.s8 %v3919
  %v3921 = vlaneseq
  %v3922 = vshrl.u32 %v3921, 7
  %v3923 = vsub.s32 %v3920, %v3922
  %v3924 = vrot.slane %v3916, %v3923
  %3925 = vrot.lane.b32.xlu0 %v3924, 96
  %v3926 = vpop.permute.xlu0 %3925
  %v3928 = vsel %vm641, %v3926, %v3818
  %v3930 = vsel %vm1224, %v3928, 0
  %3932 = vmatprep.subr.mxu0 0.0
  %3933 = vmatpush1.msra.mxu0 0.0
  %3934 = vmatprep.subr.mxu0 0.0
  %3935 = vmatpush1.msra.mxu0 0.0
  %3936 = vmatprep.subr.mxu0 0.0
  %3937 = vmatpush1.msra.mxu0 0.0
  %3938 = vmatprep.subr.mxu0 0.0
  %3939 = vmatpush1.msra.mxu0 0.0
  %3940 = vmatprep.subr.mxu0 0.0
  %3941 = vmatpush1.msra.mxu0 0.0
  %3942 = vmatprep.subr.mxu0 0.0
  %3943 = vmatpush1.msra.mxu0 0.0
  %3944 = vmatprep.subr.mxu0 0.0
  %3945 = vmatpush1.msra.mxu0 0.0
  %3946 = vmatprep.subr.mxu0 0.0
  %3947 = vmatpush1.msra.mxu0 0.0
  %3948 = vmatprep.subr.mxu0 0.0
  %3949 = vmatpush1.msra.mxu0 %v1108
  %3950 = vmatprep.subr.mxu0 0.0
  %3951 = vmatpush1.msra.mxu0 %v1107
  %3952 = vmatprep.subr.mxu0 0.0
  %3953 = vmatpush1.msra.mxu0 %v1106
  %3954 = vmatprep.subr.mxu0 0.0
  %3955 = vmatpush1.msra.mxu0 %v1105
  %3956 = vmatprep.subr.mxu0 0.0
  %3957 = vmatpush1.msra.mxu0 %v1104
  %3958 = vmatprep.subr.mxu0 0.0
  %3959 = vmatpush1.msra.mxu0 %v1103
  %3960 = vmatprep.subr.mxu0 0.0
  %3961 = vmatpush1.msra.mxu0 %v1102
  %3962 = vmatprep.subr.mxu0 0.0
  %3963 = vmatpush1.msra.mxu0 %v1101
  %3964 = vmatprep.subr.mxu0 0.0
  %3965 = vmatpush2.msra.mxu0 0.0
  %3966 = vmatprep.subr.mxu0 0.0
  %3967 = vmatpush2.msra.mxu0 0.0
  %3968 = vmatprep.subr.mxu0 0.0
  %3969 = vmatpush2.msra.mxu0 0.0
  %3970 = vmatprep.subr.mxu0 0.0
  %3971 = vmatpush2.msra.mxu0 0.0
  %3972 = vmatprep.subr.mxu0 0.0
  %3973 = vmatpush2.msra.mxu0 0.0
  %3974 = vmatprep.subr.mxu0 0.0
  %3975 = vmatpush2.msra.mxu0 0.0
  %3976 = vmatprep.subr.mxu0 0.0
  %3977 = vmatpush2.msra.mxu0 0.0
  %3978 = vmatprep.subr.mxu0 0.0
  %3979 = vmatpush2.msra.mxu0 0.0
  %3980 = vmatprep.subr.mxu0 0.0
  %3981 = vmatpush2.msra.mxu0 0.0
  %3982 = vmatprep.subr.mxu0 0.0
  %3983 = vmatpush2.msra.mxu0 0.0
  %3984 = vmatprep.subr.mxu0 0.0
  %3985 = vmatpush2.msra.mxu0 0.0
  %3986 = vmatprep.subr.mxu0 0.0
  %3987 = vmatpush2.msra.mxu0 0.0
  %3988 = vmatprep.subr.mxu0 0.0
  %3989 = vmatpush2.msra.mxu0 0.0
  %3990 = vmatprep.subr.mxu0 0.0
  %3991 = vmatpush2.msra.mxu0 0.0
  %3992 = vmatprep.subr.mxu0 0.0
  %3993 = vmatpush2.msra.mxu0 0.0
  %3994 = vmatprep.subr.mxu0 0.0
  %3995 = vmatpush2.msra.mxu0 0.0
  %3996 = vmatprep.mubr.f32.mxu0 0.0
  %3997 = vmatmul.mubr.f32.gmra.mxu0 %v3930
  %v3998 = vpop.f32.mrf.mxu0
  %v3999 = vadd.f32 %v1113, %v3998
  %v4000 = vpop.f32.mrf.mxu0
  %4001 = vdwg.mxu0
  %v4002 = vxor.u32 %v3999, 2147483648
  %v4003 = vmul.f32 %v4002, 1.442695
  %v4004 = vpow.pop %v4003
  %v4005 = vadd.f32 %v4004, 1.0
  %v4006 = vrcp.pop %v4005
  %v4007 = vmul.f32 1.0, %v4006
  %4009 = vrot.lane.b32.xlu0 %v3999, 32
  %v4010 = vpop.permute.xlu0 %4009
  %v4012 = vmul.f32 %v4007, %v4010
  %4014 = vrot.lane.b32.xlu0 %v4012, 64
  %v4015 = vpop.permute.xlu0 %4014
  %v4017 = vadd.f32 %v3999, %v4015
  %v4018 = vtanh.pop %v4017
  %v4019 = vsub.f32 1.0, %v4007
  %4021 = vrot.lane.b32.xlu0 %v4018, 96
  %v4022 = vpop.permute.xlu0 %4021
  %v4024 = vmul.f32 %v4019, %v4022
  %v4025 = vmul.f32 %v4007, %v3818
  %v4026 = vadd.f32 %v4024, %v4025
  %v4027 = vsel %vm641, %v3926, 0
  %4029 = vmatprep.subr.mxu0 0.0
  %4030 = vmatpush1.msra.mxu0 0.0
  %4031 = vmatprep.subr.mxu0 0.0
  %4032 = vmatpush1.msra.mxu0 0.0
  %4033 = vmatprep.subr.mxu0 0.0
  %4034 = vmatpush1.msra.mxu0 0.0
  %4035 = vmatprep.subr.mxu0 0.0
  %4036 = vmatpush1.msra.mxu0 0.0
  %4037 = vmatprep.subr.mxu0 0.0
  %4038 = vmatpush1.msra.mxu0 0.0
  %4039 = vmatprep.subr.mxu0 0.0
  %4040 = vmatpush1.msra.mxu0 0.0
  %4041 = vmatprep.subr.mxu0 0.0
  %4042 = vmatpush1.msra.mxu0 0.0
  %4043 = vmatprep.subr.mxu0 0.0
  %4044 = vmatpush1.msra.mxu0 0.0
  %4045 = vmatprep.subr.mxu0 0.0
  %4046 = vmatpush1.msra.mxu0 0.0
  %4047 = vmatprep.subr.mxu0 0.0
  %4048 = vmatpush1.msra.mxu0 0.0
  %4049 = vmatprep.subr.mxu0 0.0
  %4050 = vmatpush1.msra.mxu0 0.0
  %4051 = vmatprep.subr.mxu0 0.0
  %4052 = vmatpush1.msra.mxu0 0.0
  %4053 = vmatprep.subr.mxu0 0.0
  %4054 = vmatpush1.msra.mxu0 %v1100
  %4055 = vmatprep.subr.mxu0 0.0
  %4056 = vmatpush1.msra.mxu0 %v1099
  %4057 = vmatprep.subr.mxu0 0.0
  %4058 = vmatpush1.msra.mxu0 %v1098
  %4059 = vmatprep.subr.mxu0 0.0
  %4060 = vmatpush1.msra.mxu0 %v1097
  %4061 = vmatprep.subr.mxu0 0.0
  %4062 = vmatpush2.msra.mxu0 0.0
  %4063 = vmatprep.subr.mxu0 0.0
  %4064 = vmatpush2.msra.mxu0 0.0
  %4065 = vmatprep.subr.mxu0 0.0
  %4066 = vmatpush2.msra.mxu0 0.0
  %4067 = vmatprep.subr.mxu0 0.0
  %4068 = vmatpush2.msra.mxu0 0.0
  %4069 = vmatprep.subr.mxu0 0.0
  %4070 = vmatpush2.msra.mxu0 0.0
  %4071 = vmatprep.subr.mxu0 0.0
  %4072 = vmatpush2.msra.mxu0 0.0
  %4073 = vmatprep.subr.mxu0 0.0
  %4074 = vmatpush2.msra.mxu0 0.0
  %4075 = vmatprep.subr.mxu0 0.0
  %4076 = vmatpush2.msra.mxu0 0.0
  %4077 = vmatprep.subr.mxu0 0.0
  %4078 = vmatpush2.msra.mxu0 0.0
  %4079 = vmatprep.subr.mxu0 0.0
  %4080 = vmatpush2.msra.mxu0 0.0
  %4081 = vmatprep.subr.mxu0 0.0
  %4082 = vmatpush2.msra.mxu0 0.0
  %4083 = vmatprep.subr.mxu0 0.0
  %4084 = vmatpush2.msra.mxu0 0.0
  %4085 = vmatprep.subr.mxu0 0.0
  %4086 = vmatpush2.msra.mxu0 0.0
  %4087 = vmatprep.subr.mxu0 0.0
  %4088 = vmatpush2.msra.mxu0 0.0
  %4089 = vmatprep.subr.mxu0 0.0
  %4090 = vmatpush2.msra.mxu0 0.0
  %4091 = vmatprep.subr.mxu0 0.0
  %4092 = vmatpush2.msra.mxu0 0.0
  %4093 = vmatprep.mubr.f32.mxu0 0.0
  %4094 = vmatmul.mubr.f32.gmra.mxu0 %v4027
  %v4095 = vpop.f32.mrf.mxu0
  %v4096 = vadd.f32 0.0, %v4095
  %v4097 = vpop.f32.mrf.mxu0
  %4098 = vdwg.mxu0
  %v4099 = vadd.f32 %v1078, %v4096
  %v4100 = vxor.u32 %v4099, 2147483648
  %v4101 = vmul.f32 %v4100, 1.442695
  %v4102 = vpow.pop %v4101
  %v4103 = vadd.f32 %v4102, 1.0
  %v4104 = vrcp.pop %v4103
  %v4105 = vmul.f32 1.0, %v4104
  %4107 = vrot.lane.b32.xlu0 %v4099, 32
  %v4108 = vpop.permute.xlu0 %4107
  %v4110 = vmul.f32 %v4105, %v4108
  %4112 = vrot.lane.b32.xlu0 %v4110, 64
  %v4113 = vpop.permute.xlu0 %4112
  %v4115 = vadd.f32 %v4099, %v4113
  %v4116 = vtanh.pop %v4115
  %v4117 = vsub.f32 1.0, %v4105
  %4119 = vrot.lane.b32.xlu0 %v4116, 96
  %v4120 = vpop.permute.xlu0 %4119
  %v4122 = vmul.f32 %v4117, %v4120
  %v4123 = vmul.f32 %v4105, %v3916
  %v4124 = vadd.f32 %v4122, %v4123
  %v4127 = vunpack.c.l.s4 1983009808
  %v4128 = vunpack.c.0.s8 %v4127
  %v4129 = vlaneseq
  %v4130 = vshrl.u32 %v4129, 7
  %v4131 = vsub.s32 %v4128, %v4130
  %v4132 = vrot.slane %v4124, %v4131
  %4133 = vrot.lane.b32.xlu0 %v4132, 96
  %v4134 = vpop.permute.xlu0 %4133
  %v4136 = vsel %vm641, %v4134, %v4026
  %v4138 = vsel %vm1224, %v4136, 0
  %4140 = vmatprep.subr.mxu0 0.0
  %4141 = vmatpush1.msra.mxu0 0.0
  %4142 = vmatprep.subr.mxu0 0.0
  %4143 = vmatpush1.msra.mxu0 0.0
  %4144 = vmatprep.subr.mxu0 0.0
  %4145 = vmatpush1.msra.mxu0 0.0
  %4146 = vmatprep.subr.mxu0 0.0
  %4147 = vmatpush1.msra.mxu0 0.0
  %4148 = vmatprep.subr.mxu0 0.0
  %4149 = vmatpush1.msra.mxu0 0.0
  %4150 = vmatprep.subr.mxu0 0.0
  %4151 = vmatpush1.msra.mxu0 0.0
  %4152 = vmatprep.subr.mxu0 0.0
  %4153 = vmatpush1.msra.mxu0 0.0
  %4154 = vmatprep.subr.mxu0 0.0
  %4155 = vmatpush1.msra.mxu0 0.0
  %4156 = vmatprep.subr.mxu0 0.0
  %4157 = vmatpush1.msra.mxu0 %v1108
  %4158 = vmatprep.subr.mxu0 0.0
  %4159 = vmatpush1.msra.mxu0 %v1107
  %4160 = vmatprep.subr.mxu0 0.0
  %4161 = vmatpush1.msra.mxu0 %v1106
  %4162 = vmatprep.subr.mxu0 0.0
  %4163 = vmatpush1.msra.mxu0 %v1105
  %4164 = vmatprep.subr.mxu0 0.0
  %4165 = vmatpush1.msra.mxu0 %v1104
  %4166 = vmatprep.subr.mxu0 0.0
  %4167 = vmatpush1.msra.mxu0 %v1103
  %4168 = vmatprep.subr.mxu0 0.0
  %4169 = vmatpush1.msra.mxu0 %v1102
  %4170 = vmatprep.subr.mxu0 0.0
  %4171 = vmatpush1.msra.mxu0 %v1101
  %4172 = vmatprep.subr.mxu0 0.0
  %4173 = vmatpush2.msra.mxu0 0.0
  %4174 = vmatprep.subr.mxu0 0.0
  %4175 = vmatpush2.msra.mxu0 0.0
  %4176 = vmatprep.subr.mxu0 0.0
  %4177 = vmatpush2.msra.mxu0 0.0
  %4178 = vmatprep.subr.mxu0 0.0
  %4179 = vmatpush2.msra.mxu0 0.0
  %4180 = vmatprep.subr.mxu0 0.0
  %4181 = vmatpush2.msra.mxu0 0.0
  %4182 = vmatprep.subr.mxu0 0.0
  %4183 = vmatpush2.msra.mxu0 0.0
  %4184 = vmatprep.subr.mxu0 0.0
  %4185 = vmatpush2.msra.mxu0 0.0
  %4186 = vmatprep.subr.mxu0 0.0
  %4187 = vmatpush2.msra.mxu0 0.0
  %4188 = vmatprep.subr.mxu0 0.0
  %4189 = vmatpush2.msra.mxu0 0.0
  %4190 = vmatprep.subr.mxu0 0.0
  %4191 = vmatpush2.msra.mxu0 0.0
  %4192 = vmatprep.subr.mxu0 0.0
  %4193 = vmatpush2.msra.mxu0 0.0
  %4194 = vmatprep.subr.mxu0 0.0
  %4195 = vmatpush2.msra.mxu0 0.0
  %4196 = vmatprep.subr.mxu0 0.0
  %4197 = vmatpush2.msra.mxu0 0.0
  %4198 = vmatprep.subr.mxu0 0.0
  %4199 = vmatpush2.msra.mxu0 0.0
  %4200 = vmatprep.subr.mxu0 0.0
  %4201 = vmatpush2.msra.mxu0 0.0
  %4202 = vmatprep.subr.mxu0 0.0
  %4203 = vmatpush2.msra.mxu0 0.0
  %4204 = vmatprep.mubr.f32.mxu0 0.0
  %4205 = vmatmul.mubr.f32.gmra.mxu0 %v4138
  %v4206 = vpop.f32.mrf.mxu0
  %v4207 = vadd.f32 %v1113, %v4206
  %v4208 = vpop.f32.mrf.mxu0
  %4209 = vdwg.mxu0
  %v4210 = vxor.u32 %v4207, 2147483648
  %v4211 = vmul.f32 %v4210, 1.442695
  %v4212 = vpow.pop %v4211
  %v4213 = vadd.f32 %v4212, 1.0
  %v4214 = vrcp.pop %v4213
  %v4215 = vmul.f32 1.0, %v4214
  %4217 = vrot.lane.b32.xlu0 %v4207, 32
  %v4218 = vpop.permute.xlu0 %4217
  %v4220 = vmul.f32 %v4215, %v4218
  %4222 = vrot.lane.b32.xlu0 %v4220, 64
  %v4223 = vpop.permute.xlu0 %4222
  %v4225 = vadd.f32 %v4207, %v4223
  %v4226 = vtanh.pop %v4225
  %v4227 = vsub.f32 1.0, %v4215
  %4229 = vrot.lane.b32.xlu0 %v4226, 96
  %v4230 = vpop.permute.xlu0 %4229
  %v4232 = vmul.f32 %v4227, %v4230
  %v4233 = vmul.f32 %v4215, %v4026
  %v4234 = vadd.f32 %v4232, %v4233
  %v4235 = vsel %vm641, %v4134, 0
  %4237 = vmatprep.subr.mxu0 0.0
  %4238 = vmatpush1.msra.mxu0 0.0
  %4239 = vmatprep.subr.mxu0 0.0
  %4240 = vmatpush1.msra.mxu0 0.0
  %4241 = vmatprep.subr.mxu0 0.0
  %4242 = vmatpush1.msra.mxu0 0.0
  %4243 = vmatprep.subr.mxu0 0.0
  %4244 = vmatpush1.msra.mxu0 0.0
  %4245 = vmatprep.subr.mxu0 0.0
  %4246 = vmatpush1.msra.mxu0 0.0
  %4247 = vmatprep.subr.mxu0 0.0
  %4248 = vmatpush1.msra.mxu0 0.0
  %4249 = vmatprep.subr.mxu0 0.0
  %4250 = vmatpush1.msra.mxu0 0.0
  %4251 = vmatprep.subr.mxu0 0.0
  %4252 = vmatpush1.msra.mxu0 0.0
  %4253 = vmatprep.subr.mxu0 0.0
  %4254 = vmatpush1.msra.mxu0 0.0
  %4255 = vmatprep.subr.mxu0 0.0
  %4256 = vmatpush1.msra.mxu0 0.0
  %4257 = vmatprep.subr.mxu0 0.0
  %4258 = vmatpush1.msra.mxu0 0.0
  %4259 = vmatprep.subr.mxu0 0.0
  %4260 = vmatpush1.msra.mxu0 0.0
  %4261 = vmatprep.subr.mxu0 0.0
  %4262 = vmatpush1.msra.mxu0 %v1100
  %4263 = vmatprep.subr.mxu0 0.0
  %4264 = vmatpush1.msra.mxu0 %v1099
  %4265 = vmatprep.subr.mxu0 0.0
  %4266 = vmatpush1.msra.mxu0 %v1098
  %4267 = vmatprep.subr.mxu0 0.0
  %4268 = vmatpush1.msra.mxu0 %v1097
  %4269 = vmatprep.subr.mxu0 0.0
  %4270 = vmatpush2.msra.mxu0 0.0
  %4271 = vmatprep.subr.mxu0 0.0
  %4272 = vmatpush2.msra.mxu0 0.0
  %4273 = vmatprep.subr.mxu0 0.0
  %4274 = vmatpush2.msra.mxu0 0.0
  %4275 = vmatprep.subr.mxu0 0.0
  %4276 = vmatpush2.msra.mxu0 0.0
  %4277 = vmatprep.subr.mxu0 0.0
  %4278 = vmatpush2.msra.mxu0 0.0
  %4279 = vmatprep.subr.mxu0 0.0
  %4280 = vmatpush2.msra.mxu0 0.0
  %4281 = vmatprep.subr.mxu0 0.0
  %4282 = vmatpush2.msra.mxu0 0.0
  %4283 = vmatprep.subr.mxu0 0.0
  %4284 = vmatpush2.msra.mxu0 0.0
  %4285 = vmatprep.subr.mxu0 0.0
  %4286 = vmatpush2.msra.mxu0 0.0
  %4287 = vmatprep.subr.mxu0 0.0
  %4288 = vmatpush2.msra.mxu0 0.0
  %4289 = vmatprep.subr.mxu0 0.0
  %4290 = vmatpush2.msra.mxu0 0.0
  %4291 = vmatprep.subr.mxu0 0.0
  %4292 = vmatpush2.msra.mxu0 0.0
  %4293 = vmatprep.subr.mxu0 0.0
  %4294 = vmatpush2.msra.mxu0 0.0
  %4295 = vmatprep.subr.mxu0 0.0
  %4296 = vmatpush2.msra.mxu0 0.0
  %4297 = vmatprep.subr.mxu0 0.0
  %4298 = vmatpush2.msra.mxu0 0.0
  %4299 = vmatprep.subr.mxu0 0.0
  %4300 = vmatpush2.msra.mxu0 0.0
  %4301 = vmatprep.mubr.f32.mxu0 0.0
  %4302 = vmatmul.mubr.f32.gmra.mxu0 %v4235
  %v4303 = vpop.f32.mrf.mxu0
  %v4304 = vadd.f32 0.0, %v4303
  %v4305 = vpop.f32.mrf.mxu0
  %4306 = vdwg.mxu0
  %v4307 = vadd.f32 %v1080, %v4304
  %v4308 = vxor.u32 %v4307, 2147483648
  %v4309 = vmul.f32 %v4308, 1.442695
  %v4310 = vpow.pop %v4309
  %v4311 = vadd.f32 %v4310, 1.0
  %v4312 = vrcp.pop %v4311
  %v4313 = vmul.f32 1.0, %v4312
  %4315 = vrot.lane.b32.xlu0 %v4307, 32
  %v4316 = vpop.permute.xlu0 %4315
  %v4318 = vmul.f32 %v4313, %v4316
  %4320 = vrot.lane.b32.xlu0 %v4318, 64
  %v4321 = vpop.permute.xlu0 %4320
  %v4323 = vadd.f32 %v4307, %v4321
  %v4324 = vtanh.pop %v4323
  %v4325 = vsub.f32 1.0, %v4313
  %4327 = vrot.lane.b32.xlu0 %v4324, 96
  %v4328 = vpop.permute.xlu0 %4327
  %v4330 = vmul.f32 %v4325, %v4328
  %v4331 = vmul.f32 %v4313, %v4124
  %v4332 = vadd.f32 %v4330, %v4331
  %v4335 = vunpack.c.l.s4 1983009808
  %v4336 = vunpack.c.0.s8 %v4335
  %v4337 = vlaneseq
  %v4338 = vshrl.u32 %v4337, 7
  %v4339 = vsub.s32 %v4336, %v4338
  %v4340 = vrot.slane %v4332, %v4339
  %4341 = vrot.lane.b32.xlu0 %v4340, 96
  %v4342 = vpop.permute.xlu0 %4341
  %v4344 = vsel %vm641, %v4342, %v4234
  %v4346 = vsel %vm1224, %v4344, 0
  %4348 = vmatprep.subr.mxu0 0.0
  %4349 = vmatpush1.msra.mxu0 0.0
  %4350 = vmatprep.subr.mxu0 0.0
  %4351 = vmatpush1.msra.mxu0 0.0
  %4352 = vmatprep.subr.mxu0 0.0
  %4353 = vmatpush1.msra.mxu0 0.0
  %4354 = vmatprep.subr.mxu0 0.0
  %4355 = vmatpush1.msra.mxu0 0.0
  %4356 = vmatprep.subr.mxu0 0.0
  %4357 = vmatpush1.msra.mxu0 0.0
  %4358 = vmatprep.subr.mxu0 0.0
  %4359 = vmatpush1.msra.mxu0 0.0
  %4360 = vmatprep.subr.mxu0 0.0
  %4361 = vmatpush1.msra.mxu0 0.0
  %4362 = vmatprep.subr.mxu0 0.0
  %4363 = vmatpush1.msra.mxu0 0.0
  %4364 = vmatprep.subr.mxu0 0.0
  %4365 = vmatpush1.msra.mxu0 %v1108
  %4366 = vmatprep.subr.mxu0 0.0
  %4367 = vmatpush1.msra.mxu0 %v1107
  %4368 = vmatprep.subr.mxu0 0.0
  %4369 = vmatpush1.msra.mxu0 %v1106
  %4370 = vmatprep.subr.mxu0 0.0
  %4371 = vmatpush1.msra.mxu0 %v1105
  %4372 = vmatprep.subr.mxu0 0.0
  %4373 = vmatpush1.msra.mxu0 %v1104
  %4374 = vmatprep.subr.mxu0 0.0
  %4375 = vmatpush1.msra.mxu0 %v1103
  %4376 = vmatprep.subr.mxu0 0.0
  %4377 = vmatpush1.msra.mxu0 %v1102
  %4378 = vmatprep.subr.mxu0 0.0
  %4379 = vmatpush1.msra.mxu0 %v1101
  %4380 = vmatprep.subr.mxu0 0.0
  %4381 = vmatpush2.msra.mxu0 0.0
  %4382 = vmatprep.subr.mxu0 0.0
  %4383 = vmatpush2.msra.mxu0 0.0
  %4384 = vmatprep.subr.mxu0 0.0
  %4385 = vmatpush2.msra.mxu0 0.0
  %4386 = vmatprep.subr.mxu0 0.0
  %4387 = vmatpush2.msra.mxu0 0.0
  %4388 = vmatprep.subr.mxu0 0.0
  %4389 = vmatpush2.msra.mxu0 0.0
  %4390 = vmatprep.subr.mxu0 0.0
  %4391 = vmatpush2.msra.mxu0 0.0
  %4392 = vmatprep.subr.mxu0 0.0
  %4393 = vmatpush2.msra.mxu0 0.0
  %4394 = vmatprep.subr.mxu0 0.0
  %4395 = vmatpush2.msra.mxu0 0.0
  %4396 = vmatprep.subr.mxu0 0.0
  %4397 = vmatpush2.msra.mxu0 0.0
  %4398 = vmatprep.subr.mxu0 0.0
  %4399 = vmatpush2.msra.mxu0 0.0
  %4400 = vmatprep.subr.mxu0 0.0
  %4401 = vmatpush2.msra.mxu0 0.0
  %4402 = vmatprep.subr.mxu0 0.0
  %4403 = vmatpush2.msra.mxu0 0.0
  %4404 = vmatprep.subr.mxu0 0.0
  %4405 = vmatpush2.msra.mxu0 0.0
  %4406 = vmatprep.subr.mxu0 0.0
  %4407 = vmatpush2.msra.mxu0 0.0
  %4408 = vmatprep.subr.mxu0 0.0
  %4409 = vmatpush2.msra.mxu0 0.0
  %4410 = vmatprep.subr.mxu0 0.0
  %4411 = vmatpush2.msra.mxu0 0.0
  %4412 = vmatprep.mubr.f32.mxu0 0.0
  %4413 = vmatmul.mubr.f32.gmra.mxu0 %v4346
  %v4414 = vpop.f32.mrf.mxu0
  %v4415 = vadd.f32 %v1113, %v4414
  %v4416 = vpop.f32.mrf.mxu0
  %4417 = vdwg.mxu0
  %v4418 = vxor.u32 %v4415, 2147483648
  %v4419 = vmul.f32 %v4418, 1.442695
  %v4420 = vpow.pop %v4419
  %v4421 = vadd.f32 %v4420, 1.0
  %v4422 = vrcp.pop %v4421
  %v4423 = vmul.f32 1.0, %v4422
  %4425 = vrot.lane.b32.xlu0 %v4415, 32
  %v4426 = vpop.permute.xlu0 %4425
  %v4428 = vmul.f32 %v4423, %v4426
  %4430 = vrot.lane.b32.xlu0 %v4428, 64
  %v4431 = vpop.permute.xlu0 %4430
  %v4433 = vadd.f32 %v4415, %v4431
  %v4434 = vtanh.pop %v4433
  %v4435 = vsub.f32 1.0, %v4423
  %4437 = vrot.lane.b32.xlu0 %v4434, 96
  %v4438 = vpop.permute.xlu0 %4437
  %v4440 = vmul.f32 %v4435, %v4438
  %v4441 = vmul.f32 %v4423, %v4234
  %v4442 = vadd.f32 %v4440, %v4441
  %v4443 = vld [vmem:[%s8] sm:$0xff]
  %v4444 = vld [vmem:[%s8 + $0x8] sm:$0xff]
  %v4445 = vld [vmem:[%s8 + $0x10] sm:$0xff]
  %v4446 = vld [vmem:[%s8 + $0x18] sm:$0xff]
  %v4447 = vld [vmem:[%s8 + $0x20] sm:$0x1]
  %v4448 = vlaneseq
  %v4449 = vshrl.u32 %v4448, 7
  %v4450 = vsub.s32 0, %v4449
  %v4451 = vrot.slane %v4447, %v4450
  %4453 = vrot.lane.b32.xlu0 %v4442, 96
  %v4454 = vpop.permute.xlu0 %4453
  %v4455 = vsel %vm641, %v4454, 0
  %4457 = vmatprep.subr.mxu0 0.0
  %4458 = vmatpush1.msra.mxu0 0.0
  %4459 = vmatprep.subr.mxu0 0.0
  %4460 = vmatpush1.msra.mxu0 0.0
  %4461 = vmatprep.subr.mxu0 0.0
  %4462 = vmatpush1.msra.mxu0 0.0
  %4463 = vmatprep.subr.mxu0 0.0
  %4464 = vmatpush1.msra.mxu0 0.0
  %4465 = vmatprep.subr.mxu0 0.0
  %4466 = vmatpush1.msra.mxu0 0.0
  %4467 = vmatprep.subr.mxu0 0.0
  %4468 = vmatpush1.msra.mxu0 0.0
  %4469 = vmatprep.subr.mxu0 0.0
  %4470 = vmatpush1.msra.mxu0 0.0
  %4471 = vmatprep.subr.mxu0 0.0
  %4472 = vmatpush1.msra.mxu0 0.0
  %4473 = vmatprep.subr.mxu0 0.0
  %4474 = vmatpush1.msra.mxu0 0.0
  %4475 = vmatprep.subr.mxu0 0.0
  %4476 = vmatpush1.msra.mxu0 0.0
  %4477 = vmatprep.subr.mxu0 0.0
  %4478 = vmatpush1.msra.mxu0 0.0
  %4479 = vmatprep.subr.mxu0 0.0
  %4480 = vmatpush1.msra.mxu0 0.0
  %4481 = vmatprep.subr.mxu0 0.0
  %4482 = vmatpush1.msra.mxu0 %v4446
  %4483 = vmatprep.subr.mxu0 0.0
  %4484 = vmatpush1.msra.mxu0 %v4445
  %4485 = vmatprep.subr.mxu0 0.0
  %4486 = vmatpush1.msra.mxu0 %v4444
  %4487 = vmatprep.subr.mxu0 0.0
  %4488 = vmatpush1.msra.mxu0 %v4443
  %4489 = vmatprep.subr.mxu0 0.0
  %4490 = vmatpush2.msra.mxu0 0.0
  %4491 = vmatprep.subr.mxu0 0.0
  %4492 = vmatpush2.msra.mxu0 0.0
  %4493 = vmatprep.subr.mxu0 0.0
  %4494 = vmatpush2.msra.mxu0 0.0
  %4495 = vmatprep.subr.mxu0 0.0
  %4496 = vmatpush2.msra.mxu0 0.0
  %4497 = vmatprep.subr.mxu0 0.0
  %4498 = vmatpush2.msra.mxu0 0.0
  %4499 = vmatprep.subr.mxu0 0.0
  %4500 = vmatpush2.msra.mxu0 0.0
  %4501 = vmatprep.subr.mxu0 0.0
  %4502 = vmatpush2.msra.mxu0 0.0
  %4503 = vmatprep.subr.mxu0 0.0
  %4504 = vmatpush2.msra.mxu0 0.0
  %4505 = vmatprep.subr.mxu0 0.0
  %4506 = vmatpush2.msra.mxu0 0.0
  %4507 = vmatprep.subr.mxu0 0.0
  %4508 = vmatpush2.msra.mxu0 0.0
  %4509 = vmatprep.subr.mxu0 0.0
  %4510 = vmatpush2.msra.mxu0 0.0
  %4511 = vmatprep.subr.mxu0 0.0
  %4512 = vmatpush2.msra.mxu0 0.0
  %4513 = vmatprep.subr.mxu0 0.0
  %4514 = vmatpush2.msra.mxu0 0.0
  %4515 = vmatprep.subr.mxu0 0.0
  %4516 = vmatpush2.msra.mxu0 0.0
  %4517 = vmatprep.subr.mxu0 0.0
  %4518 = vmatpush2.msra.mxu0 0.0
  %4519 = vmatprep.subr.mxu0 0.0
  %4520 = vmatpush2.msra.mxu0 0.0
  %4521 = vmatprep.mubr.f32.mxu0 0.0
  %4522 = vmatmul.mubr.f32.gmra.mxu0 %v4455
  %v4523 = vpop.f32.mrf.mxu0
  %v4524 = vadd.f32 %v4451, %v4523
  %v4525 = vpop.f32.mrf.mxu0
  %4526 = vdwg.mxu0
  %vm4527 = vcmask 1024
  %4528 = vst.msk [vmem:[%s9] sm:$0x3] %vm4527, %v4524
  // Predicated region
  $region38: #{rl_hard_share_forward.1} parent=0 // pred_check
    _
  $region39: #{rl_hard_share_forward.1} parent=0 // pred_check_branch
    %4530 = sbr.rel (0) target = $region41
  $region40: #{rl_hard_share_forward.1} parent=0 // pred_region
    _
  $region41: #{rl_hard_share_forward.1} parent=0 // pred_fallthru
    _
  // Predicated region
  $region42: #{rl_hard_share_forward.1} parent=0 // pred_check
    _
  $region43: #{rl_hard_share_forward.1} parent=0 // pred_check_branch
    %4532 = sbr.rel (0) target = $region45
  $region44: #{rl_hard_share_forward.1} parent=0 // pred_region
    _
  $region45: #{rl_hard_share_forward.1} parent=0 // pred_fallthru
    _

</llo_original>
